<compile_context>
chip_gen: v7x
topology: tpu7x:2x2x1
jax: 0.10.0
libtpu: 0.0.40
codegen_flags: <defaults>
</compile_context>

<pallas_src>
import functools
import jax
import jax.numpy as jnp
from jax.experimental import pallas as pl
from jax.experimental.pallas import tpu as pltpu

K_PARTIAL = 4          # "self.k" in the module (partial-channel factor)
NUM_OPS = 5            # none, skip_connect, nor_conv_1x1, nor_conv_3x3, avg_pool_3x3
MAX_NODES = 4
BN_EPS = 1e-5


def _round_up(x, m):
    return (x + m - 1) // m * m


# --------------------------------------------------------------------------
# Pallas kernel: all outgoing edges of one node, one (phase, row-block) step.
# --------------------------------------------------------------------------
def _node_edges_kernel(alpha_ref, xb_ref, invc_ref, wbig_ref, out_ref,
                       xs_ref, s1_ref, s2_ref,
                       *, n_edges, cq, rblk, halo, offsets, inv_r_valid):
    """grid = (2, G).  Phase 0: accumulate BN sum/sumsq for the conv outputs of
    every outgoing edge.  Phase 1: normalize, mix with the architecture
    weights and write the result.

    alpha_ref : SMEM (E, 5)            softmaxed arch weights per edge
    xb_ref    : VMEM (1, cq, rblk+2h)  haloed block of the padded, channel-major
                                       flattened input (lanes = flat positions)
    invc_ref  : VMEM (1, 1, rblk)      1/pool-count at valid positions, else 0
                                       (doubles as the validity mask)
    wbig_ref  : VMEM (E*2*cq, 9*cq)    stacked conv weights (per edge: conv1x1
                                       rows then conv3x3 rows; cols = 9 taps)
    out_ref   : VMEM (E*cq, rblk)      mixed output rows for every edge
    xs_ref    : VMEM scratch (9*cq, rblk)  stacked ReLU'd taps (matmul RHS)
    s1/s2_ref : VMEM scratch (E*2*cq, 1)   BN sum / sumsq -> mean / rstd
    """
    phase = pl.program_id(0)
    g = pl.program_id(1)

    xb = xb_ref[0].astype(jnp.float32)          # (cq, rblk + 2*halo)
    invc = invc_ref[0]                          # (1, rblk) f32

    # Build the stacked (9*cq, rblk) ReLU'd tap matrix in VMEM from the single
    # haloed block, then ONE fused matmul for the 1x1 + 3x3 convs of all edges.
    xr = jnp.maximum(xb, 0.0)
    for t, off in enumerate(offsets):
        xs_ref[t * cq:(t + 1) * cq, :] = xr[:, halo + off: halo + off + rblk]
    y = jnp.dot(wbig_ref[...], xs_ref[...],
                preferred_element_type=jnp.float32)          # (E*2*cq, rblk)

    @pl.when(jnp.logical_and(phase == 0, g == 0))
    def _():
        s1_ref[...] = jnp.zeros_like(s1_ref)
        s2_ref[...] = jnp.zeros_like(s2_ref)

    @pl.when(phase == 0)
    def _():
        # BN statistics over valid output positions only.
        mask = (invc > 0.0).astype(jnp.float32)              # (1, rblk)
        ym = y * mask
        s1_ref[...] += jnp.sum(ym, axis=1, keepdims=True)
        s2_ref[...] += jnp.sum(ym * y, axis=1, keepdims=True)

    @pl.when(jnp.logical_and(phase == 1, g == 0))
    def _():
        # Finalize: overwrite the accumulators with mean and rsqrt(var+eps).
        mean = s1_ref[...] * inv_r_valid
        # NOTE: E[y^2]-mean^2 can cancel; sums are kept in f32 and var clamped.
        var = jnp.maximum(s2_ref[...] * inv_r_valid - mean * mean, 0.0)
        s1_ref[...] = mean
        s2_ref[...] = jax.lax.rsqrt(var + BN_EPS)

    @pl.when(phase == 1)
    def _():
        mean = s1_ref[...]
        rstd = s2_ref[...]
        ybn = (y - mean) * rstd                              # (E*2*cq, rblk)

        # skip_connect and avg_pool_3x3 (count_include_pad=False) share the
        # un-ReLU'd taps across all edges.
        center = xb[:, halo: halo + rblk]                    # (cq, rblk)
        tap_sum = center
        for off in offsets:
            if off == 0:
                continue
            tap_sum = tap_sum + xb[:, halo + off: halo + off + rblk]
        pool = tap_sum * invc                                # (cq, rblk)

        for e in range(n_edges):
            a_skip = alpha_ref[e, 1]
            a_c1 = alpha_ref[e, 2]
            a_c3 = alpha_ref[e, 3]
            a_pool = alpha_ref[e, 4]
            r0 = e * 2 * cq
            y1 = ybn[r0: r0 + cq]
            y3 = ybn[r0 + cq: r0 + 2 * cq]
            # op 0 ('none' / Zero) contributes nothing.
            out_ref[e * cq:(e + 1) * cq, :] = (
                a_skip * center + a_c1 * y1 + a_c3 * y3 + a_pool * pool)


# --------------------------------------------------------------------------
# JAX wrapper: mixed op for every outgoing edge of one node (shared input).
# --------------------------------------------------------------------------
def _node_mixed_ops(x, alphas, w1_list, w3_list, *, max_rblk=512,
                    stream_dtype=jnp.float32):
    """x: (N, C, H, W).  Returns (E, N, Cq, H, W) per-edge mixed-op outputs on
    the partial channels.  w1/w3 are in PyTorch (Cout, Cin, kh, kw) layout."""
    N, C, H, W = x.shape
    cq = C // K_PARTIAL
    E = len(w1_list)
    e2c = E * 2 * cq
    hp, wp = H + 2, W + 2
    rp = N * hp * wp
    halo = wp + 1

    rblk = min(_round_up(max_rblk, 128), _round_up(rp, 128))
    G = -(-rp // rblk)
    L = G * rblk
    w_in = rblk + 2 * halo

    # Channel-major, spatially zero-padded, flattened input; haloed row blocks
    # so the kernel can derive all nine 3x3 taps from a single stream.
    xtemp = x[:, :cq]
    xp = jnp.pad(xtemp, ((0, 0), (0, 0), (1, 1), (1, 1)))
    flat = jnp.transpose(xp, (1, 0, 2, 3)).reshape(cq, rp)
    flat = jnp.pad(flat, ((0, 0), (halo, L - rp + halo)))
    xblocks = jnp.stack(
        [flat[:, g * rblk: g * rblk + w_in] for g in range(G)],
        axis=0).astype(stream_dtype)                         # (G, cq, w_in)

    # 1 / (valid 3x3 window size) for avg pool; 0 marks padded / tail rows.
    ry = (jnp.minimum(jnp.arange(H) + 1, H - 1)
          - jnp.maximum(jnp.arange(H) - 1, 0) + 1)
    rx = (jnp.minimum(jnp.arange(W) + 1, W - 1)
          - jnp.maximum(jnp.arange(W) - 1, 0) + 1)
    inv_hw = 1.0 / (ry[:, None] * rx[None, :]).astype(jnp.float32)
    inv_p = jnp.zeros((hp, wp), jnp.float32).at[1:H + 1, 1:W + 1].set(inv_hw)
    inv_flat = jnp.pad(
        jnp.broadcast_to(inv_p[None], (N, hp, wp)).reshape(rp), (0, L - rp))
    invc_blocks = inv_flat.reshape(G, 1, rblk)

    # Stacked conv weights for all edges: rows [conv1x1 ; conv3x3] per edge,
    # columns = 9 taps x cq input channels (conv1x1 only at the center tap).
    offsets = tuple((dy - 1) * wp + (dx - 1)
                    for dy in range(3) for dx in range(3))
    wbig = jnp.zeros((e2c, 9 * cq), jnp.float32)
    for e in range(E):
        r0 = e * 2 * cq
        wbig = wbig.at[r0:r0 + cq, 4 * cq:5 * cq].set(w1_list[e][:, :, 0, 0])
        for t in range(9):
            wbig = wbig.at[r0 + cq:r0 + 2 * cq, t * cq:(t + 1) * cq].set(
                w3_list[e][:, :, t // 3, t % 3])

    kernel = functools.partial(
        _node_edges_kernel, n_edges=E, cq=cq, rblk=rblk, halo=halo,
        offsets=offsets, inv_r_valid=1.0 / float(N * H * W))

    out = pl.pallas_call(
        kernel,
        out_shape=jax.ShapeDtypeStruct((E * cq, L), jnp.float32),
        grid=(2, G),
        in_specs=[
            pl.BlockSpec(memory_space=pltpu.MemorySpace.SMEM),      # alphas
            pl.BlockSpec((1, cq, w_in), lambda p, g: (g, 0, 0)),    # x blocks
            pl.BlockSpec((1, 1, rblk), lambda p, g: (g, 0, 0)),     # inv count
            pl.BlockSpec((e2c, 9 * cq), lambda p, g: (0, 0)),       # weights
        ],
        # During phase 0 (p==0) every step maps to block 0 -> no garbage
        # writebacks; phase 1 (p==1) writes each lane-dense block once.
        out_specs=pl.BlockSpec((E * cq, rblk), lambda p, g: (0, p * g)),
        scratch_shapes=[
            pltpu.VMEM((9 * cq, rblk), jnp.float32),   # stacked ReLU'd taps
            pltpu.VMEM((e2c, 1), jnp.float32),         # BN sum   -> mean
            pltpu.VMEM((e2c, 1), jnp.float32),         # BN sumsq -> rstd
        ],
        compiler_params=pltpu.CompilerParams(
            # Both axes serial: the block axis carries the BN accumulation.
            # TODO(synk): per-core partial BN stats would let the block axis be
            # 'parallel' so v7x's two TensorCores split the work.
            dimension_semantics=("arbitrary", "arbitrary")),
    )(alphas, xblocks, invc_blocks, wbig)

    out = out[:, :rp].reshape(E, cq, N, hp, wp)[:, :, :, 1:H + 1, 1:W + 1]
    return jnp.transpose(out, (0, 2, 1, 3, 4))               # (E, N, cq, H, W)


# --------------------------------------------------------------------------
# Cell-level glue (plain JAX)
# --------------------------------------------------------------------------
def channel_shuffle(x, groups):
    n, c, h, w = x.shape
    x = x.reshape(n, groups, c // groups, h, w)
    x = jnp.transpose(x, (0, 2, 1, 3, 4))
    return x.reshape(n, c, h, w)


def make_edge_keys(max_nodes):
    keys = sorted('{:}<-{:}'.format(i, j)
                  for i in range(1, max_nodes) for j in range(i))
    return keys, {k: i for i, k in enumerate(keys)}


def nas201_cell_forward(inputs, weightss, weights2s, params,
                        max_nodes=MAX_NODES, max_rblk=512,
                        stream_dtype=jnp.float32):
    """Mirror of NAS201SearchCell.forward (PC-DARTS weighting), stride=1.
    All outgoing edges of a node share one fused Pallas call."""
    _, edge2index = make_edge_keys(max_nodes)
    C = inputs.shape[1]
    cq = C // K_PARTIAL

    nodes = [inputs]
    contrib = {i: [] for i in range(1, max_nodes)}
    for j in range(max_nodes - 1):
        if j > 0:
            nodes.append(functools.reduce(lambda a, b: a + b, contrib[j]))
        src = nodes[j]
        targets = list(range(j + 1, max_nodes))
        names = ['{:}<-{:}'.format(i, j) for i in targets]
        alphas = jnp.stack([weightss[edge2index[nm]] for nm in names])
        w1s = [params[nm][0] for nm in names]
        w3s = [params[nm][1] for nm in names]
        temp1 = _node_mixed_ops(src, alphas, w1s, w3s,
                                max_rblk=max_rblk, stream_dtype=stream_dtype)
        xtemp2 = src[:, cq:]
        for t_idx, i in enumerate(targets):
            nm = names[t_idx]
            ans = channel_shuffle(
                jnp.concatenate([temp1[t_idx], xtemp2], axis=1), K_PARTIAL)
            contrib[i].append(weights2s[edge2index[nm]] * ans)
    return functools.reduce(lambda a, b: a + b, contrib[max_nodes - 1])


# --------------------------------------------------------------------------
# Pure-JAX reference (sanity check of the kernel path)
# --------------------------------------------------------------------------
def _edge_mixed_op_ref(xtemp, alpha, w1, w3):
    N, cq, H, W = xtemp.shape
    x = jnp.transpose(xtemp, (0, 2, 3, 1))                   # NHWC
    xp = jnp.pad(x, ((0, 0), (1, 1), (1, 1), (0, 0)))
    xr = jnp.maximum(xp, 0.0)

    y1 = jnp.einsum('nhwc,dc->nhwd', jnp.maximum(x, 0.0), w1[:, :, 0, 0])
    y3 = jnp.zeros_like(y1)
    s = jnp.zeros_like(x)
    for dy in range(3):
        for dx in range(3):
            y3 = y3 + jnp.einsum('nhwc,dc->nhwd',
                                 xr[:, dy:dy + H, dx:dx + W, :],
                                 w3[:, :, dy, dx])
            s = s + xp[:, dy:dy + H, dx:dx + W, :]

    def bn(y):
        mean = jnp.mean(y, axis=(0, 1, 2), keepdims=True)
        var = jnp.mean(jnp.square(y - mean), axis=(0, 1, 2), keepdims=True)
        return (y - mean) / jnp.sqrt(var + BN_EPS)

    ry = (jnp.minimum(jnp.arange(H) + 1, H - 1)
          - jnp.maximum(jnp.arange(H) - 1, 0) + 1)
    rx = (jnp.minimum(jnp.arange(W) + 1, W - 1)
          - jnp.maximum(jnp.arange(W) - 1, 0) + 1)
    cnt = (ry[:, None] * rx[None, :]).astype(jnp.float32)[None, :, :, None]
    pool = s / cnt

    out = alpha[1] * x + alpha[2] * bn(y1) + alpha[3] * bn(y3) + alpha[4] * pool
    return jnp.transpose(out, (0, 3, 1, 2))


def nas201_cell_forward_ref(inputs, weightss, weights2s, params,
                            max_nodes=MAX_NODES):
    _, edge2index = make_edge_keys(max_nodes)
    nodes = [inputs]
    for i in range(1, max_nodes):
        inter = []
        for j in range(i):
            nm = '{:}<-{:}'.format(i, j)
            idx = edge2index[nm]
            w1, w3 = params[nm]
            x = nodes[j]
            cq = x.shape[1] // K_PARTIAL
            temp1 = _edge_mixed_op_ref(x[:, :cq], weightss[idx], w1, w3)
            ans = channel_shuffle(
                jnp.concatenate([temp1, x[:, cq:]], axis=1), K_PARTIAL)
            inter.append(weights2s[idx] * ans)
        nodes.append(functools.reduce(lambda a, b: a + b, inter))
    return nodes[-1]


# --------------------------------------------------------------------------
if __name__ == "__main__":
    # TODO(synk): only the main `forward` (PC-DARTS weighting) path is
    # kernelized; forward_gdas/_v1/urs/select/joint/dynamic use host-side
    # random / argmax op selection and are left out.  stride=1 cell only.
    N, C, H, W = 2, 16, 16, 16          # C divisible by k=4 -> Cq=4
    cq = C // K_PARTIAL

    key = jax.random.PRNGKey(0)
    k_x, k_a, k_a2, k_w = jax.random.split(key, 4)
    x = jax.random.normal(k_x, (N, C, H, W), dtype=jnp.float32)

    edge_keys, _ = make_edge_keys(MAX_NODES)
    num_edges = len(edge_keys)                               # 6

    weightss = jax.nn.softmax(
        jax.random.normal(k_a, (num_edges, NUM_OPS), dtype=jnp.float32),
        axis=-1)
    weights2s = jax.nn.sigmoid(
        jax.random.normal(k_a2, (num_edges,), dtype=jnp.float32))

    params = {}
    for ek, kk in zip(edge_keys, jax.random.split(k_w, num_edges)):
        k1, k3 = jax.random.split(kk)
        w1 = 0.1 * jax.random.normal(k1, (cq, cq, 1, 1), dtype=jnp.float32)
        w3 = 0.1 * jax.random.normal(k3, (cq, cq, 3, 3), dtype=jnp.float32)
        params[ek] = (w1, w3)                                # (Cout,Cin,kh,kw)

    fwd = jax.jit(functools.partial(nas201_cell_forward, max_rblk=256))
    out = jax.block_until_ready(fwd(x, weightss, weights2s, params))

    ref = jax.block_until_ready(
        jax.jit(nas201_cell_forward_ref)(x, weightss, weights2s, params))

    assert out.shape == (N, C, H, W), out.shape
    err = float(jnp.max(jnp.abs(out - ref)))
    assert err < 1e-3, err

    # Optional bf16 activation streaming (halves the dominant HBM stream on
    # v6e/v7x; all accumulation stays f32).  Loose tolerance: the difference
    # vs. the f32 reference is dominated by bf16 rounding of the activations.
    fwd_bf16 = jax.jit(functools.partial(
        nas201_cell_forward, max_rblk=256, stream_dtype=jnp.bfloat16))
    out_bf16 = jax.block_until_ready(fwd_bf16(x, weightss, weights2s, params))
    err_bf16 = float(jnp.max(jnp.abs(out_bf16 - ref)))
    assert err_bf16 < 1e-1, err_bf16

    print("KERNEL_OK")
</pallas_src>

<mosaic_0001>
module attributes {stable_mosaic.version = 11 : i64} {
  func.func @_node_edges_kernel(%arg0: i32, %arg1: i32, %arg2: memref<3x5xf32, #tpu.memory_space<smem>>, %arg3: memref<1x4x294xf32, #tpu.memory_space<vmem>>, %arg4: memref<1x1x256xf32, #tpu.memory_space<vmem>>, %arg5: memref<24x36xf32, #tpu.memory_space<vmem>>, %arg6: memref<12x256xf32, #tpu.memory_space<vmem>>, %arg7: memref<36x256xf32, #tpu.memory_space<vmem>>, %arg8: memref<24x1xf32, #tpu.memory_space<vmem>>, %arg9: memref<24x1xf32, #tpu.memory_space<vmem>>) attributes {dimension_semantics = [#tpu.dimension_semantics<arbitrary>, #tpu.dimension_semantics<arbitrary>], iteration_bounds = array<i64: 2, 3>, scalar_prefetch = 0 : i64, scratch_operands = 3 : i64, tpu.core_type = #tpu.core_type<tc>, window_params = [{transform_indices = @transform_0, window_bounds = array<i64: 3, 5>}, {transform_indices = @transform_1, window_bounds = array<i64: 1, 4, 294>}, {transform_indices = @transform_2, window_bounds = array<i64: 1, 1, 256>}, {pipeline_mode = #tpu.pipeline_mode<synchronous>, transform_indices = @transform_3, window_bounds = array<i64: 24, 36>}, {transform_indices = @transform_4, window_bounds = array<i64: 12, 256>}]} {
    %c0 = arith.constant 0 : index
    %c0_0 = arith.constant 0 : index
    %c0_1 = arith.constant 0 : index
    %0 = vector.load %arg3[%c0, %c0_0, %c0_1] : memref<1x4x294xf32, #tpu.memory_space<vmem>>, vector<1x4x294xf32>
    %1 = vector.shape_cast %0 : vector<1x4x294xf32> to vector<4x294xf32>
    %c0_2 = arith.constant 0 : index
    %c0_3 = arith.constant 0 : index
    %c0_4 = arith.constant 0 : index
    %2 = vector.load %arg4[%c0_2, %c0_3, %c0_4] : memref<1x1x256xf32, #tpu.memory_space<vmem>>, vector<1x1x256xf32>
    %3 = vector.shape_cast %2 : vector<1x1x256xf32> to vector<1x256xf32>
    %cst = arith.constant 0.000000e+00 : f32
    %4 = vector.broadcast %cst : f32 to vector<4x294xf32>
    %5 = arith.maximumf %1, %4 : vector<4x294xf32>
    %6 = vector.extract_strided_slice %5 {offsets = [0, 0], sizes = [4, 256], strides = [1, 1]} : vector<4x294xf32> to vector<4x256xf32>
    %c0_5 = arith.constant 0 : index
    %c0_6 = arith.constant 0 : index
    %7 = vector.load %arg7[%c0_5, %c0_6] : memref<36x256xf32, #tpu.memory_space<vmem>>, vector<4x256xf32>
    tpu.vector_store %arg7[%c0_5, %c0_6], %6 {strides = array<i32>} : memref<36x256xf32, #tpu.memory_space<vmem>>, vector<4x256xf32>,
    %8 = vector.extract_strided_slice %5 {offsets = [0, 1], sizes = [4, 256], strides = [1, 1]} : vector<4x294xf32> to vector<4x256xf32>
    %c4 = arith.constant 4 : index
    %c0_7 = arith.constant 0 : index
    %9 = vector.load %arg7[%c4, %c0_7] : memref<36x256xf32, #tpu.memory_space<vmem>>, vector<4x256xf32>
    tpu.vector_store %arg7[%c4, %c0_7], %8 {strides = array<i32>} : memref<36x256xf32, #tpu.memory_space<vmem>>, vector<4x256xf32>,
    %10 = vector.extract_strided_slice %5 {offsets = [0, 2], sizes = [4, 256], strides = [1, 1]} : vector<4x294xf32> to vector<4x256xf32>
    %c8 = arith.constant 8 : index
    %c0_8 = arith.constant 0 : index
    %11 = vector.load %arg7[%c8, %c0_8] : memref<36x256xf32, #tpu.memory_space<vmem>>, vector<4x256xf32>
    tpu.vector_store %arg7[%c8, %c0_8], %10 {strides = array<i32>} : memref<36x256xf32, #tpu.memory_space<vmem>>, vector<4x256xf32>,
    %12 = vector.extract_strided_slice %5 {offsets = [0, 18], sizes = [4, 256], strides = [1, 1]} : vector<4x294xf32> to vector<4x256xf32>
    %c12 = arith.constant 12 : index
    %c0_9 = arith.constant 0 : index
    %13 = vector.load %arg7[%c12, %c0_9] : memref<36x256xf32, #tpu.memory_space<vmem>>, vector<4x256xf32>
    tpu.vector_store %arg7[%c12, %c0_9], %12 {strides = array<i32>} : memref<36x256xf32, #tpu.memory_space<vmem>>, vector<4x256xf32>,
    %14 = vector.extract_strided_slice %5 {offsets = [0, 19], sizes = [4, 256], strides = [1, 1]} : vector<4x294xf32> to vector<4x256xf32>
    %c16 = arith.constant 16 : index
    %c0_10 = arith.constant 0 : index
    %15 = vector.load %arg7[%c16, %c0_10] : memref<36x256xf32, #tpu.memory_space<vmem>>, vector<4x256xf32>
    tpu.vector_store %arg7[%c16, %c0_10], %14 {strides = array<i32>} : memref<36x256xf32, #tpu.memory_space<vmem>>, vector<4x256xf32>,
    %16 = vector.extract_strided_slice %5 {offsets = [0, 20], sizes = [4, 256], strides = [1, 1]} : vector<4x294xf32> to vector<4x256xf32>
    %c20 = arith.constant 20 : index
    %c0_11 = arith.constant 0 : index
    %17 = vector.load %arg7[%c20, %c0_11] : memref<36x256xf32, #tpu.memory_space<vmem>>, vector<4x256xf32>
    tpu.vector_store %arg7[%c20, %c0_11], %16 {strides = array<i32>} : memref<36x256xf32, #tpu.memory_space<vmem>>, vector<4x256xf32>,
    %18 = vector.extract_strided_slice %5 {offsets = [0, 36], sizes = [4, 256], strides = [1, 1]} : vector<4x294xf32> to vector<4x256xf32>
    %c24 = arith.constant 24 : index
    %c0_12 = arith.constant 0 : index
    %19 = vector.load %arg7[%c24, %c0_12] : memref<36x256xf32, #tpu.memory_space<vmem>>, vector<4x256xf32>
    tpu.vector_store %arg7[%c24, %c0_12], %18 {strides = array<i32>} : memref<36x256xf32, #tpu.memory_space<vmem>>, vector<4x256xf32>,
    %20 = vector.extract_strided_slice %5 {offsets = [0, 37], sizes = [4, 256], strides = [1, 1]} : vector<4x294xf32> to vector<4x256xf32>
    %c28 = arith.constant 28 : index
    %c0_13 = arith.constant 0 : index
    %21 = vector.load %arg7[%c28, %c0_13] : memref<36x256xf32, #tpu.memory_space<vmem>>, vector<4x256xf32>
    tpu.vector_store %arg7[%c28, %c0_13], %20 {strides = array<i32>} : memref<36x256xf32, #tpu.memory_space<vmem>>, vector<4x256xf32>,
    %22 = vector.extract_strided_slice %5 {offsets = [0, 38], sizes = [4, 256], strides = [1, 1]} : vector<4x294xf32> to vector<4x256xf32>
    %c32 = arith.constant 32 : index
    %c0_14 = arith.constant 0 : index
    %23 = vector.load %arg7[%c32, %c0_14] : memref<36x256xf32, #tpu.memory_space<vmem>>, vector<4x256xf32>
    tpu.vector_store %arg7[%c32, %c0_14], %22 {strides = array<i32>} : memref<36x256xf32, #tpu.memory_space<vmem>>, vector<4x256xf32>,
    %c0_15 = arith.constant 0 : index
    %c0_16 = arith.constant 0 : index
    %24 = vector.load %arg5[%c0_15, %c0_16] : memref<24x36xf32, #tpu.memory_space<vmem>>, vector<24x36xf32>
    %c0_17 = arith.constant 0 : index
    %c0_18 = arith.constant 0 : index
    %25 = vector.load %arg7[%c0_17, %c0_18] : memref<36x256xf32, #tpu.memory_space<vmem>>, vector<36x256xf32>
    %cst_19 = arith.constant dense<0.000000e+00> : vector<24x256xf32>
    %26 = tpu.matmul %24, %25, %cst_19 {dimension_numbers = #tpu.dot_dimension_numbers<[1], [0], [0], [1], [0, 0, 1, 1], [], []>} : vector<24x36xf32>, vector<36x256xf32>, vector<24x256xf32> -> vector<24x256xf32>
    %c0_i32 = arith.constant 0 : i32
    %27 = arith.cmpi eq, %arg0, %c0_i32 : i32
    %c0_i32_20 = arith.constant 0 : i32
    %28 = arith.cmpi eq, %arg1, %c0_i32_20 : i32
    %29 = arith.andi %27, %28 : i1
    %30 = arith.extui %29 : i1 to i32
    %c0_i32_21 = arith.constant 0 : i32
    %31 = arith.cmpi ne, %30, %c0_i32_21 : i32
    scf.if %31 {
      %cst_28 = arith.constant 0.000000e+00 : f32
      %43 = vector.broadcast %cst_28 : f32 to vector<24x1xf32>
      %c0_29 = arith.constant 0 : index
      %c0_30 = arith.constant 0 : index
      %44 = vector.load %arg8[%c0_29, %c0_30] : memref<24x1xf32, #tpu.memory_space<vmem>>, vector<24x1xf32>
      tpu.vector_store %arg8[%c0_29, %c0_30], %43 {strides = array<i32>} : memref<24x1xf32, #tpu.memory_space<vmem>>, vector<24x1xf32>,
      %cst_31 = arith.constant 0.000000e+00 : f32
      %45 = vector.broadcast %cst_31 : f32 to vector<24x1xf32>
      %c0_32 = arith.constant 0 : index
      %c0_33 = arith.constant 0 : index
      %46 = vector.load %arg9[%c0_32, %c0_33] : memref<24x1xf32, #tpu.memory_space<vmem>>, vector<24x1xf32>
      tpu.vector_store %arg9[%c0_32, %c0_33], %45 {strides = array<i32>} : memref<24x1xf32, #tpu.memory_space<vmem>>, vector<24x1xf32>,
    } else {
    }
    %c0_i32_22 = arith.constant 0 : i32
    %32 = arith.cmpi eq, %arg0, %c0_i32_22 : i32
    %33 = arith.extui %32 : i1 to i32
    %c0_i32_23 = arith.constant 0 : i32
    %34 = arith.cmpi ne, %33, %c0_i32_23 : i32
    scf.if %34 {
      %cst_28 = arith.constant 0.000000e+00 : f32
      %43 = vector.broadcast %cst_28 : f32 to vector<1x256xf32>
      %44 = arith.cmpf ogt, %3, %43 : vector<1x256xf32>
      %45 = arith.extui %44 : vector<1x256xi1> to vector<1x256xi32>
      %46 = arith.sitofp %45 : vector<1x256xi32> to vector<1x256xf32>
      %47 = vector.broadcast %46 : vector<1x256xf32> to vector<24x256xf32>
      %48 = arith.mulf %26, %47 : vector<24x256xf32>
      %c0_29 = arith.constant 0 : index
      %c0_30 = arith.constant 0 : index
      %49 = vector.load %arg8[%c0_29, %c0_30] : memref<24x1xf32, #tpu.memory_space<vmem>>, vector<24x1xf32>
      %cst_31 = arith.constant dense<0.000000e+00> : vector<24xf32>
      %50 = vector.multi_reduction <add>, %48, %cst_31 [1] : vector<24x256xf32> to vector<24xf32>
      %51 = vector.shape_cast %50 : vector<24xf32> to vector<24x1xf32>
      %52 = arith.addf %49, %51 : vector<24x1xf32>
      %c0_32 = arith.constant 0 : index
      %c0_33 = arith.constant 0 : index
      %53 = vector.load %arg8[%c0_32, %c0_33] : memref<24x1xf32, #tpu.memory_space<vmem>>, vector<24x1xf32>
      tpu.vector_store %arg8[%c0_32, %c0_33], %52 {strides = array<i32>} : memref<24x1xf32, #tpu.memory_space<vmem>>, vector<24x1xf32>,
      %c0_34 = arith.constant 0 : index
      %c0_35 = arith.constant 0 : index
      %54 = vector.load %arg9[%c0_34, %c0_35] : memref<24x1xf32, #tpu.memory_space<vmem>>, vector<24x1xf32>
      %55 = arith.mulf %48, %26 : vector<24x256xf32>
      %cst_36 = arith.constant dense<0.000000e+00> : vector<24xf32>
      %56 = vector.multi_reduction <add>, %55, %cst_36 [1] : vector<24x256xf32> to vector<24xf32>
      %57 = vector.shape_cast %56 : vector<24xf32> to vector<24x1xf32>
      %58 = arith.addf %54, %57 : vector<24x1xf32>
      %c0_37 = arith.constant 0 : index
      %c0_38 = arith.constant 0 : index
      %59 = vector.load %arg9[%c0_37, %c0_38] : memref<24x1xf32, #tpu.memory_space<vmem>>, vector<24x1xf32>
      tpu.vector_store %arg9[%c0_37, %c0_38], %58 {strides = array<i32>} : memref<24x1xf32, #tpu.memory_space<vmem>>, vector<24x1xf32>,
    } else {
    }
    %c1_i32 = arith.constant 1 : i32
    %35 = arith.cmpi eq, %arg0, %c1_i32 : i32
    %c0_i32_24 = arith.constant 0 : i32
    %36 = arith.cmpi eq, %arg1, %c0_i32_24 : i32
    %37 = arith.andi %35, %36 : i1
    %38 = arith.extui %37 : i1 to i32
    %c0_i32_25 = arith.constant 0 : i32
    %39 = arith.cmpi ne, %38, %c0_i32_25 : i32
    scf.if %39 {
      %c0_28 = arith.constant 0 : index
      %c0_29 = arith.constant 0 : index
      %43 = vector.load %arg8[%c0_28, %c0_29] : memref<24x1xf32, #tpu.memory_space<vmem>>, vector<24x1xf32>
      %cst_30 = arith.constant 0.001953125 : f32
      %44 = vector.broadcast %cst_30 : f32 to vector<24x1xf32>
      %45 = arith.mulf %43, %44 : vector<24x1xf32>
      %c0_31 = arith.constant 0 : index
      %c0_32 = arith.constant 0 : index
      %46 = vector.load %arg9[%c0_31, %c0_32] : memref<24x1xf32, #tpu.memory_space<vmem>>, vector<24x1xf32>
      %cst_33 = arith.constant 0.001953125 : f32
      %47 = vector.broadcast %cst_33 : f32 to vector<24x1xf32>
      %48 = arith.mulf %46, %47 : vector<24x1xf32>
      %49 = arith.mulf %45, %45 : vector<24x1xf32>
      %50 = arith.subf %48, %49 : vector<24x1xf32>
      %cst_34 = arith.constant 0.000000e+00 : f32
      %51 = vector.broadcast %cst_34 : f32 to vector<24x1xf32>
      %52 = arith.maximumf %50, %51 : vector<24x1xf32>
      %c0_35 = arith.constant 0 : index
      %c0_36 = arith.constant 0 : index
      %53 = vector.load %arg8[%c0_35, %c0_36] : memref<24x1xf32, #tpu.memory_space<vmem>>, vector<24x1xf32>
      tpu.vector_store %arg8[%c0_35, %c0_36], %45 {strides = array<i32>} : memref<24x1xf32, #tpu.memory_space<vmem>>, vector<24x1xf32>,
      %cst_37 = arith.constant 9.99999974E-6 : f32
      %54 = vector.broadcast %cst_37 : f32 to vector<24x1xf32>
      %55 = arith.addf %52, %54 : vector<24x1xf32>
      %56 = math.rsqrt %55 : vector<24x1xf32>
      %c0_38 = arith.constant 0 : index
      %c0_39 = arith.constant 0 : index
      %57 = vector.load %arg9[%c0_38, %c0_39] : memref<24x1xf32, #tpu.memory_space<vmem>>, vector<24x1xf32>
      tpu.vector_store %arg9[%c0_38, %c0_39], %56 {strides = array<i32>} : memref<24x1xf32, #tpu.memory_space<vmem>>, vector<24x1xf32>,
    } else {
    }
    %c1_i32_26 = arith.constant 1 : i32
    %40 = arith.cmpi eq, %arg0, %c1_i32_26 : i32
    %41 = arith.extui %40 : i1 to i32
    %c0_i32_27 = arith.constant 0 : i32
    %42 = arith.cmpi ne, %41, %c0_i32_27 : i32
    scf.if %42 {
      %c0_28 = arith.constant 0 : index
      %c0_29 = arith.constant 0 : index
      %43 = vector.load %arg8[%c0_28, %c0_29] : memref<24x1xf32, #tpu.memory_space<vmem>>, vector<24x1xf32>
      %c0_30 = arith.constant 0 : index
      %c0_31 = arith.constant 0 : index
      %44 = vector.load %arg9[%c0_30, %c0_31] : memref<24x1xf32, #tpu.memory_space<vmem>>, vector<24x1xf32>
      %45 = vector.broadcast %43 : vector<24x1xf32> to vector<24x256xf32>
      %46 = arith.subf %26, %45 : vector<24x256xf32>
      %47 = vector.broadcast %44 : vector<24x1xf32> to vector<24x256xf32>
      %48 = arith.mulf %46, %47 : vector<24x256xf32>
      %49 = vector.extract_strided_slice %1 {offsets = [0, 19], sizes = [4, 256], strides = [1, 1]} : vector<4x294xf32> to vector<4x256xf32>
      %50 = vector.extract_strided_slice %1 {offsets = [0, 0], sizes = [4, 256], strides = [1, 1]} : vector<4x294xf32> to vector<4x256xf32>
      %51 = arith.addf %49, %50 : vector<4x256xf32>
      %52 = vector.extract_strided_slice %1 {offsets = [0, 1], sizes = [4, 256], strides = [1, 1]} : vector<4x294xf32> to vector<4x256xf32>
      %53 = arith.addf %51, %52 : vector<4x256xf32>
      %54 = vector.extract_strided_slice %1 {offsets = [0, 2], sizes = [4, 256], strides = [1, 1]} : vector<4x294xf32> to vector<4x256xf32>
      %55 = arith.addf %53, %54 : vector<4x256xf32>
      %56 = vector.extract_strided_slice %1 {offsets = [0, 18], sizes = [4, 256], strides = [1, 1]} : vector<4x294xf32> to vector<4x256xf32>
      %57 = arith.addf %55, %56 : vector<4x256xf32>
      %58 = vector.extract_strided_slice %1 {offsets = [0, 20], sizes = [4, 256], strides = [1, 1]} : vector<4x294xf32> to vector<4x256xf32>
      %59 = arith.addf %57, %58 : vector<4x256xf32>
      %60 = vector.extract_strided_slice %1 {offsets = [0, 36], sizes = [4, 256], strides = [1, 1]} : vector<4x294xf32> to vector<4x256xf32>
      %61 = arith.addf %59, %60 : vector<4x256xf32>
      %62 = vector.extract_strided_slice %1 {offsets = [0, 37], sizes = [4, 256], strides = [1, 1]} : vector<4x294xf32> to vector<4x256xf32>
      %63 = arith.addf %61, %62 : vector<4x256xf32>
      %64 = vector.extract_strided_slice %1 {offsets = [0, 38], sizes = [4, 256], strides = [1, 1]} : vector<4x294xf32> to vector<4x256xf32>
      %65 = arith.addf %63, %64 : vector<4x256xf32>
      %66 = vector.broadcast %3 : vector<1x256xf32> to vector<4x256xf32>
      %67 = arith.mulf %65, %66 : vector<4x256xf32>
      %c0_32 = arith.constant 0 : index
      %c1 = arith.constant 1 : index
      %68 = memref.load %arg2[%c0_32, %c1] : memref<3x5xf32, #tpu.memory_space<smem>>
      %c0_33 = arith.constant 0 : index
      %c2 = arith.constant 2 : index
      %69 = memref.load %arg2[%c0_33, %c2] : memref<3x5xf32, #tpu.memory_space<smem>>
      %c0_34 = arith.constant 0 : index
      %c3 = arith.constant 3 : index
      %70 = memref.load %arg2[%c0_34, %c3] : memref<3x5xf32, #tpu.memory_space<smem>>
      %c0_35 = arith.constant 0 : index
      %c4_36 = arith.constant 4 : index
      %71 = memref.load %arg2[%c0_35, %c4_36] : memref<3x5xf32, #tpu.memory_space<smem>>
      %72 = vector.extract_strided_slice %48 {offsets = [0, 0], sizes = [4, 256], strides = [1, 1]} : vector<24x256xf32> to vector<4x256xf32>
      %73 = vector.extract_strided_slice %48 {offsets = [4, 0], sizes = [4, 256], strides = [1, 1]} : vector<24x256xf32> to vector<4x256xf32>
      %74 = vector.broadcast %68 : f32 to vector<4x256xf32>
      %75 = arith.mulf %74, %49 : vector<4x256xf32>
      %76 = vector.broadcast %69 : f32 to vector<4x256xf32>
      %77 = arith.mulf %76, %72 : vector<4x256xf32>
      %78 = arith.addf %75, %77 : vector<4x256xf32>
      %79 = vector.broadcast %70 : f32 to vector<4x256xf32>
      %80 = arith.mulf %79, %73 : vector<4x256xf32>
      %81 = arith.addf %78, %80 : vector<4x256xf32>
      %82 = vector.broadcast %71 : f32 to vector<4x256xf32>
      %83 = arith.mulf %82, %67 : vector<4x256xf32>
      %84 = arith.addf %81, %83 : vector<4x256xf32>
      %c0_37 = arith.constant 0 : index
      %c0_38 = arith.constant 0 : index
      %85 = vector.load %arg6[%c0_37, %c0_38] : memref<12x256xf32, #tpu.memory_space<vmem>>, vector<4x256xf32>
      tpu.vector_store %arg6[%c0_37, %c0_38], %84 {strides = array<i32>} : memref<12x256xf32, #tpu.memory_space<vmem>>, vector<4x256xf32>,
      %c1_39 = arith.constant 1 : index
      %c1_40 = arith.constant 1 : index
      %86 = memref.load %arg2[%c1_39, %c1_40] : memref<3x5xf32, #tpu.memory_space<smem>>
      %c1_41 = arith.constant 1 : index
      %c2_42 = arith.constant 2 : index
      %87 = memref.load %arg2[%c1_41, %c2_42] : memref<3x5xf32, #tpu.memory_space<smem>>
      %c1_43 = arith.constant 1 : index
      %c3_44 = arith.constant 3 : index
      %88 = memref.load %arg2[%c1_43, %c3_44] : memref<3x5xf32, #tpu.memory_space<smem>>
      %c1_45 = arith.constant 1 : index
      %c4_46 = arith.constant 4 : index
      %89 = memref.load %arg2[%c1_45, %c4_46] : memref<3x5xf32, #tpu.memory_space<smem>>
      %90 = vector.extract_strided_slice %48 {offsets = [8, 0], sizes = [4, 256], strides = [1, 1]} : vector<24x256xf32> to vector<4x256xf32>
      %91 = vector.extract_strided_slice %48 {offsets = [12, 0], sizes = [4, 256], strides = [1, 1]} : vector<24x256xf32> to vector<4x256xf32>
      %92 = vector.broadcast %86 : f32 to vector<4x256xf32>
      %93 = arith.mulf %92, %49 : vector<4x256xf32>
      %94 = vector.broadcast %87 : f32 to vector<4x256xf32>
      %95 = arith.mulf %94, %90 : vector<4x256xf32>
      %96 = arith.addf %93, %95 : vector<4x256xf32>
      %97 = vector.broadcast %88 : f32 to vector<4x256xf32>
      %98 = arith.mulf %97, %91 : vector<4x256xf32>
      %99 = arith.addf %96, %98 : vector<4x256xf32>
      %100 = vector.broadcast %89 : f32 to vector<4x256xf32>
      %101 = arith.mulf %100, %67 : vector<4x256xf32>
      %102 = arith.addf %99, %101 : vector<4x256xf32>
      %c4_47 = arith.constant 4 : index
      %c0_48 = arith.constant 0 : index
      %103 = vector.load %arg6[%c4_47, %c0_48] : memref<12x256xf32, #tpu.memory_space<vmem>>, vector<4x256xf32>
      tpu.vector_store %arg6[%c4_47, %c0_48], %102 {strides = array<i32>} : memref<12x256xf32, #tpu.memory_space<vmem>>, vector<4x256xf32>,
      %c2_49 = arith.constant 2 : index
      %c1_50 = arith.constant 1 : index
      %104 = memref.load %arg2[%c2_49, %c1_50] : memref<3x5xf32, #tpu.memory_space<smem>>
      %c2_51 = arith.constant 2 : index
      %c2_52 = arith.constant 2 : index
      %105 = memref.load %arg2[%c2_51, %c2_52] : memref<3x5xf32, #tpu.memory_space<smem>>
      %c2_53 = arith.constant 2 : index
      %c3_54 = arith.constant 3 : index
      %106 = memref.load %arg2[%c2_53, %c3_54] : memref<3x5xf32, #tpu.memory_space<smem>>
      %c2_55 = arith.constant 2 : index
      %c4_56 = arith.constant 4 : index
      %107 = memref.load %arg2[%c2_55, %c4_56] : memref<3x5xf32, #tpu.memory_space<smem>>
      %108 = vector.extract_strided_slice %48 {offsets = [16, 0], sizes = [4, 256], strides = [1, 1]} : vector<24x256xf32> to vector<4x256xf32>
      %109 = vector.extract_strided_slice %48 {offsets = [20, 0], sizes = [4, 256], strides = [1, 1]} : vector<24x256xf32> to vector<4x256xf32>
      %110 = vector.broadcast %104 : f32 to vector<4x256xf32>
      %111 = arith.mulf %110, %49 : vector<4x256xf32>
      %112 = vector.broadcast %105 : f32 to vector<4x256xf32>
      %113 = arith.mulf %112, %108 : vector<4x256xf32>
      %114 = arith.addf %111, %113 : vector<4x256xf32>
      %115 = vector.broadcast %106 : f32 to vector<4x256xf32>
      %116 = arith.mulf %115, %109 : vector<4x256xf32>
      %117 = arith.addf %114, %116 : vector<4x256xf32>
      %118 = vector.broadcast %107 : f32 to vector<4x256xf32>
      %119 = arith.mulf %118, %67 : vector<4x256xf32>
      %120 = arith.addf %117, %119 : vector<4x256xf32>
      %c8_57 = arith.constant 8 : index
      %c0_58 = arith.constant 0 : index
      %121 = vector.load %arg6[%c8_57, %c0_58] : memref<12x256xf32, #tpu.memory_space<vmem>>, vector<4x256xf32>
      tpu.vector_store %arg6[%c8_57, %c0_58], %120 {strides = array<i32>} : memref<12x256xf32, #tpu.memory_space<vmem>>, vector<4x256xf32>,
    } else {
    }
    return
  }
  func.func @transform_0(%arg0: i32, %arg1: i32) -> (i32, i32) {
    %c0_i32 = arith.constant 0 : i32
    %c0_i32_0 = arith.constant 0 : i32
    %c0_i32_1 = arith.constant 0 : i32
    return %c0_i32, %c0_i32_0 : i32, i32
  }
  func.func @transform_1(%arg0: i32, %arg1: i32) -> (i32, i32, i32) {
    %c0_i32 = arith.constant 0 : i32
    %c0_i32_0 = arith.constant 0 : i32
    %c0_i32_1 = arith.constant 0 : i32
    return %arg1, %c0_i32, %c0_i32_0 : i32, i32, i32
  }
  func.func @transform_2(%arg0: i32, %arg1: i32) -> (i32, i32, i32) {
    %c0_i32 = arith.constant 0 : i32
    %c0_i32_0 = arith.constant 0 : i32
    %c0_i32_1 = arith.constant 0 : i32
    return %arg1, %c0_i32, %c0_i32_0 : i32, i32, i32
  }
  func.func @transform_3(%arg0: i32, %arg1: i32) -> (i32, i32) {
    %c0_i32 = arith.constant 0 : i32
    %c0_i32_0 = arith.constant 0 : i32
    %c0_i32_1 = arith.constant 0 : i32
    return %c0_i32, %c0_i32_0 : i32, i32
  }
  func.func @transform_4(%arg0: i32, %arg1: i32) -> (i32, i32) {
    %0 = arith.muli %arg0, %arg1 : i32
    %c0_i32 = arith.constant 0 : i32
    %c0_i32_0 = arith.constant 0 : i32
    return %c0_i32, %0 : i32, i32
  }
}

module attributes {stable_mosaic.version = 11 : i64} {
  func.func @_node_edges_kernel(%arg0: i32, %arg1: i32, %arg2: memref<2x5xf32, #tpu.memory_space<smem>>, %arg3: memref<1x4x294xf32, #tpu.memory_space<vmem>>, %arg4: memref<1x1x256xf32, #tpu.memory_space<vmem>>, %arg5: memref<16x36xf32, #tpu.memory_space<vmem>>, %arg6: memref<8x256xf32, #tpu.memory_space<vmem>>, %arg7: memref<36x256xf32, #tpu.memory_space<vmem>>, %arg8: memref<16x1xf32, #tpu.memory_space<vmem>>, %arg9: memref<16x1xf32, #tpu.memory_space<vmem>>) attributes {dimension_semantics = [#tpu.dimension_semantics<arbitrary>, #tpu.dimension_semantics<arbitrary>], iteration_bounds = array<i64: 2, 3>, scalar_prefetch = 0 : i64, scratch_operands = 3 : i64, tpu.core_type = #tpu.core_type<tc>, window_params = [{transform_indices = @transform_0, window_bounds = array<i64: 2, 5>}, {transform_indices = @transform_1, window_bounds = array<i64: 1, 4, 294>}, {transform_indices = @transform_2, window_bounds = array<i64: 1, 1, 256>}, {pipeline_mode = #tpu.pipeline_mode<synchronous>, transform_indices = @transform_3, window_bounds = array<i64: 16, 36>}, {transform_indices = @transform_4, window_bounds = array<i64: 8, 256>}]} {
    %c0 = arith.constant 0 : index
    %c0_0 = arith.constant 0 : index
    %c0_1 = arith.constant 0 : index
    %0 = vector.load %arg3[%c0, %c0_0, %c0_1] : memref<1x4x294xf32, #tpu.memory_space<vmem>>, vector<1x4x294xf32>
    %1 = vector.shape_cast %0 : vector<1x4x294xf32> to vector<4x294xf32>
    %c0_2 = arith.constant 0 : index
    %c0_3 = arith.constant 0 : index
    %c0_4 = arith.constant 0 : index
    %2 = vector.load %arg4[%c0_2, %c0_3, %c0_4] : memref<1x1x256xf32, #tpu.memory_space<vmem>>, vector<1x1x256xf32>
    %3 = vector.shape_cast %2 : vector<1x1x256xf32> to vector<1x256xf32>
    %cst = arith.constant 0.000000e+00 : f32
    %4 = vector.broadcast %cst : f32 to vector<4x294xf32>
    %5 = arith.maximumf %1, %4 : vector<4x294xf32>
    %6 = vector.extract_strided_slice %5 {offsets = [0, 0], sizes = [4, 256], strides = [1, 1]} : vector<4x294xf32> to vector<4x256xf32>
    %c0_5 = arith.constant 0 : index
    %c0_6 = arith.constant 0 : index
    %7 = vector.load %arg7[%c0_5, %c0_6] : memref<36x256xf32, #tpu.memory_space<vmem>>, vector<4x256xf32>
    tpu.vector_store %arg7[%c0_5, %c0_6], %6 {strides = array<i32>} : memref<36x256xf32, #tpu.memory_space<vmem>>, vector<4x256xf32>,
    %8 = vector.extract_strided_slice %5 {offsets = [0, 1], sizes = [4, 256], strides = [1, 1]} : vector<4x294xf32> to vector<4x256xf32>
    %c4 = arith.constant 4 : index
    %c0_7 = arith.constant 0 : index
    %9 = vector.load %arg7[%c4, %c0_7] : memref<36x256xf32, #tpu.memory_space<vmem>>, vector<4x256xf32>
    tpu.vector_store %arg7[%c4, %c0_7], %8 {strides = array<i32>} : memref<36x256xf32, #tpu.memory_space<vmem>>, vector<4x256xf32>,
    %10 = vector.extract_strided_slice %5 {offsets = [0, 2], sizes = [4, 256], strides = [1, 1]} : vector<4x294xf32> to vector<4x256xf32>
    %c8 = arith.constant 8 : index
    %c0_8 = arith.constant 0 : index
    %11 = vector.load %arg7[%c8, %c0_8] : memref<36x256xf32, #tpu.memory_space<vmem>>, vector<4x256xf32>
    tpu.vector_store %arg7[%c8, %c0_8], %10 {strides = array<i32>} : memref<36x256xf32, #tpu.memory_space<vmem>>, vector<4x256xf32>,
    %12 = vector.extract_strided_slice %5 {offsets = [0, 18], sizes = [4, 256], strides = [1, 1]} : vector<4x294xf32> to vector<4x256xf32>
    %c12 = arith.constant 12 : index
    %c0_9 = arith.constant 0 : index
    %13 = vector.load %arg7[%c12, %c0_9] : memref<36x256xf32, #tpu.memory_space<vmem>>, vector<4x256xf32>
    tpu.vector_store %arg7[%c12, %c0_9], %12 {strides = array<i32>} : memref<36x256xf32, #tpu.memory_space<vmem>>, vector<4x256xf32>,
    %14 = vector.extract_strided_slice %5 {offsets = [0, 19], sizes = [4, 256], strides = [1, 1]} : vector<4x294xf32> to vector<4x256xf32>
    %c16 = arith.constant 16 : index
    %c0_10 = arith.constant 0 : index
    %15 = vector.load %arg7[%c16, %c0_10] : memref<36x256xf32, #tpu.memory_space<vmem>>, vector<4x256xf32>
    tpu.vector_store %arg7[%c16, %c0_10], %14 {strides = array<i32>} : memref<36x256xf32, #tpu.memory_space<vmem>>, vector<4x256xf32>,
    %16 = vector.extract_strided_slice %5 {offsets = [0, 20], sizes = [4, 256], strides = [1, 1]} : vector<4x294xf32> to vector<4x256xf32>
    %c20 = arith.constant 20 : index
    %c0_11 = arith.constant 0 : index
    %17 = vector.load %arg7[%c20, %c0_11] : memref<36x256xf32, #tpu.memory_space<vmem>>, vector<4x256xf32>
    tpu.vector_store %arg7[%c20, %c0_11], %16 {strides = array<i32>} : memref<36x256xf32, #tpu.memory_space<vmem>>, vector<4x256xf32>,
    %18 = vector.extract_strided_slice %5 {offsets = [0, 36], sizes = [4, 256], strides = [1, 1]} : vector<4x294xf32> to vector<4x256xf32>
    %c24 = arith.constant 24 : index
    %c0_12 = arith.constant 0 : index
    %19 = vector.load %arg7[%c24, %c0_12] : memref<36x256xf32, #tpu.memory_space<vmem>>, vector<4x256xf32>
    tpu.vector_store %arg7[%c24, %c0_12], %18 {strides = array<i32>} : memref<36x256xf32, #tpu.memory_space<vmem>>, vector<4x256xf32>,
    %20 = vector.extract_strided_slice %5 {offsets = [0, 37], sizes = [4, 256], strides = [1, 1]} : vector<4x294xf32> to vector<4x256xf32>
    %c28 = arith.constant 28 : index
    %c0_13 = arith.constant 0 : index
    %21 = vector.load %arg7[%c28, %c0_13] : memref<36x256xf32, #tpu.memory_space<vmem>>, vector<4x256xf32>
    tpu.vector_store %arg7[%c28, %c0_13], %20 {strides = array<i32>} : memref<36x256xf32, #tpu.memory_space<vmem>>, vector<4x256xf32>,
    %22 = vector.extract_strided_slice %5 {offsets = [0, 38], sizes = [4, 256], strides = [1, 1]} : vector<4x294xf32> to vector<4x256xf32>
    %c32 = arith.constant 32 : index
    %c0_14 = arith.constant 0 : index
    %23 = vector.load %arg7[%c32, %c0_14] : memref<36x256xf32, #tpu.memory_space<vmem>>, vector<4x256xf32>
    tpu.vector_store %arg7[%c32, %c0_14], %22 {strides = array<i32>} : memref<36x256xf32, #tpu.memory_space<vmem>>, vector<4x256xf32>,
    %c0_15 = arith.constant 0 : index
    %c0_16 = arith.constant 0 : index
    %24 = vector.load %arg5[%c0_15, %c0_16] : memref<16x36xf32, #tpu.memory_space<vmem>>, vector<16x36xf32>
    %c0_17 = arith.constant 0 : index
    %c0_18 = arith.constant 0 : index
    %25 = vector.load %arg7[%c0_17, %c0_18] : memref<36x256xf32, #tpu.memory_space<vmem>>, vector<36x256xf32>
    %cst_19 = arith.constant dense<0.000000e+00> : vector<16x256xf32>
    %26 = tpu.matmul %24, %25, %cst_19 {dimension_numbers = #tpu.dot_dimension_numbers<[1], [0], [0], [1], [0, 0, 1, 1], [], []>} : vector<16x36xf32>, vector<36x256xf32>, vector<16x256xf32> -> vector<16x256xf32>
    %c0_i32 = arith.constant 0 : i32
    %27 = arith.cmpi eq, %arg0, %c0_i32 : i32
    %c0_i32_20 = arith.constant 0 : i32
    %28 = arith.cmpi eq, %arg1, %c0_i32_20 : i32
    %29 = arith.andi %27, %28 : i1
    %30 = arith.extui %29 : i1 to i32
    %c0_i32_21 = arith.constant 0 : i32
    %31 = arith.cmpi ne, %30, %c0_i32_21 : i32
    scf.if %31 {
      %cst_28 = arith.constant 0.000000e+00 : f32
      %43 = vector.broadcast %cst_28 : f32 to vector<16x1xf32>
      %c0_29 = arith.constant 0 : index
      %c0_30 = arith.constant 0 : index
      %44 = vector.load %arg8[%c0_29, %c0_30] : memref<16x1xf32, #tpu.memory_space<vmem>>, vector<16x1xf32>
      tpu.vector_store %arg8[%c0_29, %c0_30], %43 {strides = array<i32>} : memref<16x1xf32, #tpu.memory_space<vmem>>, vector<16x1xf32>,
      %cst_31 = arith.constant 0.000000e+00 : f32
      %45 = vector.broadcast %cst_31 : f32 to vector<16x1xf32>
      %c0_32 = arith.constant 0 : index
      %c0_33 = arith.constant 0 : index
      %46 = vector.load %arg9[%c0_32, %c0_33] : memref<16x1xf32, #tpu.memory_space<vmem>>, vector<16x1xf32>
      tpu.vector_store %arg9[%c0_32, %c0_33], %45 {strides = array<i32>} : memref<16x1xf32, #tpu.memory_space<vmem>>, vector<16x1xf32>,
    } else {
    }
    %c0_i32_22 = arith.constant 0 : i32
    %32 = arith.cmpi eq, %arg0, %c0_i32_22 : i32
    %33 = arith.extui %32 : i1 to i32
    %c0_i32_23 = arith.constant 0 : i32
    %34 = arith.cmpi ne, %33, %c0_i32_23 : i32
    scf.if %34 {
      %cst_28 = arith.constant 0.000000e+00 : f32
      %43 = vector.broadcast %cst_28 : f32 to vector<1x256xf32>
      %44 = arith.cmpf ogt, %3, %43 : vector<1x256xf32>
      %45 = arith.extui %44 : vector<1x256xi1> to vector<1x256xi32>
      %46 = arith.sitofp %45 : vector<1x256xi32> to vector<1x256xf32>
      %47 = vector.broadcast %46 : vector<1x256xf32> to vector<16x256xf32>
      %48 = arith.mulf %26, %47 : vector<16x256xf32>
      %c0_29 = arith.constant 0 : index
      %c0_30 = arith.constant 0 : index
      %49 = vector.load %arg8[%c0_29, %c0_30] : memref<16x1xf32, #tpu.memory_space<vmem>>, vector<16x1xf32>
      %cst_31 = arith.constant dense<0.000000e+00> : vector<16xf32>
      %50 = vector.multi_reduction <add>, %48, %cst_31 [1] : vector<16x256xf32> to vector<16xf32>
      %51 = vector.shape_cast %50 : vector<16xf32> to vector<16x1xf32>
      %52 = arith.addf %49, %51 : vector<16x1xf32>
      %c0_32 = arith.constant 0 : index
      %c0_33 = arith.constant 0 : index
      %53 = vector.load %arg8[%c0_32, %c0_33] : memref<16x1xf32, #tpu.memory_space<vmem>>, vector<16x1xf32>
      tpu.vector_store %arg8[%c0_32, %c0_33], %52 {strides = array<i32>} : memref<16x1xf32, #tpu.memory_space<vmem>>, vector<16x1xf32>,
      %c0_34 = arith.constant 0 : index
      %c0_35 = arith.constant 0 : index
      %54 = vector.load %arg9[%c0_34, %c0_35] : memref<16x1xf32, #tpu.memory_space<vmem>>, vector<16x1xf32>
      %55 = arith.mulf %48, %26 : vector<16x256xf32>
      %cst_36 = arith.constant dense<0.000000e+00> : vector<16xf32>
      %56 = vector.multi_reduction <add>, %55, %cst_36 [1] : vector<16x256xf32> to vector<16xf32>
      %57 = vector.shape_cast %56 : vector<16xf32> to vector<16x1xf32>
      %58 = arith.addf %54, %57 : vector<16x1xf32>
      %c0_37 = arith.constant 0 : index
      %c0_38 = arith.constant 0 : index
      %59 = vector.load %arg9[%c0_37, %c0_38] : memref<16x1xf32, #tpu.memory_space<vmem>>, vector<16x1xf32>
      tpu.vector_store %arg9[%c0_37, %c0_38], %58 {strides = array<i32>} : memref<16x1xf32, #tpu.memory_space<vmem>>, vector<16x1xf32>,
    } else {
    }
    %c1_i32 = arith.constant 1 : i32
    %35 = arith.cmpi eq, %arg0, %c1_i32 : i32
    %c0_i32_24 = arith.constant 0 : i32
    %36 = arith.cmpi eq, %arg1, %c0_i32_24 : i32
    %37 = arith.andi %35, %36 : i1
    %38 = arith.extui %37 : i1 to i32
    %c0_i32_25 = arith.constant 0 : i32
    %39 = arith.cmpi ne, %38, %c0_i32_25 : i32
    scf.if %39 {
      %c0_28 = arith.constant 0 : index
      %c0_29 = arith.constant 0 : index
      %43 = vector.load %arg8[%c0_28, %c0_29] : memref<16x1xf32, #tpu.memory_space<vmem>>, vector<16x1xf32>
      %cst_30 = arith.constant 0.001953125 : f32
      %44 = vector.broadcast %cst_30 : f32 to vector<16x1xf32>
      %45 = arith.mulf %43, %44 : vector<16x1xf32>
      %c0_31 = arith.constant 0 : index
      %c0_32 = arith.constant 0 : index
      %46 = vector.load %arg9[%c0_31, %c0_32] : memref<16x1xf32, #tpu.memory_space<vmem>>, vector<16x1xf32>
      %cst_33 = arith.constant 0.001953125 : f32
      %47 = vector.broadcast %cst_33 : f32 to vector<16x1xf32>
      %48 = arith.mulf %46, %47 : vector<16x1xf32>
      %49 = arith.mulf %45, %45 : vector<16x1xf32>
      %50 = arith.subf %48, %49 : vector<16x1xf32>
      %cst_34 = arith.constant 0.000000e+00 : f32
      %51 = vector.broadcast %cst_34 : f32 to vector<16x1xf32>
      %52 = arith.maximumf %50, %51 : vector<16x1xf32>
      %c0_35 = arith.constant 0 : index
      %c0_36 = arith.constant 0 : index
      %53 = vector.load %arg8[%c0_35, %c0_36] : memref<16x1xf32, #tpu.memory_space<vmem>>, vector<16x1xf32>
      tpu.vector_store %arg8[%c0_35, %c0_36], %45 {strides = array<i32>} : memref<16x1xf32, #tpu.memory_space<vmem>>, vector<16x1xf32>,
      %cst_37 = arith.constant 9.99999974E-6 : f32
      %54 = vector.broadcast %cst_37 : f32 to vector<16x1xf32>
      %55 = arith.addf %52, %54 : vector<16x1xf32>
      %56 = math.rsqrt %55 : vector<16x1xf32>
      %c0_38 = arith.constant 0 : index
      %c0_39 = arith.constant 0 : index
      %57 = vector.load %arg9[%c0_38, %c0_39] : memref<16x1xf32, #tpu.memory_space<vmem>>, vector<16x1xf32>
      tpu.vector_store %arg9[%c0_38, %c0_39], %56 {strides = array<i32>} : memref<16x1xf32, #tpu.memory_space<vmem>>, vector<16x1xf32>,
    } else {
    }
    %c1_i32_26 = arith.constant 1 : i32
    %40 = arith.cmpi eq, %arg0, %c1_i32_26 : i32
    %41 = arith.extui %40 : i1 to i32
    %c0_i32_27 = arith.constant 0 : i32
    %42 = arith.cmpi ne, %41, %c0_i32_27 : i32
    scf.if %42 {
      %c0_28 = arith.constant 0 : index
      %c0_29 = arith.constant 0 : index
      %43 = vector.load %arg8[%c0_28, %c0_29] : memref<16x1xf32, #tpu.memory_space<vmem>>, vector<16x1xf32>
      %c0_30 = arith.constant 0 : index
      %c0_31 = arith.constant 0 : index
      %44 = vector.load %arg9[%c0_30, %c0_31] : memref<16x1xf32, #tpu.memory_space<vmem>>, vector<16x1xf32>
      %45 = vector.broadcast %43 : vector<16x1xf32> to vector<16x256xf32>
      %46 = arith.subf %26, %45 : vector<16x256xf32>
      %47 = vector.broadcast %44 : vector<16x1xf32> to vector<16x256xf32>
      %48 = arith.mulf %46, %47 : vector<16x256xf32>
      %49 = vector.extract_strided_slice %1 {offsets = [0, 19], sizes = [4, 256], strides = [1, 1]} : vector<4x294xf32> to vector<4x256xf32>
      %50 = vector.extract_strided_slice %1 {offsets = [0, 0], sizes = [4, 256], strides = [1, 1]} : vector<4x294xf32> to vector<4x256xf32>
      %51 = arith.addf %49, %50 : vector<4x256xf32>
      %52 = vector.extract_strided_slice %1 {offsets = [0, 1], sizes = [4, 256], strides = [1, 1]} : vector<4x294xf32> to vector<4x256xf32>
      %53 = arith.addf %51, %52 : vector<4x256xf32>
      %54 = vector.extract_strided_slice %1 {offsets = [0, 2], sizes = [4, 256], strides = [1, 1]} : vector<4x294xf32> to vector<4x256xf32>
      %55 = arith.addf %53, %54 : vector<4x256xf32>
      %56 = vector.extract_strided_slice %1 {offsets = [0, 18], sizes = [4, 256], strides = [1, 1]} : vector<4x294xf32> to vector<4x256xf32>
      %57 = arith.addf %55, %56 : vector<4x256xf32>
      %58 = vector.extract_strided_slice %1 {offsets = [0, 20], sizes = [4, 256], strides = [1, 1]} : vector<4x294xf32> to vector<4x256xf32>
      %59 = arith.addf %57, %58 : vector<4x256xf32>
      %60 = vector.extract_strided_slice %1 {offsets = [0, 36], sizes = [4, 256], strides = [1, 1]} : vector<4x294xf32> to vector<4x256xf32>
      %61 = arith.addf %59, %60 : vector<4x256xf32>
      %62 = vector.extract_strided_slice %1 {offsets = [0, 37], sizes = [4, 256], strides = [1, 1]} : vector<4x294xf32> to vector<4x256xf32>
      %63 = arith.addf %61, %62 : vector<4x256xf32>
      %64 = vector.extract_strided_slice %1 {offsets = [0, 38], sizes = [4, 256], strides = [1, 1]} : vector<4x294xf32> to vector<4x256xf32>
      %65 = arith.addf %63, %64 : vector<4x256xf32>
      %66 = vector.broadcast %3 : vector<1x256xf32> to vector<4x256xf32>
      %67 = arith.mulf %65, %66 : vector<4x256xf32>
      %c0_32 = arith.constant 0 : index
      %c1 = arith.constant 1 : index
      %68 = memref.load %arg2[%c0_32, %c1] : memref<2x5xf32, #tpu.memory_space<smem>>
      %c0_33 = arith.constant 0 : index
      %c2 = arith.constant 2 : index
      %69 = memref.load %arg2[%c0_33, %c2] : memref<2x5xf32, #tpu.memory_space<smem>>
      %c0_34 = arith.constant 0 : index
      %c3 = arith.constant 3 : index
      %70 = memref.load %arg2[%c0_34, %c3] : memref<2x5xf32, #tpu.memory_space<smem>>
      %c0_35 = arith.constant 0 : index
      %c4_36 = arith.constant 4 : index
      %71 = memref.load %arg2[%c0_35, %c4_36] : memref<2x5xf32, #tpu.memory_space<smem>>
      %72 = vector.extract_strided_slice %48 {offsets = [0, 0], sizes = [4, 256], strides = [1, 1]} : vector<16x256xf32> to vector<4x256xf32>
      %73 = vector.extract_strided_slice %48 {offsets = [4, 0], sizes = [4, 256], strides = [1, 1]} : vector<16x256xf32> to vector<4x256xf32>
      %74 = vector.broadcast %68 : f32 to vector<4x256xf32>
      %75 = arith.mulf %74, %49 : vector<4x256xf32>
      %76 = vector.broadcast %69 : f32 to vector<4x256xf32>
      %77 = arith.mulf %76, %72 : vector<4x256xf32>
      %78 = arith.addf %75, %77 : vector<4x256xf32>
      %79 = vector.broadcast %70 : f32 to vector<4x256xf32>
      %80 = arith.mulf %79, %73 : vector<4x256xf32>
      %81 = arith.addf %78, %80 : vector<4x256xf32>
      %82 = vector.broadcast %71 : f32 to vector<4x256xf32>
      %83 = arith.mulf %82, %67 : vector<4x256xf32>
      %84 = arith.addf %81, %83 : vector<4x256xf32>
      %c0_37 = arith.constant 0 : index
      %c0_38 = arith.constant 0 : index
      %85 = vector.load %arg6[%c0_37, %c0_38] : memref<8x256xf32, #tpu.memory_space<vmem>>, vector<4x256xf32>
      tpu.vector_store %arg6[%c0_37, %c0_38], %84 {strides = array<i32>} : memref<8x256xf32, #tpu.memory_space<vmem>>, vector<4x256xf32>,
      %c1_39 = arith.constant 1 : index
      %c1_40 = arith.constant 1 : index
      %86 = memref.load %arg2[%c1_39, %c1_40] : memref<2x5xf32, #tpu.memory_space<smem>>
      %c1_41 = arith.constant 1 : index
      %c2_42 = arith.constant 2 : index
      %87 = memref.load %arg2[%c1_41, %c2_42] : memref<2x5xf32, #tpu.memory_space<smem>>
      %c1_43 = arith.constant 1 : index
      %c3_44 = arith.constant 3 : index
      %88 = memref.load %arg2[%c1_43, %c3_44] : memref<2x5xf32, #tpu.memory_space<smem>>
      %c1_45 = arith.constant 1 : index
      %c4_46 = arith.constant 4 : index
      %89 = memref.load %arg2[%c1_45, %c4_46] : memref<2x5xf32, #tpu.memory_space<smem>>
      %90 = vector.extract_strided_slice %48 {offsets = [8, 0], sizes = [4, 256], strides = [1, 1]} : vector<16x256xf32> to vector<4x256xf32>
      %91 = vector.extract_strided_slice %48 {offsets = [12, 0], sizes = [4, 256], strides = [1, 1]} : vector<16x256xf32> to vector<4x256xf32>
      %92 = vector.broadcast %86 : f32 to vector<4x256xf32>
      %93 = arith.mulf %92, %49 : vector<4x256xf32>
      %94 = vector.broadcast %87 : f32 to vector<4x256xf32>
      %95 = arith.mulf %94, %90 : vector<4x256xf32>
      %96 = arith.addf %93, %95 : vector<4x256xf32>
      %97 = vector.broadcast %88 : f32 to vector<4x256xf32>
      %98 = arith.mulf %97, %91 : vector<4x256xf32>
      %99 = arith.addf %96, %98 : vector<4x256xf32>
      %100 = vector.broadcast %89 : f32 to vector<4x256xf32>
      %101 = arith.mulf %100, %67 : vector<4x256xf32>
      %102 = arith.addf %99, %101 : vector<4x256xf32>
      %c4_47 = arith.constant 4 : index
      %c0_48 = arith.constant 0 : index
      %103 = vector.load %arg6[%c4_47, %c0_48] : memref<8x256xf32, #tpu.memory_space<vmem>>, vector<4x256xf32>
      tpu.vector_store %arg6[%c4_47, %c0_48], %102 {strides = array<i32>} : memref<8x256xf32, #tpu.memory_space<vmem>>, vector<4x256xf32>,
    } else {
    }
    return
  }
  func.func @transform_0(%arg0: i32, %arg1: i32) -> (i32, i32) {
    %c0_i32 = arith.constant 0 : i32
    %c0_i32_0 = arith.constant 0 : i32
    %c0_i32_1 = arith.constant 0 : i32
    return %c0_i32, %c0_i32_0 : i32, i32
  }
  func.func @transform_1(%arg0: i32, %arg1: i32) -> (i32, i32, i32) {
    %c0_i32 = arith.constant 0 : i32
    %c0_i32_0 = arith.constant 0 : i32
    %c0_i32_1 = arith.constant 0 : i32
    return %arg1, %c0_i32, %c0_i32_0 : i32, i32, i32
  }
  func.func @transform_2(%arg0: i32, %arg1: i32) -> (i32, i32, i32) {
    %c0_i32 = arith.constant 0 : i32
    %c0_i32_0 = arith.constant 0 : i32
    %c0_i32_1 = arith.constant 0 : i32
    return %arg1, %c0_i32, %c0_i32_0 : i32, i32, i32
  }
  func.func @transform_3(%arg0: i32, %arg1: i32) -> (i32, i32) {
    %c0_i32 = arith.constant 0 : i32
    %c0_i32_0 = arith.constant 0 : i32
    %c0_i32_1 = arith.constant 0 : i32
    return %c0_i32, %c0_i32_0 : i32, i32
  }
  func.func @transform_4(%arg0: i32, %arg1: i32) -> (i32, i32) {
    %0 = arith.muli %arg0, %arg1 : i32
    %c0_i32 = arith.constant 0 : i32
    %c0_i32_0 = arith.constant 0 : i32
    return %c0_i32, %0 : i32, i32
  }
}

module attributes {stable_mosaic.version = 11 : i64} {
  func.func @_node_edges_kernel(%arg0: i32, %arg1: i32, %arg2: memref<1x5xf32, #tpu.memory_space<smem>>, %arg3: memref<1x4x294xf32, #tpu.memory_space<vmem>>, %arg4: memref<1x1x256xf32, #tpu.memory_space<vmem>>, %arg5: memref<8x36xf32, #tpu.memory_space<vmem>>, %arg6: memref<4x256xf32, #tpu.memory_space<vmem>>, %arg7: memref<36x256xf32, #tpu.memory_space<vmem>>, %arg8: memref<8x1xf32, #tpu.memory_space<vmem>>, %arg9: memref<8x1xf32, #tpu.memory_space<vmem>>) attributes {dimension_semantics = [#tpu.dimension_semantics<arbitrary>, #tpu.dimension_semantics<arbitrary>], iteration_bounds = array<i64: 2, 3>, scalar_prefetch = 0 : i64, scratch_operands = 3 : i64, tpu.core_type = #tpu.core_type<tc>, window_params = [{transform_indices = @transform_0, window_bounds = array<i64: 1, 5>}, {transform_indices = @transform_1, window_bounds = array<i64: 1, 4, 294>}, {transform_indices = @transform_2, window_bounds = array<i64: 1, 1, 256>}, {pipeline_mode = #tpu.pipeline_mode<synchronous>, transform_indices = @transform_3, window_bounds = array<i64: 8, 36>}, {transform_indices = @transform_4, window_bounds = array<i64: 4, 256>}]} {
    %c0 = arith.constant 0 : index
    %c0_0 = arith.constant 0 : index
    %c0_1 = arith.constant 0 : index
    %0 = vector.load %arg3[%c0, %c0_0, %c0_1] : memref<1x4x294xf32, #tpu.memory_space<vmem>>, vector<1x4x294xf32>
    %1 = vector.shape_cast %0 : vector<1x4x294xf32> to vector<4x294xf32>
    %c0_2 = arith.constant 0 : index
    %c0_3 = arith.constant 0 : index
    %c0_4 = arith.constant 0 : index
    %2 = vector.load %arg4[%c0_2, %c0_3, %c0_4] : memref<1x1x256xf32, #tpu.memory_space<vmem>>, vector<1x1x256xf32>
    %3 = vector.shape_cast %2 : vector<1x1x256xf32> to vector<1x256xf32>
    %cst = arith.constant 0.000000e+00 : f32
    %4 = vector.broadcast %cst : f32 to vector<4x294xf32>
    %5 = arith.maximumf %1, %4 : vector<4x294xf32>
    %6 = vector.extract_strided_slice %5 {offsets = [0, 0], sizes = [4, 256], strides = [1, 1]} : vector<4x294xf32> to vector<4x256xf32>
    %c0_5 = arith.constant 0 : index
    %c0_6 = arith.constant 0 : index
    %7 = vector.load %arg7[%c0_5, %c0_6] : memref<36x256xf32, #tpu.memory_space<vmem>>, vector<4x256xf32>
    tpu.vector_store %arg7[%c0_5, %c0_6], %6 {strides = array<i32>} : memref<36x256xf32, #tpu.memory_space<vmem>>, vector<4x256xf32>,
    %8 = vector.extract_strided_slice %5 {offsets = [0, 1], sizes = [4, 256], strides = [1, 1]} : vector<4x294xf32> to vector<4x256xf32>
    %c4 = arith.constant 4 : index
    %c0_7 = arith.constant 0 : index
    %9 = vector.load %arg7[%c4, %c0_7] : memref<36x256xf32, #tpu.memory_space<vmem>>, vector<4x256xf32>
    tpu.vector_store %arg7[%c4, %c0_7], %8 {strides = array<i32>} : memref<36x256xf32, #tpu.memory_space<vmem>>, vector<4x256xf32>,
    %10 = vector.extract_strided_slice %5 {offsets = [0, 2], sizes = [4, 256], strides = [1, 1]} : vector<4x294xf32> to vector<4x256xf32>
    %c8 = arith.constant 8 : index
    %c0_8 = arith.constant 0 : index
    %11 = vector.load %arg7[%c8, %c0_8] : memref<36x256xf32, #tpu.memory_space<vmem>>, vector<4x256xf32>
    tpu.vector_store %arg7[%c8, %c0_8], %10 {strides = array<i32>} : memref<36x256xf32, #tpu.memory_space<vmem>>, vector<4x256xf32>,
    %12 = vector.extract_strided_slice %5 {offsets = [0, 18], sizes = [4, 256], strides = [1, 1]} : vector<4x294xf32> to vector<4x256xf32>
    %c12 = arith.constant 12 : index
    %c0_9 = arith.constant 0 : index
    %13 = vector.load %arg7[%c12, %c0_9] : memref<36x256xf32, #tpu.memory_space<vmem>>, vector<4x256xf32>
    tpu.vector_store %arg7[%c12, %c0_9], %12 {strides = array<i32>} : memref<36x256xf32, #tpu.memory_space<vmem>>, vector<4x256xf32>,
    %14 = vector.extract_strided_slice %5 {offsets = [0, 19], sizes = [4, 256], strides = [1, 1]} : vector<4x294xf32> to vector<4x256xf32>
    %c16 = arith.constant 16 : index
    %c0_10 = arith.constant 0 : index
    %15 = vector.load %arg7[%c16, %c0_10] : memref<36x256xf32, #tpu.memory_space<vmem>>, vector<4x256xf32>
    tpu.vector_store %arg7[%c16, %c0_10], %14 {strides = array<i32>} : memref<36x256xf32, #tpu.memory_space<vmem>>, vector<4x256xf32>,
    %16 = vector.extract_strided_slice %5 {offsets = [0, 20], sizes = [4, 256], strides = [1, 1]} : vector<4x294xf32> to vector<4x256xf32>
    %c20 = arith.constant 20 : index
    %c0_11 = arith.constant 0 : index
    %17 = vector.load %arg7[%c20, %c0_11] : memref<36x256xf32, #tpu.memory_space<vmem>>, vector<4x256xf32>
    tpu.vector_store %arg7[%c20, %c0_11], %16 {strides = array<i32>} : memref<36x256xf32, #tpu.memory_space<vmem>>, vector<4x256xf32>,
    %18 = vector.extract_strided_slice %5 {offsets = [0, 36], sizes = [4, 256], strides = [1, 1]} : vector<4x294xf32> to vector<4x256xf32>
    %c24 = arith.constant 24 : index
    %c0_12 = arith.constant 0 : index
    %19 = vector.load %arg7[%c24, %c0_12] : memref<36x256xf32, #tpu.memory_space<vmem>>, vector<4x256xf32>
    tpu.vector_store %arg7[%c24, %c0_12], %18 {strides = array<i32>} : memref<36x256xf32, #tpu.memory_space<vmem>>, vector<4x256xf32>,
    %20 = vector.extract_strided_slice %5 {offsets = [0, 37], sizes = [4, 256], strides = [1, 1]} : vector<4x294xf32> to vector<4x256xf32>
    %c28 = arith.constant 28 : index
    %c0_13 = arith.constant 0 : index
    %21 = vector.load %arg7[%c28, %c0_13] : memref<36x256xf32, #tpu.memory_space<vmem>>, vector<4x256xf32>
    tpu.vector_store %arg7[%c28, %c0_13], %20 {strides = array<i32>} : memref<36x256xf32, #tpu.memory_space<vmem>>, vector<4x256xf32>,
    %22 = vector.extract_strided_slice %5 {offsets = [0, 38], sizes = [4, 256], strides = [1, 1]} : vector<4x294xf32> to vector<4x256xf32>
    %c32 = arith.constant 32 : index
    %c0_14 = arith.constant 0 : index
    %23 = vector.load %arg7[%c32, %c0_14] : memref<36x256xf32, #tpu.memory_space<vmem>>, vector<4x256xf32>
    tpu.vector_store %arg7[%c32, %c0_14], %22 {strides = array<i32>} : memref<36x256xf32, #tpu.memory_space<vmem>>, vector<4x256xf32>,
    %c0_15 = arith.constant 0 : index
    %c0_16 = arith.constant 0 : index
    %24 = vector.load %arg5[%c0_15, %c0_16] : memref<8x36xf32, #tpu.memory_space<vmem>>, vector<8x36xf32>
    %c0_17 = arith.constant 0 : index
    %c0_18 = arith.constant 0 : index
    %25 = vector.load %arg7[%c0_17, %c0_18] : memref<36x256xf32, #tpu.memory_space<vmem>>, vector<36x256xf32>
    %cst_19 = arith.constant dense<0.000000e+00> : vector<8x256xf32>
    %26 = tpu.matmul %24, %25, %cst_19 {dimension_numbers = #tpu.dot_dimension_numbers<[1], [0], [0], [1], [0, 0, 1, 1], [], []>} : vector<8x36xf32>, vector<36x256xf32>, vector<8x256xf32> -> vector<8x256xf32>
    %c0_i32 = arith.constant 0 : i32
    %27 = arith.cmpi eq, %arg0, %c0_i32 : i32
    %c0_i32_20 = arith.constant 0 : i32
    %28 = arith.cmpi eq, %arg1, %c0_i32_20 : i32
    %29 = arith.andi %27, %28 : i1
    %30 = arith.extui %29 : i1 to i32
    %c0_i32_21 = arith.constant 0 : i32
    %31 = arith.cmpi ne, %30, %c0_i32_21 : i32
    scf.if %31 {
      %cst_28 = arith.constant 0.000000e+00 : f32
      %43 = vector.broadcast %cst_28 : f32 to vector<8x1xf32>
      %c0_29 = arith.constant 0 : index
      %c0_30 = arith.constant 0 : index
      %44 = vector.load %arg8[%c0_29, %c0_30] : memref<8x1xf32, #tpu.memory_space<vmem>>, vector<8x1xf32>
      tpu.vector_store %arg8[%c0_29, %c0_30], %43 {strides = array<i32>} : memref<8x1xf32, #tpu.memory_space<vmem>>, vector<8x1xf32>,
      %cst_31 = arith.constant 0.000000e+00 : f32
      %45 = vector.broadcast %cst_31 : f32 to vector<8x1xf32>
      %c0_32 = arith.constant 0 : index
      %c0_33 = arith.constant 0 : index
      %46 = vector.load %arg9[%c0_32, %c0_33] : memref<8x1xf32, #tpu.memory_space<vmem>>, vector<8x1xf32>
      tpu.vector_store %arg9[%c0_32, %c0_33], %45 {strides = array<i32>} : memref<8x1xf32, #tpu.memory_space<vmem>>, vector<8x1xf32>,
    } else {
    }
    %c0_i32_22 = arith.constant 0 : i32
    %32 = arith.cmpi eq, %arg0, %c0_i32_22 : i32
    %33 = arith.extui %32 : i1 to i32
    %c0_i32_23 = arith.constant 0 : i32
    %34 = arith.cmpi ne, %33, %c0_i32_23 : i32
    scf.if %34 {
      %cst_28 = arith.constant 0.000000e+00 : f32
      %43 = vector.broadcast %cst_28 : f32 to vector<1x256xf32>
      %44 = arith.cmpf ogt, %3, %43 : vector<1x256xf32>
      %45 = arith.extui %44 : vector<1x256xi1> to vector<1x256xi32>
      %46 = arith.sitofp %45 : vector<1x256xi32> to vector<1x256xf32>
      %47 = vector.broadcast %46 : vector<1x256xf32> to vector<8x256xf32>
      %48 = arith.mulf %26, %47 : vector<8x256xf32>
      %c0_29 = arith.constant 0 : index
      %c0_30 = arith.constant 0 : index
      %49 = vector.load %arg8[%c0_29, %c0_30] : memref<8x1xf32, #tpu.memory_space<vmem>>, vector<8x1xf32>
      %cst_31 = arith.constant dense<0.000000e+00> : vector<8xf32>
      %50 = vector.multi_reduction <add>, %48, %cst_31 [1] : vector<8x256xf32> to vector<8xf32>
      %51 = vector.shape_cast %50 : vector<8xf32> to vector<8x1xf32>
      %52 = arith.addf %49, %51 : vector<8x1xf32>
      %c0_32 = arith.constant 0 : index
      %c0_33 = arith.constant 0 : index
      %53 = vector.load %arg8[%c0_32, %c0_33] : memref<8x1xf32, #tpu.memory_space<vmem>>, vector<8x1xf32>
      tpu.vector_store %arg8[%c0_32, %c0_33], %52 {strides = array<i32>} : memref<8x1xf32, #tpu.memory_space<vmem>>, vector<8x1xf32>,
      %c0_34 = arith.constant 0 : index
      %c0_35 = arith.constant 0 : index
      %54 = vector.load %arg9[%c0_34, %c0_35] : memref<8x1xf32, #tpu.memory_space<vmem>>, vector<8x1xf32>
      %55 = arith.mulf %48, %26 : vector<8x256xf32>
      %cst_36 = arith.constant dense<0.000000e+00> : vector<8xf32>
      %56 = vector.multi_reduction <add>, %55, %cst_36 [1] : vector<8x256xf32> to vector<8xf32>
      %57 = vector.shape_cast %56 : vector<8xf32> to vector<8x1xf32>
      %58 = arith.addf %54, %57 : vector<8x1xf32>
      %c0_37 = arith.constant 0 : index
      %c0_38 = arith.constant 0 : index
      %59 = vector.load %arg9[%c0_37, %c0_38] : memref<8x1xf32, #tpu.memory_space<vmem>>, vector<8x1xf32>
      tpu.vector_store %arg9[%c0_37, %c0_38], %58 {strides = array<i32>} : memref<8x1xf32, #tpu.memory_space<vmem>>, vector<8x1xf32>,
    } else {
    }
    %c1_i32 = arith.constant 1 : i32
    %35 = arith.cmpi eq, %arg0, %c1_i32 : i32
    %c0_i32_24 = arith.constant 0 : i32
    %36 = arith.cmpi eq, %arg1, %c0_i32_24 : i32
    %37 = arith.andi %35, %36 : i1
    %38 = arith.extui %37 : i1 to i32
    %c0_i32_25 = arith.constant 0 : i32
    %39 = arith.cmpi ne, %38, %c0_i32_25 : i32
    scf.if %39 {
      %c0_28 = arith.constant 0 : index
      %c0_29 = arith.constant 0 : index
      %43 = vector.load %arg8[%c0_28, %c0_29] : memref<8x1xf32, #tpu.memory_space<vmem>>, vector<8x1xf32>
      %cst_30 = arith.constant 0.001953125 : f32
      %44 = vector.broadcast %cst_30 : f32 to vector<8x1xf32>
      %45 = arith.mulf %43, %44 : vector<8x1xf32>
      %c0_31 = arith.constant 0 : index
      %c0_32 = arith.constant 0 : index
      %46 = vector.load %arg9[%c0_31, %c0_32] : memref<8x1xf32, #tpu.memory_space<vmem>>, vector<8x1xf32>
      %cst_33 = arith.constant 0.001953125 : f32
      %47 = vector.broadcast %cst_33 : f32 to vector<8x1xf32>
      %48 = arith.mulf %46, %47 : vector<8x1xf32>
      %49 = arith.mulf %45, %45 : vector<8x1xf32>
      %50 = arith.subf %48, %49 : vector<8x1xf32>
      %cst_34 = arith.constant 0.000000e+00 : f32
      %51 = vector.broadcast %cst_34 : f32 to vector<8x1xf32>
      %52 = arith.maximumf %50, %51 : vector<8x1xf32>
      %c0_35 = arith.constant 0 : index
      %c0_36 = arith.constant 0 : index
      %53 = vector.load %arg8[%c0_35, %c0_36] : memref<8x1xf32, #tpu.memory_space<vmem>>, vector<8x1xf32>
      tpu.vector_store %arg8[%c0_35, %c0_36], %45 {strides = array<i32>} : memref<8x1xf32, #tpu.memory_space<vmem>>, vector<8x1xf32>,
      %cst_37 = arith.constant 9.99999974E-6 : f32
      %54 = vector.broadcast %cst_37 : f32 to vector<8x1xf32>
      %55 = arith.addf %52, %54 : vector<8x1xf32>
      %56 = math.rsqrt %55 : vector<8x1xf32>
      %c0_38 = arith.constant 0 : index
      %c0_39 = arith.constant 0 : index
      %57 = vector.load %arg9[%c0_38, %c0_39] : memref<8x1xf32, #tpu.memory_space<vmem>>, vector<8x1xf32>
      tpu.vector_store %arg9[%c0_38, %c0_39], %56 {strides = array<i32>} : memref<8x1xf32, #tpu.memory_space<vmem>>, vector<8x1xf32>,
    } else {
    }
    %c1_i32_26 = arith.constant 1 : i32
    %40 = arith.cmpi eq, %arg0, %c1_i32_26 : i32
    %41 = arith.extui %40 : i1 to i32
    %c0_i32_27 = arith.constant 0 : i32
    %42 = arith.cmpi ne, %41, %c0_i32_27 : i32
    scf.if %42 {
      %c0_28 = arith.constant 0 : index
      %c0_29 = arith.constant 0 : index
      %43 = vector.load %arg8[%c0_28, %c0_29] : memref<8x1xf32, #tpu.memory_space<vmem>>, vector<8x1xf32>
      %c0_30 = arith.constant 0 : index
      %c0_31 = arith.constant 0 : index
      %44 = vector.load %arg9[%c0_30, %c0_31] : memref<8x1xf32, #tpu.memory_space<vmem>>, vector<8x1xf32>
      %45 = vector.broadcast %43 : vector<8x1xf32> to vector<8x256xf32>
      %46 = arith.subf %26, %45 : vector<8x256xf32>
      %47 = vector.broadcast %44 : vector<8x1xf32> to vector<8x256xf32>
      %48 = arith.mulf %46, %47 : vector<8x256xf32>
      %49 = vector.extract_strided_slice %1 {offsets = [0, 19], sizes = [4, 256], strides = [1, 1]} : vector<4x294xf32> to vector<4x256xf32>
      %50 = vector.extract_strided_slice %1 {offsets = [0, 0], sizes = [4, 256], strides = [1, 1]} : vector<4x294xf32> to vector<4x256xf32>
      %51 = arith.addf %49, %50 : vector<4x256xf32>
      %52 = vector.extract_strided_slice %1 {offsets = [0, 1], sizes = [4, 256], strides = [1, 1]} : vector<4x294xf32> to vector<4x256xf32>
      %53 = arith.addf %51, %52 : vector<4x256xf32>
      %54 = vector.extract_strided_slice %1 {offsets = [0, 2], sizes = [4, 256], strides = [1, 1]} : vector<4x294xf32> to vector<4x256xf32>
      %55 = arith.addf %53, %54 : vector<4x256xf32>
      %56 = vector.extract_strided_slice %1 {offsets = [0, 18], sizes = [4, 256], strides = [1, 1]} : vector<4x294xf32> to vector<4x256xf32>
      %57 = arith.addf %55, %56 : vector<4x256xf32>
      %58 = vector.extract_strided_slice %1 {offsets = [0, 20], sizes = [4, 256], strides = [1, 1]} : vector<4x294xf32> to vector<4x256xf32>
      %59 = arith.addf %57, %58 : vector<4x256xf32>
      %60 = vector.extract_strided_slice %1 {offsets = [0, 36], sizes = [4, 256], strides = [1, 1]} : vector<4x294xf32> to vector<4x256xf32>
      %61 = arith.addf %59, %60 : vector<4x256xf32>
      %62 = vector.extract_strided_slice %1 {offsets = [0, 37], sizes = [4, 256], strides = [1, 1]} : vector<4x294xf32> to vector<4x256xf32>
      %63 = arith.addf %61, %62 : vector<4x256xf32>
      %64 = vector.extract_strided_slice %1 {offsets = [0, 38], sizes = [4, 256], strides = [1, 1]} : vector<4x294xf32> to vector<4x256xf32>
      %65 = arith.addf %63, %64 : vector<4x256xf32>
      %66 = vector.broadcast %3 : vector<1x256xf32> to vector<4x256xf32>
      %67 = arith.mulf %65, %66 : vector<4x256xf32>
      %c0_32 = arith.constant 0 : index
      %c1 = arith.constant 1 : index
      %68 = memref.load %arg2[%c0_32, %c1] : memref<1x5xf32, #tpu.memory_space<smem>>
      %c0_33 = arith.constant 0 : index
      %c2 = arith.constant 2 : index
      %69 = memref.load %arg2[%c0_33, %c2] : memref<1x5xf32, #tpu.memory_space<smem>>
      %c0_34 = arith.constant 0 : index
      %c3 = arith.constant 3 : index
      %70 = memref.load %arg2[%c0_34, %c3] : memref<1x5xf32, #tpu.memory_space<smem>>
      %c0_35 = arith.constant 0 : index
      %c4_36 = arith.constant 4 : index
      %71 = memref.load %arg2[%c0_35, %c4_36] : memref<1x5xf32, #tpu.memory_space<smem>>
      %72 = vector.extract_strided_slice %48 {offsets = [0, 0], sizes = [4, 256], strides = [1, 1]} : vector<8x256xf32> to vector<4x256xf32>
      %73 = vector.extract_strided_slice %48 {offsets = [4, 0], sizes = [4, 256], strides = [1, 1]} : vector<8x256xf32> to vector<4x256xf32>
      %74 = vector.broadcast %68 : f32 to vector<4x256xf32>
      %75 = arith.mulf %74, %49 : vector<4x256xf32>
      %76 = vector.broadcast %69 : f32 to vector<4x256xf32>
      %77 = arith.mulf %76, %72 : vector<4x256xf32>
      %78 = arith.addf %75, %77 : vector<4x256xf32>
      %79 = vector.broadcast %70 : f32 to vector<4x256xf32>
      %80 = arith.mulf %79, %73 : vector<4x256xf32>
      %81 = arith.addf %78, %80 : vector<4x256xf32>
      %82 = vector.broadcast %71 : f32 to vector<4x256xf32>
      %83 = arith.mulf %82, %67 : vector<4x256xf32>
      %84 = arith.addf %81, %83 : vector<4x256xf32>
      %c0_37 = arith.constant 0 : index
      %c0_38 = arith.constant 0 : index
      %85 = vector.load %arg6[%c0_37, %c0_38] : memref<4x256xf32, #tpu.memory_space<vmem>>, vector<4x256xf32>
      tpu.vector_store %arg6[%c0_37, %c0_38], %84 {strides = array<i32>} : memref<4x256xf32, #tpu.memory_space<vmem>>, vector<4x256xf32>,
    } else {
    }
    return
  }
  func.func @transform_0(%arg0: i32, %arg1: i32) -> (i32, i32) {
    %c0_i32 = arith.constant 0 : i32
    %c0_i32_0 = arith.constant 0 : i32
    %c0_i32_1 = arith.constant 0 : i32
    return %c0_i32, %c0_i32_0 : i32, i32
  }
  func.func @transform_1(%arg0: i32, %arg1: i32) -> (i32, i32, i32) {
    %c0_i32 = arith.constant 0 : i32
    %c0_i32_0 = arith.constant 0 : i32
    %c0_i32_1 = arith.constant 0 : i32
    return %arg1, %c0_i32, %c0_i32_0 : i32, i32, i32
  }
  func.func @transform_2(%arg0: i32, %arg1: i32) -> (i32, i32, i32) {
    %c0_i32 = arith.constant 0 : i32
    %c0_i32_0 = arith.constant 0 : i32
    %c0_i32_1 = arith.constant 0 : i32
    return %arg1, %c0_i32, %c0_i32_0 : i32, i32, i32
  }
  func.func @transform_3(%arg0: i32, %arg1: i32) -> (i32, i32) {
    %c0_i32 = arith.constant 0 : i32
    %c0_i32_0 = arith.constant 0 : i32
    %c0_i32_1 = arith.constant 0 : i32
    return %c0_i32, %c0_i32_0 : i32, i32
  }
  func.func @transform_4(%arg0: i32, %arg1: i32) -> (i32, i32) {
    %0 = arith.muli %arg0, %arg1 : i32
    %c0_i32 = arith.constant 0 : i32
    %c0_i32_0 = arith.constant 0 : i32
    return %c0_i32, %0 : i32, i32
  }
}

</mosaic_0001>

<llo_original>
// kernel: nas201_cell_forward.3
$region0: #{nas201_cell_forward.3}
  #allocation0 [shape = 'u32[]', space=smem, size = 0x4, offset = 0x4, fixed_abs, tag = 'smem constant byte address 0x4 - core index']
  #allocation1 [shape = 'u32[144,128]{1,0:T(1,128)}', space=vmem, size = 0x12000, scoped, tag = 'internal scratch']
  #allocation2 [shape = 'f32[36,256]{1,0:T(8,128)}', space=vmem, size = 0xa000, scoped, tag = 'scratch operand']
  #allocation3 [shape = 'f32[24,1]{1,0:T(8,128)}', space=vmem, size = 0x3000, scoped, tag = 'scratch operand']
  #allocation4 [shape = 'f32[24,1]{1,0:T(8,128)}', space=vmem, size = 0x3000, scoped, tag = 'scratch operand']
  %s0 = inlined_call_operand.vmem [shape: f32[3,5], index: 0, kind: input, shape index: {}]
  %s1 = inlined_call_operand.vmem [shape: f32[3,4,294], index: 1, kind: input, shape index: {}]
  %s2 = inlined_call_operand.vmem [shape: f32[3,1,256], index: 2, kind: input, shape index: {}]
  %s3 = inlined_call_operand.vmem [shape: f32[24,36], index: 3, kind: input, shape index: {}]
  %s4 = inlined_call_operand.vmem [shape: f32[12,768], index: 4, kind: output, shape index: {}]
  %s5 = sld [smem:[#allocation0]]
  $region88: #{nas201_cell_forward.3} parent=0
    _
  %s7 = ssub.s32 1, %s5
  %s8 = scalar_select 0, %s7, %s5
  $region1: #{nas201_cell_forward.3} parent=0
    #allocation5 [shape = 'u8[2048]{0}', space=smem, size = 0x800, scoped, tag = 'input window, operand 0, single buffered']
    #allocation6 [shape = 's32[2]{0}', space=sflag, size = 0x8, scoped, tag = 'scoped memory for nas201_cell_forward.3']
    #allocation7 [shape = 'u8[32768]{0}', space=vmem, size = 0x8000, scoped, tag = 'output window, operand 0']
    %9 = vsyncpa [#allocation6], 0
    loop: start=0, step=1, limit=8
    $region2: #{nas201_cell_forward.3} parent=1 // loop_pre_header
      _
    $region3: #{nas201_cell_forward.3} parent=1 // loop_header
      %s11 = sphi 0, %s15
      %p12 = scmp.ge.s32.totalorder %s11, 8
      %s18 = sphi 0, %s30
      %s19 = sphi 0, %s26
      %s20 = sphi 0, %s18
      %s21 = sphi 0, %s19
      %s22 = sphi 0, %s20
      %s23 = sphi 0, %s21
      %s31 = sphi 0, %s31
      %s33 = sphi 0, %s31
      %s34 = sphi 0, %s33
      %s48 = sphi 0, %s34
      %s54 = sphi 0, %s56
      %s57 = sphi 0, %s54
      %s58 = sphi 0, %s57
      %s74 = sphi 0, %s58
      %s80 = sphi 0, %s82
      %s83 = sphi 0, %s80
      %s84 = sphi 0, %s83
      %s100 = sphi 0, %s84
      %s104 = sphi 0, %s104
      %s106 = sphi 0, %s104
      %s107 = sphi 0, %s106
      %s121 = sphi 0, %s107
      %s129 = sphi 0, %s131
      %s132 = sphi 0, %s129
      %s133 = sphi 0, %s132
      %s149 = sphi 0, %s133
    $region4: #{nas201_cell_forward.3} parent=1 // loop_header_branch
      %14 = sbr.rel (%p12) target = $region8
    $region5: #{nas201_cell_forward.3} parent=1 // loop_body
      %s16 = ssub.s32 %s11, 1
      %s17 = ssub.s32 %s11, 2
      %s24 = sadd.s32 1, %s19
      %p25 = scmp.ge.s32.totalorder %s24, 3
      %s26 = scalar_select %p25, 0, %s24
      %s27 = sadd.s32 1, %s18
      %s28 = scalar_select %p25, %s27, %s18
      %p29 = scmp.ge.s32.totalorder %s28, 2
      %s30 = scalar_select %p29, 0, %s28
      %s32 = sadd.s32 %s31, 1
      %p35 = scmp.eq.s32.totalorder %s11, 5
      %p36 = scmp.ne.s32.totalorder %s31, %s33
      %p37 = scmp.eq.s32.totalorder %s11, 0
      %p38 = por %p36, %p37
      %p39 = scmp.ne.s32.totalorder %s31, %s33
      %p40 = scmp.eq.s32.totalorder %s16, 5
      %p41 = por %p39, %p40
      %p42 = scmp.ne.s32.totalorder %s33, %s34
      %p43 = scmp.eq.s32.totalorder %s16, 0
      %p44 = por %p42, %p43
      %p45 = scmp.ne.s32.totalorder %s33, %s34
      %p46 = scmp.eq.s32.totalorder %s17, 5
      %p47 = por %p45, %p46
      %p49 = scmp.ne.s32.totalorder %s34, %s48
      %p50 = scmp.eq.s32.totalorder %s17, 0
      %p51 = por %p49, %p50
      %s52 = ssub.s32 %s19, %s26
      %p53 = scmp.eq.s32.totalorder %s52, 0
      %s55 = sadd.s32 %s54, 1
      %s56 = scalar_select %p53, %s54, %s55
      %p59 = pneg %p53
      %p60 = scmp.eq.s32.totalorder %s11, 5
      %p61 = por %p59, %p60
      %p62 = scmp.ne.s32.totalorder %s54, %s57
      %p63 = scmp.eq.s32.totalorder %s11, 0
      %p64 = por %p62, %p63
      %p65 = scmp.ne.s32.totalorder %s54, %s57
      %p66 = scmp.eq.s32.totalorder %s16, 5
      %p67 = por %p65, %p66
      %p68 = scmp.ne.s32.totalorder %s57, %s58
      %p69 = scmp.eq.s32.totalorder %s16, 0
      %p70 = por %p68, %p69
      %p71 = scmp.ne.s32.totalorder %s57, %s58
      %p72 = scmp.eq.s32.totalorder %s17, 5
      %p73 = por %p71, %p72
      %p75 = scmp.ne.s32.totalorder %s58, %s74
      %p76 = scmp.eq.s32.totalorder %s17, 0
      %p77 = por %p75, %p76
      %s78 = ssub.s32 %s19, %s26
      %p79 = scmp.eq.s32.totalorder %s78, 0
      %s81 = sadd.s32 %s80, 1
      %s82 = scalar_select %p79, %s80, %s81
      %p85 = pneg %p79
      %p86 = scmp.eq.s32.totalorder %s11, 5
      %p87 = por %p85, %p86
      %p88 = scmp.ne.s32.totalorder %s80, %s83
      %p89 = scmp.eq.s32.totalorder %s11, 0
      %p90 = por %p88, %p89
      %p91 = scmp.ne.s32.totalorder %s80, %s83
      %p92 = scmp.eq.s32.totalorder %s16, 5
      %p93 = por %p91, %p92
      %p94 = scmp.ne.s32.totalorder %s83, %s84
      %p95 = scmp.eq.s32.totalorder %s16, 0
      %p96 = por %p94, %p95
      %p97 = scmp.ne.s32.totalorder %s83, %s84
      %p98 = scmp.eq.s32.totalorder %s17, 5
      %p99 = por %p97, %p98
      %p101 = scmp.ne.s32.totalorder %s84, %s100
      %p102 = scmp.eq.s32.totalorder %s17, 0
      %p103 = por %p101, %p102
      %s105 = sadd.s32 %s104, 1
      %p108 = scmp.eq.s32.totalorder %s11, 5
      %p109 = scmp.ne.s32.totalorder %s104, %s106
      %p110 = scmp.eq.s32.totalorder %s11, 0
      %p111 = por %p109, %p110
      %p112 = scmp.ne.s32.totalorder %s104, %s106
      %p113 = scmp.eq.s32.totalorder %s16, 5
      %p114 = por %p112, %p113
      %p115 = scmp.ne.s32.totalorder %s106, %s107
      %p116 = scmp.eq.s32.totalorder %s16, 0
      %p117 = por %p115, %p116
      %p118 = scmp.ne.s32.totalorder %s106, %s107
      %p119 = scmp.eq.s32.totalorder %s17, 5
      %p120 = por %p118, %p119
      %p122 = scmp.ne.s32.totalorder %s107, %s121
      %p123 = scmp.eq.s32.totalorder %s17, 0
      %p124 = por %p122, %p123
      %s125 = smul.u32 %s18, %s19
      %s126 = smul.u32 %s30, %s26
      %s127 = ssub.s32 %s125, %s126
      %p128 = scmp.eq.s32.totalorder %s127, 0
      %s130 = sadd.s32 %s129, 1
      %s131 = scalar_select %p128, %s129, %s130
      %p134 = pneg %p128
      %p135 = scmp.eq.s32.totalorder %s11, 5
      %p136 = por %p134, %p135
      %p137 = scmp.ne.s32.totalorder %s129, %s132
      %p138 = scmp.eq.s32.totalorder %s11, 0
      %p139 = por %p137, %p138
      %p140 = scmp.ne.s32.totalorder %s129, %s132
      %p141 = scmp.eq.s32.totalorder %s16, 5
      %p142 = por %p140, %p141
      %p143 = scmp.ne.s32.totalorder %s132, %s133
      %p144 = scmp.eq.s32.totalorder %s16, 0
      %p145 = por %p143, %p144
      %p146 = scmp.ne.s32.totalorder %s132, %s133
      %p147 = scmp.eq.s32.totalorder %s17, 5
      %p148 = por %p146, %p147
      %p150 = scmp.ne.s32.totalorder %s133, %s149
      %p151 = scmp.eq.s32.totalorder %s17, 0
      %p152 = por %p150, %p151
      %p153 = scmp.le.s32.totalorder 1, %s11
      %p154 = scmp.lt.s32.totalorder %s11, 7
      %p155 = pnand %p153, %p154
      %p156 = pneg %p155
      // Predicated region
      $region9: #{nas201_cell_forward.3} parent=5 // pred_check
        _
      $region10: #{nas201_cell_forward.3} parent=5 // pred_check_branch
        %158 = sbr.rel (%p155) target = $region12
      $region11: #{nas201_cell_forward.3} parent=5 // pred_region
        %s159 = ssub.s32 %s11, 1
        // Predicated region
        $region13: #{nas201_cell_forward.3} parent=11 // pred_check
          %p160 = pneg %p44
        $region14: #{nas201_cell_forward.3} parent=11 // pred_check_branch
          %162 = sbr.rel (%p160) target = $region16
        $region15: #{nas201_cell_forward.3} parent=11 // pred_region
          %s164 = ssub.s32 64, 64
          %165 = vsyncadd [#allocation6], %s164
          %s167 = sshll.u32 %s0, 4
          %s168 = int_to_ptr.vmem [resolvable:$true] %s167
          %170 = dma.vmem_to_smem %s168, 64, [#allocation5], [#allocation6]
        $region16: #{nas201_cell_forward.3} parent=11 // pred_fallthru
          _
        // Predicated region
        $region17: #{nas201_cell_forward.3} parent=11 // pred_check
          %p171 = pneg %p117
        $region18: #{nas201_cell_forward.3} parent=11 // pred_check_branch
          %173 = sbr.rel (%p171) target = $region20
        $region19: #{nas201_cell_forward.3} parent=11 // pred_region
          _
        $region20: #{nas201_cell_forward.3} parent=11 // pred_fallthru
          _
      $region12: #{nas201_cell_forward.3} parent=5 // pred_fallthru
        _
      %p174 = scmp.lt.s32.totalorder %s11, 6
      // Predicated region
      $region21: #{nas201_cell_forward.3} parent=5 // pred_check
        %p175 = pneg %p174
      $region22: #{nas201_cell_forward.3} parent=5 // pred_check_branch
        %177 = sbr.rel (%p175) target = $region24
      $region23: #{nas201_cell_forward.3} parent=5 // pred_region
        // Predicated region
        $region25: #{nas201_cell_forward.3} parent=23 // pred_check
          %p178 = pneg %p64
        $region26: #{nas201_cell_forward.3} parent=23 // pred_check_branch
          %180 = sbr.rel (%p178) target = $region28
        $region27: #{nas201_cell_forward.3} parent=23 // pred_region
          %p181 = scmp.lt.s32.totalorder %s19, 2
          %s182 = scalar_select %p181, %s19, 2
          %s183 = smul.addr %s182, 3
          %s184 = smul.addr %s183, 4
          %s185 = scalar_lea.vmem %s1, %s184
        $region28: #{nas201_cell_forward.3} parent=23 // pred_fallthru
          _
        // Predicated region
        $region29: #{nas201_cell_forward.3} parent=23 // pred_check
          %p186 = pneg %p90
        $region30: #{nas201_cell_forward.3} parent=23 // pred_check_branch
          %188 = sbr.rel (%p186) target = $region32
        $region31: #{nas201_cell_forward.3} parent=23 // pred_region
          %p189 = scmp.lt.s32.totalorder %s19, 2
          %s190 = scalar_select %p189, %s19, 2
          %s191 = smul.addr %s190, 2
          %s192 = scalar_lea.vmem %s2, %s191
        $region32: #{nas201_cell_forward.3} parent=23 // pred_fallthru
          _
      $region24: #{nas201_cell_forward.3} parent=5 // pred_fallthru
        _
      %p193 = scmp.le.s32.totalorder 1, %s11
      %p194 = scmp.lt.s32.totalorder %s11, 7
      %p195 = pnand %p193, %p194
      %p196 = pneg %p195
      // Predicated region
      $region33: #{nas201_cell_forward.3} parent=5 // pred_check
        _
      $region34: #{nas201_cell_forward.3} parent=5 // pred_check_branch
        %198 = sbr.rel (%p195) target = $region36
      $region35: #{nas201_cell_forward.3} parent=5 // pred_region
        %s199 = ssub.s32 %s11, 1
        // Predicated region
        $region37: #{nas201_cell_forward.3} parent=35 // pred_check
          %p200 = pneg %p44
        $region38: #{nas201_cell_forward.3} parent=35 // pred_check_branch
          %202 = sbr.rel (%p200) target = $region40
        $region39: #{nas201_cell_forward.3} parent=35 // pred_region
          %203 = dma.done [#allocation6], 64
        $region40: #{nas201_cell_forward.3} parent=35 // pred_fallthru
          _
        %204 = sfence
        %p205 = pneg %p44
        %p206 = pneg %p41
        %p207 = scmp.lt.s32.totalorder %s21, 2
        %s208 = scalar_select %p207, %s21, 2
        %s209 = smul.addr %s208, 3
        %s210 = smul.addr %s209, 4
        %s211 = scalar_lea.vmem %s1, %s210
        %p212 = pneg %p70
        %p213 = pneg %p67
        %p214 = scmp.lt.s32.totalorder %s21, 2
        %s215 = scalar_select %p214, %s21, 2
        %s216 = smul.addr %s215, 2
        %s217 = scalar_lea.vmem %s2, %s216
        %p218 = pneg %p96
        %p219 = pneg %p93
        %p220 = pneg %p117
        %p221 = pneg %p114
        %p222 = pneg %p145
        %p223 = pneg %p142
        %s224 = sand.u32 %s132, 1
        %s225 = sand.u32 %s132, 1
        %s226 = smul.addr %s225, 32
        %s227 = scalar_lea.vmem [#allocation7], %s226
        %p228 = scmp.lt.s32.totalorder %s21, 2
        %s229 = scalar_select %p228, %s21, 2
        %s230 = smul.addr %s229, 3
        %s231 = smul.addr %s230, 4
        %s232 = scalar_lea.vmem %s1, %s231
        %p233 = scmp.lt.s32.totalorder %s21, 2
        %s234 = scalar_select %p233, %s21, 2
        %s235 = smul.addr %s234, 2
        %s236 = scalar_lea.vmem %s2, %s235
        %s237 = smul.u32 %s20, %s21
        %s238 = smul.u32 2, %s237
        %v239 = vld [vmem:[%s232] sm:$0xff]
        %v240 = vld [vmem:[%s232 + $0x8] sm:$0xf]
        %v241 = vld [vmem:[%s236] sm:$0x3]
        %v242 = vmax.f32 %v239, 0.0
        %v243 = vmax.f32 %v240, 0.0
        %v245 = vcombine.high %v242, %v242
        %247 = vst [vmem:[#allocation2] sm:$0xf] %v242
        %248 = vst [vmem:[#allocation2 + $0x8] sm:$0xf] %v245
        %v250 = vcombine.low %v242, %v242
        %v251 = vcombine.low %v243, %v243
        %252 = vrot.lane.b32.xlu0 %v250, 127
        %v253 = vpop.permute.xlu0 %252
        %254 = vrot.lane.b32.xlu0 %v242, 127
        %v255 = vpop.permute.xlu0 %254
        %256 = vrot.lane.b32.xlu0 %v251, 127
        %v257 = vpop.permute.xlu0 %256
        %vm258 = vcmask 1039360
        %v259 = vsel %vm258, %v253, %v255
        %v260 = vsel %vm258, %v255, %v257
        %263 = vst [vmem:[#allocation2] sm:$0xf0] %v259
        %264 = vst [vmem:[#allocation2 + $0x8] sm:$0xf0] %v260
        %265 = vrot.lane.b32.xlu0 %v242, 126
        %v266 = vpop.permute.xlu0 %265
        %267 = vrot.lane.b32.xlu0 %v245, 126
        %v268 = vpop.permute.xlu0 %267
        %269 = vrot.lane.b32.xlu0 %v243, 126
        %v270 = vpop.permute.xlu0 %269
        %vm271 = vcmask 1031168
        %v272 = vsel %vm271, %v266, %v268
        %v273 = vsel %vm271, %v268, %v270
        %276 = vst [vmem:[#allocation2 + $0x10] sm:$0xf] %v272
        %277 = vst [vmem:[#allocation2 + $0x18] sm:$0xf] %v273
        %278 = vrot.lane.b32.xlu0 %v250, 110
        %v279 = vpop.permute.xlu0 %278
        %280 = vrot.lane.b32.xlu0 %v242, 110
        %v281 = vpop.permute.xlu0 %280
        %282 = vrot.lane.b32.xlu0 %v251, 110
        %v283 = vpop.permute.xlu0 %282
        %vm284 = vcmask 900096
        %v285 = vsel %vm284, %v279, %v281
        %v286 = vsel %vm284, %v281, %v283
        %289 = vst [vmem:[#allocation2 + $0x10] sm:$0xf0] %v285
        %290 = vst [vmem:[#allocation2 + $0x18] sm:$0xf0] %v286
        %291 = vrot.lane.b32.xlu0 %v242, 109
        %v292 = vpop.permute.xlu0 %291
        %293 = vrot.lane.b32.xlu0 %v245, 109
        %v294 = vpop.permute.xlu0 %293
        %295 = vrot.lane.b32.xlu0 %v243, 109
        %v296 = vpop.permute.xlu0 %295
        %vm297 = vcmask 891904
        %v298 = vsel %vm297, %v292, %v294
        %v299 = vsel %vm297, %v294, %v296
        %302 = vst [vmem:[#allocation2 + $0x20] sm:$0xf] %v298
        %303 = vst [vmem:[#allocation2 + $0x28] sm:$0xf] %v299
        %304 = vrot.lane.b32.xlu0 %v250, 108
        %v305 = vpop.permute.xlu0 %304
        %306 = vrot.lane.b32.xlu0 %v242, 108
        %v307 = vpop.permute.xlu0 %306
        %308 = vrot.lane.b32.xlu0 %v251, 108
        %v309 = vpop.permute.xlu0 %308
        %vm310 = vcmask 883712
        %v311 = vsel %vm310, %v305, %v307
        %v312 = vsel %vm310, %v307, %v309
        %315 = vst [vmem:[#allocation2 + $0x20] sm:$0xf0] %v311
        %316 = vst [vmem:[#allocation2 + $0x28] sm:$0xf0] %v312
        %317 = vrot.lane.b32.xlu0 %v242, 92
        %v318 = vpop.permute.xlu0 %317
        %319 = vrot.lane.b32.xlu0 %v245, 92
        %v320 = vpop.permute.xlu0 %319
        %321 = vrot.lane.b32.xlu0 %v243, 92
        %v322 = vpop.permute.xlu0 %321
        %vm323 = vcmask 752640
        %v324 = vsel %vm323, %v318, %v320
        %v325 = vsel %vm323, %v320, %v322
        %328 = vst [vmem:[#allocation2 + $0x30] sm:$0xf] %v324
        %329 = vst [vmem:[#allocation2 + $0x38] sm:$0xf] %v325
        %330 = vrot.lane.b32.xlu0 %v250, 91
        %v331 = vpop.permute.xlu0 %330
        %332 = vrot.lane.b32.xlu0 %v242, 91
        %v333 = vpop.permute.xlu0 %332
        %334 = vrot.lane.b32.xlu0 %v251, 91
        %v335 = vpop.permute.xlu0 %334
        %vm336 = vcmask 744448
        %v337 = vsel %vm336, %v331, %v333
        %v338 = vsel %vm336, %v333, %v335
        %341 = vst [vmem:[#allocation2 + $0x30] sm:$0xf0] %v337
        %342 = vst [vmem:[#allocation2 + $0x38] sm:$0xf0] %v338
        %343 = vrot.lane.b32.xlu0 %v242, 90
        %v344 = vpop.permute.xlu0 %343
        %345 = vrot.lane.b32.xlu0 %v245, 90
        %v346 = vpop.permute.xlu0 %345
        %347 = vrot.lane.b32.xlu0 %v243, 90
        %v348 = vpop.permute.xlu0 %347
        %vm349 = vcmask 736256
        %v350 = vsel %vm349, %v344, %v346
        %v351 = vsel %vm349, %v346, %v348
        %354 = vst [vmem:[#allocation2 + $0x40] sm:$0xf] %v350
        %355 = vst [vmem:[#allocation2 + $0x48] sm:$0xf] %v351
        %v356 = vld [vmem:[%s3] sm:$0xff]
        %v357 = vld [vmem:[%s3 + $0x8] sm:$0xff]
        %v358 = vld [vmem:[%s3 + $0x10] sm:$0xff]
        %v359 = vld [vmem:[#allocation2] sm:$0xff]
        %v360 = vld [vmem:[#allocation2 + $0x8] sm:$0xff]
        %v361 = vld [vmem:[#allocation2 + $0x10] sm:$0xff]
        %v362 = vld [vmem:[#allocation2 + $0x18] sm:$0xff]
        %v363 = vld [vmem:[#allocation2 + $0x20] sm:$0xff]
        %v364 = vld [vmem:[#allocation2 + $0x28] sm:$0xff]
        %v365 = vld [vmem:[#allocation2 + $0x30] sm:$0xff]
        %v366 = vld [vmem:[#allocation2 + $0x38] sm:$0xff]
        %v367 = vld [vmem:[#allocation2 + $0x40] sm:$0xf]
        %v368 = vld [vmem:[#allocation2 + $0x48] sm:$0xf]
        %vm369 = vcmask 293888
        %v371 = vsel %vm369, %v356, 0
        %v374 = vsel %vm369, %v357, 0
        %v377 = vsel %vm369, %v358, 0
        %vm379 = vcmask 1043456
        %v381 = vsel %vm379, %v367, 0
        %v384 = vsel %vm379, %v368, 0
        %386 = vmatprep.subr.mxu0 %v360
        %387 = vmatpush1.msra.mxu0 %v359
        %388 = vmatprep.subr.mxu0 %v362
        %389 = vmatpush1.msra.mxu0 %v361
        %390 = vmatprep.subr.mxu0 %v364
        %391 = vmatpush1.msra.mxu0 %v363
        %392 = vmatprep.subr.mxu0 %v366
        %393 = vmatpush1.msra.mxu0 %v365
        %394 = vmatprep.subr.mxu0 %v384
        %395 = vmatpush1.msra.mxu0 %v381
        %396 = vmatprep.subr.mxu0 0.0
        %397 = vmatpush1.msra.mxu0 0.0
        %398 = vmatprep.subr.mxu0 0.0
        %399 = vmatpush1.msra.mxu0 0.0
        %400 = vmatprep.subr.mxu0 0.0
        %401 = vmatpush1.msra.mxu0 0.0
        %402 = vmatprep.subr.mxu0 0.0
        %403 = vmatpush1.msra.mxu0 0.0
        %404 = vmatprep.subr.mxu0 0.0
        %405 = vmatpush1.msra.mxu0 0.0
        %406 = vmatprep.subr.mxu0 0.0
        %407 = vmatpush1.msra.mxu0 0.0
        %408 = vmatprep.subr.mxu0 0.0
        %409 = vmatpush1.msra.mxu0 0.0
        %410 = vmatprep.subr.mxu0 0.0
        %411 = vmatpush1.msra.mxu0 0.0
        %412 = vmatprep.subr.mxu0 0.0
        %413 = vmatpush1.msra.mxu0 0.0
        %414 = vmatprep.subr.mxu0 0.0
        %415 = vmatpush1.msra.mxu0 0.0
        %416 = vmatprep.subr.mxu0 0.0
        %417 = vmatpush1.msra.mxu0 0.0
        %418 = vmatprep.subr.mxu0 0.0
        %419 = vmatpush1.msra.mxu0 0.0
        %420 = vmatprep.subr.mxu0 0.0
        %421 = vmatpush1.msra.mxu0 0.0
        %422 = vmatprep.subr.mxu0 0.0
        %423 = vmatpush1.msra.mxu0 0.0
        %424 = vmatprep.subr.mxu0 0.0
        %425 = vmatpush1.msra.mxu0 0.0
        %426 = vmatprep.subr.mxu0 0.0
        %427 = vmatpush1.msra.mxu0 0.0
        %428 = vmatprep.subr.mxu0 0.0
        %429 = vmatpush1.msra.mxu0 0.0
        %430 = vmatprep.subr.mxu0 0.0
        %431 = vmatpush1.msra.mxu0 0.0
        %432 = vmatprep.subr.mxu0 0.0
        %433 = vmatpush1.msra.mxu0 0.0
        %434 = vmatprep.subr.mxu0 0.0
        %435 = vmatpush1.msra.mxu0 0.0
        %436 = vmatprep.subr.mxu0 0.0
        %437 = vmatpush1.msra.mxu0 0.0
        %438 = vmatprep.subr.mxu0 0.0
        %439 = vmatpush1.msra.mxu0 0.0
        %440 = vmatprep.subr.mxu0 0.0
        %441 = vmatpush1.msra.mxu0 0.0
        %442 = vmatprep.subr.mxu0 0.0
        %443 = vmatpush1.msra.mxu0 0.0
        %444 = vmatprep.subr.mxu0 0.0
        %445 = vmatpush1.msra.mxu0 0.0
        %446 = vmatprep.subr.mxu0 0.0
        %447 = vmatpush1.msra.mxu0 0.0
        %448 = vmatprep.subr.mxu0 0.0
        %449 = vmatpush1.msra.mxu0 0.0
        %450 = vmatprep.mubr.f32.mxu0 0.0
        %451 = vmatmul.mubr.f32.gmra.mrb[0].mxu0 %v371
        %v452 = vpop.f32.mrb[0].mxu0
        %v453 = vadd.f32 0.0, %v452
        %v454 = vpop.f32.mrb[0].mxu0
        %v455 = vadd.f32 0.0, %v454
        %456 = vmatprep.mubr.f32.mxu0 0.0
        %457 = vmatmul.mubr.f32.gmra.mrb[0].mxu0 %v374
        %v458 = vpop.f32.mrb[0].mxu0
        %v459 = vadd.f32 0.0, %v458
        %v460 = vpop.f32.mrb[0].mxu0
        %v461 = vadd.f32 0.0, %v460
        %462 = vmatprep.mubr.f32.mxu0 0.0
        %463 = vmatmul.mubr.f32.gmra.mrb[0].mxu0 %v377
        %v464 = vpop.f32.mrb[0].mxu0
        %v465 = vadd.f32 0.0, %v464
        %v466 = vpop.f32.mrb[0].mxu0
        %v467 = vadd.f32 0.0, %v466
        %468 = vdwg.mxu0
        %p469 = scmp.eq.s32.totalorder %s20, 0
        %p470 = scmp.eq.s32.totalorder %s21, 0
        %p471 = pnand %p469, %p470
        %p472 = pneg %p471
        // Predicated region
        $region41: #{nas201_cell_forward.3} parent=35 // pred_check
          _
        $region42: #{nas201_cell_forward.3} parent=35 // pred_check_branch
          %474 = sbr.rel (%p471) target = $region44
        $region43: #{nas201_cell_forward.3} parent=35 // pred_region
          %vm475 = vcmask 7168
          %476 = vst.msk [vmem:[#allocation3] sm:$0xff] %vm475, 0.0
          %477 = vst.msk [vmem:[#allocation3 + $0x8] sm:$0xff] %vm475, 0.0
          %478 = vst.msk [vmem:[#allocation3 + $0x10] sm:$0xff] %vm475, 0.0
          %479 = vst.msk [vmem:[#allocation4] sm:$0xff] %vm475, 0.0
          %480 = vst.msk [vmem:[#allocation4 + $0x8] sm:$0xff] %vm475, 0.0
          %481 = vst.msk [vmem:[#allocation4 + $0x10] sm:$0xff] %vm475, 0.0
        $region44: #{nas201_cell_forward.3} parent=35 // pred_fallthru
          _
        // Predicated region
        $region45: #{nas201_cell_forward.3} parent=35 // pred_check
          %p482 = pneg %p469
        $region46: #{nas201_cell_forward.3} parent=35 // pred_check_branch
          %484 = sbr.rel (%p482) target = $region48
        $region47: #{nas201_cell_forward.3} parent=35 // pred_region
          %vm485 = vcmp.gt.f32.partialorder %v241, 0.0
          %v486 = vsel %vm485, 1, 0
          %v487 = vcvt.s32.f32 %v486
          %v489 = vlaneseq
          %v490 = vshrl.u32 %v489, 7
          %v491 = vsub.s32 0, %v490
          %v492 = vrot.slane %v487, %v491
          %v493 = vlaneseq
          %v494 = vshrl.u32 %v493, 7
          %v495 = vsub.s32 1, %v494
          %v496 = vrot.slane %v487, %v495
          %v499 = vmul.f32 %v453, %v492
          %v500 = vmul.f32 %v455, %v496
          %v501 = vmul.f32 %v459, %v492
          %v502 = vmul.f32 %v461, %v496
          %v503 = vmul.f32 %v465, %v492
          %v504 = vmul.f32 %v467, %v496
          %v505 = vld [vmem:[#allocation3] sm:$0xff]
          %v506 = vld [vmem:[#allocation3 + $0x8] sm:$0xff]
          %v507 = vld [vmem:[#allocation3 + $0x10] sm:$0xff]
          %v508 = vadd.f32 %v499, %v500
          %509 = vadd.xlane.f32.xlu0 %v508
          %v510 = vpop.xlane.xlu0 %509
          %v511 = vadd.f32 %v501, %v502
          %512 = vadd.xlane.f32.xlu0 %v511
          %v513 = vpop.xlane.xlu0 %512
          %v514 = vadd.f32 %v503, %v504
          %515 = vadd.xlane.f32.xlu0 %v514
          %v516 = vpop.xlane.xlu0 %515
          %v517 = vadd.f32 %v505, %v510
          %v518 = vadd.f32 %v506, %v513
          %v519 = vadd.f32 %v507, %v516
          %vm520 = vcmask 7168
          %521 = vst.msk [vmem:[#allocation3] sm:$0xff] %vm520, %v517
          %522 = vst.msk [vmem:[#allocation3 + $0x8] sm:$0xff] %vm520, %v518
          %523 = vst.msk [vmem:[#allocation3 + $0x10] sm:$0xff] %vm520, %v519
          %v524 = vld [vmem:[#allocation4] sm:$0xff]
          %v525 = vld [vmem:[#allocation4 + $0x8] sm:$0xff]
          %v526 = vld [vmem:[#allocation4 + $0x10] sm:$0xff]
          %v527 = vmul.f32 %v499, %v453
          %v528 = vmul.f32 %v500, %v455
          %v529 = vmul.f32 %v501, %v459
          %v530 = vmul.f32 %v502, %v461
          %v531 = vmul.f32 %v503, %v465
          %v532 = vmul.f32 %v504, %v467
          %v533 = vadd.f32 %v527, %v528
          %534 = vadd.xlane.f32.xlu0 %v533
          %v535 = vpop.xlane.xlu0 %534
          %v536 = vadd.f32 %v529, %v530
          %537 = vadd.xlane.f32.xlu0 %v536
          %v538 = vpop.xlane.xlu0 %537
          %v539 = vadd.f32 %v531, %v532
          %540 = vadd.xlane.f32.xlu0 %v539
          %v541 = vpop.xlane.xlu0 %540
          %v542 = vadd.f32 %v524, %v535
          %v543 = vadd.f32 %v525, %v538
          %v544 = vadd.f32 %v526, %v541
          %545 = vst.msk [vmem:[#allocation4] sm:$0xff] %vm520, %v542
          %546 = vst.msk [vmem:[#allocation4 + $0x8] sm:$0xff] %vm520, %v543
          %547 = vst.msk [vmem:[#allocation4 + $0x10] sm:$0xff] %vm520, %v544
        $region48: #{nas201_cell_forward.3} parent=35 // pred_fallthru
          _
        %p548 = scmp.eq.s32.totalorder %s20, 1
        %p549 = pnand %p548, %p470
        %p550 = pneg %p549
        // Predicated region
        $region49: #{nas201_cell_forward.3} parent=35 // pred_check
          _
        $region50: #{nas201_cell_forward.3} parent=35 // pred_check_branch
          %552 = sbr.rel (%p549) target = $region52
        $region51: #{nas201_cell_forward.3} parent=35 // pred_region
          %v553 = vld [vmem:[#allocation3] sm:$0xff]
          %v554 = vld [vmem:[#allocation3 + $0x8] sm:$0xff]
          %v555 = vld [vmem:[#allocation3 + $0x10] sm:$0xff]
          %v556 = vmul.f32 %v553, 0.001953125
          %v557 = vmul.f32 %v554, 0.001953125
          %v558 = vmul.f32 %v555, 0.001953125
          %v559 = vld [vmem:[#allocation4] sm:$0xff]
          %v560 = vld [vmem:[#allocation4 + $0x8] sm:$0xff]
          %v561 = vld [vmem:[#allocation4 + $0x10] sm:$0xff]
          %v562 = vmul.f32 %v559, 0.001953125
          %v563 = vmul.f32 %v560, 0.001953125
          %v564 = vmul.f32 %v561, 0.001953125
          %v565 = vmul.f32 %v556, %v556
          %v566 = vmul.f32 %v557, %v557
          %v567 = vmul.f32 %v558, %v558
          %v568 = vsub.f32 %v562, %v565
          %v569 = vsub.f32 %v563, %v566
          %v570 = vsub.f32 %v564, %v567
          %v571 = vmax.f32 %v568, 0.0
          %v572 = vmax.f32 %v569, 0.0
          %v573 = vmax.f32 %v570, 0.0
          %vm574 = vcmask 7168
          %575 = vst.msk [vmem:[#allocation3] sm:$0xff] %vm574, %v556
          %576 = vst.msk [vmem:[#allocation3 + $0x8] sm:$0xff] %vm574, %v557
          %577 = vst.msk [vmem:[#allocation3 + $0x10] sm:$0xff] %vm574, %v558
          %v578 = vadd.f32 %v571, 1e-05
          %v579 = vadd.f32 %v572, 1e-05
          %v580 = vadd.f32 %v573, 1e-05
          %v581 = vrsqrt.pop %v578
          %v582 = vrsqrt.pop %v579
          %v583 = vrsqrt.pop %v580
          %584 = vst.msk [vmem:[#allocation4] sm:$0xff] %vm574, %v581
          %585 = vst.msk [vmem:[#allocation4 + $0x8] sm:$0xff] %vm574, %v582
          %586 = vst.msk [vmem:[#allocation4 + $0x10] sm:$0xff] %vm574, %v583
        $region52: #{nas201_cell_forward.3} parent=35 // pred_fallthru
          _
        // Predicated region
        $region53: #{nas201_cell_forward.3} parent=35 // pred_check
          %p587 = pneg %p548
        $region54: #{nas201_cell_forward.3} parent=35 // pred_check_branch
          %589 = sbr.rel (%p587) target = $region56
        $region55: #{nas201_cell_forward.3} parent=35 // pred_region
          %v590 = vld [vmem:[#allocation3] sm:$0xff]
          %v591 = vld [vmem:[#allocation3 + $0x8] sm:$0xff]
          %v592 = vld [vmem:[#allocation3 + $0x10] sm:$0xff]
          %v593 = vld [vmem:[#allocation4] sm:$0xff]
          %v594 = vld [vmem:[#allocation4 + $0x8] sm:$0xff]
          %v595 = vld [vmem:[#allocation4 + $0x10] sm:$0xff]
          %597 = vset.pattern.permute.xlu0 0
          %598 = vperm.xlu0 %597, %v590
          %v599 = vpop.permute.xlu0 %598
          %602 = vset.pattern.permute.xlu0 0
          %603 = vperm.xlu0 %602, %v591
          %v604 = vpop.permute.xlu0 %603
          %607 = vset.pattern.permute.xlu0 0
          %608 = vperm.xlu0 %607, %v592
          %v609 = vpop.permute.xlu0 %608
          %v611 = vsub.f32 %v453, %v599
          %v612 = vsub.f32 %v455, %v599
          %v613 = vsub.f32 %v459, %v604
          %v614 = vsub.f32 %v461, %v604
          %v615 = vsub.f32 %v465, %v609
          %v616 = vsub.f32 %v467, %v609
          %618 = vset.pattern.permute.xlu0 0
          %619 = vperm.xlu0 %618, %v593
          %v620 = vpop.permute.xlu0 %619
          %623 = vset.pattern.permute.xlu0 0
          %624 = vperm.xlu0 %623, %v594
          %v625 = vpop.permute.xlu0 %624
          %628 = vset.pattern.permute.xlu0 0
          %629 = vperm.xlu0 %628, %v595
          %v630 = vpop.permute.xlu0 %629
          %v632 = vmul.f32 %v611, %v620
          %v633 = vmul.f32 %v612, %v620
          %v634 = vmul.f32 %v613, %v625
          %v635 = vmul.f32 %v614, %v625
          %v636 = vmul.f32 %v615, %v630
          %v637 = vmul.f32 %v616, %v630
          %639 = vrot.lane.b32.xlu0 %v239, 19
          %v640 = vpop.permute.xlu0 %639
          %v641 = vrot.slane %v640, 4
          %vm642 = vcmask 154624
          %v643 = vsel %vm642, %v641, %v640
          %v646 = vadd.f32 %v239, %v643
          %v647 = vadd.f32 %v240, %v641
          %649 = vrot.lane.b32.xlu0 %v239, 18
          %v650 = vpop.permute.xlu0 %649
          %651 = vrot.lane.b32.xlu0 %v240, 18
          %v652 = vpop.permute.xlu0 %651
          %v653 = vrot.slane %v650, 4
          %vm654 = vcmask 146432
          %v655 = vsel %vm654, %v653, %v650
          %v656 = vsel %vm654, %v653, %v652
          %v659 = vadd.f32 %v646, %v655
          %v660 = vadd.f32 %v647, %v656
          %661 = vrot.lane.b32.xlu0 %v239, 17
          %v662 = vpop.permute.xlu0 %661
          %663 = vrot.lane.b32.xlu0 %v240, 17
          %v664 = vpop.permute.xlu0 %663
          %v665 = vrot.slane %v662, 4
          %vm666 = vcmask 138240
          %v667 = vsel %vm666, %v665, %v662
          %v668 = vsel %vm666, %v665, %v664
          %v671 = vadd.f32 %v659, %v667
          %v672 = vadd.f32 %v660, %v668
          %673 = vrot.lane.b32.xlu0 %v239, 1
          %v674 = vpop.permute.xlu0 %673
          %675 = vrot.lane.b32.xlu0 %v240, 1
          %v676 = vpop.permute.xlu0 %675
          %v677 = vrot.slane %v674, 4
          %vm678 = vcmask 7168
          %v679 = vsel %vm678, %v677, %v674
          %v680 = vsel %vm678, %v677, %v676
          %v683 = vadd.f32 %v671, %v679
          %v684 = vadd.f32 %v672, %v680
          %685 = vrot.lane.b32.xlu0 %v239, 127
          %v686 = vpop.permute.xlu0 %685
          %687 = vrot.lane.b32.xlu0 %v240, 127
          %v688 = vpop.permute.xlu0 %687
          %v689 = vrot.slane %v686, 4
          %v690 = vrot.slane %v688, 4
          %v691 = vsel %vm379, %v689, %v690
          %v692 = vsel %vm258, %v686, %v691
          %v695 = vadd.f32 %v683, %v692
          %v696 = vadd.f32 %v684, %v688
          %697 = vrot.lane.b32.xlu0 %v239, 111
          %v698 = vpop.permute.xlu0 %697
          %699 = vrot.lane.b32.xlu0 %v240, 111
          %v700 = vpop.permute.xlu0 %699
          %v701 = vrot.slane %v698, 4
          %v702 = vrot.slane %v700, 4
          %v703 = vsel %vm379, %v701, %v702
          %vm704 = vcmask 908288
          %v705 = vsel %vm704, %v698, %v703
          %v708 = vadd.f32 %v695, %v705
          %v709 = vadd.f32 %v696, %v700
          %710 = vrot.lane.b32.xlu0 %v239, 110
          %v711 = vpop.permute.xlu0 %710
          %712 = vrot.lane.b32.xlu0 %v240, 110
          %v713 = vpop.permute.xlu0 %712
          %v714 = vrot.slane %v711, 4
          %v715 = vrot.slane %v713, 4
          %v716 = vsel %vm379, %v714, %v715
          %v717 = vsel %vm284, %v711, %v716
          %v720 = vadd.f32 %v708, %v717
          %v721 = vadd.f32 %v709, %v713
          %722 = vrot.lane.b32.xlu0 %v239, 109
          %v723 = vpop.permute.xlu0 %722
          %724 = vrot.lane.b32.xlu0 %v240, 109
          %v725 = vpop.permute.xlu0 %724
          %v726 = vrot.slane %v723, 4
          %v727 = vrot.slane %v725, 4
          %v728 = vsel %vm379, %v726, %v727
          %v729 = vsel %vm297, %v723, %v728
          %v732 = vadd.f32 %v720, %v729
          %v733 = vadd.f32 %v721, %v725
          %v735 = vlaneseq
          %v736 = vshrl.u32 %v735, 7
          %v737 = vsub.s32 0, %v736
          %v738 = vrot.slane %v241, %v737
          %v739 = vlaneseq
          %v740 = vshrl.u32 %v739, 7
          %v741 = vsub.s32 1, %v740
          %v742 = vrot.slane %v241, %v741
          %v743 = vcombine.low %v738, %v742
          %744 = vrot.lane.b32.xlu0 %v743, 19
          %v745 = vpop.permute.xlu0 %744
          %v746 = vrot.slane %v745, 4
          %v747 = vsel %vm642, %v746, %v745
          %v750 = vmul.f32 %v732, %v747
          %v751 = vmul.f32 %v733, %v746
          %s752 = sld [smem:[#allocation5 + $0x1]]
          %s753 = sld [smem:[#allocation5 + $0x2]]
          %s754 = sld [smem:[#allocation5 + $0x3]]
          %s755 = sld [smem:[#allocation5 + $0x4]]
          %v756 = vstv %s752
          %v757 = vmul.f32 %v756, %v239
          %v758 = vmul.f32 %v756, %v240
          %v759 = vstv %s753
          %v760 = vmul.f32 %v759, %v632
          %v761 = vmul.f32 %v759, %v633
          %v764 = vcombine.low %v760, %v761
          %765 = vrot.lane.b32.xlu0 %v764, 19
          %v766 = vpop.permute.xlu0 %765
          %v767 = vrot.slane %v766, 4
          %v768 = vsel %vm642, %v767, %v766
          %v771 = vadd.f32 %v757, %v768
          %v772 = vadd.f32 %v758, %v767
          %v773 = vstv %s754
          %v774 = vmul.f32 %v773, %v632
          %v775 = vmul.f32 %v773, %v633
          %v778 = vcombine.high %v774, %v775
          %779 = vrot.lane.b32.xlu0 %v778, 19
          %v780 = vpop.permute.xlu0 %779
          %v781 = vrot.slane %v780, 4
          %v782 = vsel %vm642, %v781, %v780
          %v785 = vadd.f32 %v771, %v782
          %v786 = vadd.f32 %v772, %v781
          %v787 = vstv %s755
          %v788 = vmul.f32 %v787, %v750
          %v789 = vmul.f32 %v787, %v751
          %v790 = vadd.f32 %v785, %v788
          %v791 = vadd.f32 %v786, %v789
          %v794 = vcombine.high %v790, %v790
          %795 = vrot.lane.b32.xlu0 %v790, 109
          %v796 = vpop.permute.xlu0 %795
          %797 = vrot.lane.b32.xlu0 %v794, 109
          %v798 = vpop.permute.xlu0 %797
          %799 = vrot.lane.b32.xlu0 %v791, 109
          %v800 = vpop.permute.xlu0 %799
          %v801 = vsel %vm297, %v796, %v798
          %v802 = vsel %vm297, %v798, %v800
          %805 = vst [vmem:[%s227] sm:$0xf] %v801
          %806 = vst [vmem:[%s227 + $0x8] sm:$0xf] %v802
          %s807 = sld [smem:[#allocation5 + $0x81]]
          %s808 = sld [smem:[#allocation5 + $0x82]]
          %s809 = sld [smem:[#allocation5 + $0x83]]
          %s810 = sld [smem:[#allocation5 + $0x84]]
          %v811 = vstv %s807
          %v812 = vmul.f32 %v811, %v239
          %v813 = vmul.f32 %v811, %v240
          %v814 = vstv %s808
          %v815 = vmul.f32 %v814, %v634
          %v816 = vmul.f32 %v814, %v635
          %v819 = vcombine.low %v815, %v816
          %820 = vrot.lane.b32.xlu0 %v819, 19
          %v821 = vpop.permute.xlu0 %820
          %v822 = vrot.slane %v821, 4
          %v823 = vsel %vm642, %v822, %v821
          %v826 = vadd.f32 %v812, %v823
          %v827 = vadd.f32 %v813, %v822
          %v828 = vstv %s809
          %v829 = vmul.f32 %v828, %v634
          %v830 = vmul.f32 %v828, %v635
          %v833 = vcombine.high %v829, %v830
          %834 = vrot.lane.b32.xlu0 %v833, 19
          %v835 = vpop.permute.xlu0 %834
          %v836 = vrot.slane %v835, 4
          %v837 = vsel %vm642, %v836, %v835
          %v840 = vadd.f32 %v826, %v837
          %v841 = vadd.f32 %v827, %v836
          %v842 = vstv %s810
          %v843 = vmul.f32 %v842, %v750
          %v844 = vmul.f32 %v842, %v751
          %v845 = vadd.f32 %v840, %v843
          %v846 = vadd.f32 %v841, %v844
          %v849 = vcombine.low %v845, %v845
          %v850 = vcombine.low %v846, %v846
          %851 = vrot.lane.b32.xlu0 %v849, 109
          %v852 = vpop.permute.xlu0 %851
          %853 = vrot.lane.b32.xlu0 %v845, 109
          %v854 = vpop.permute.xlu0 %853
          %855 = vrot.lane.b32.xlu0 %v850, 109
          %v856 = vpop.permute.xlu0 %855
          %v857 = vsel %vm297, %v852, %v854
          %v858 = vsel %vm297, %v854, %v856
          %861 = vst [vmem:[%s227] sm:$0xf0] %v857
          %862 = vst [vmem:[%s227 + $0x8] sm:$0xf0] %v858
          %s863 = sld [smem:[#allocation5 + $0x101]]
          %s864 = sld [smem:[#allocation5 + $0x102]]
          %s865 = sld [smem:[#allocation5 + $0x103]]
          %s866 = sld [smem:[#allocation5 + $0x104]]
          %v867 = vstv %s863
          %v868 = vmul.f32 %v867, %v239
          %v869 = vmul.f32 %v867, %v240
          %v870 = vstv %s864
          %v871 = vmul.f32 %v870, %v636
          %v872 = vmul.f32 %v870, %v637
          %v875 = vcombine.low %v871, %v872
          %876 = vrot.lane.b32.xlu0 %v875, 19
          %v877 = vpop.permute.xlu0 %876
          %v878 = vrot.slane %v877, 4
          %v879 = vsel %vm642, %v878, %v877
          %v882 = vadd.f32 %v868, %v879
          %v883 = vadd.f32 %v869, %v878
          %v884 = vstv %s865
          %v885 = vmul.f32 %v884, %v636
          %v886 = vmul.f32 %v884, %v637
          %v889 = vcombine.high %v885, %v886
          %890 = vrot.lane.b32.xlu0 %v889, 19
          %v891 = vpop.permute.xlu0 %890
          %v892 = vrot.slane %v891, 4
          %v893 = vsel %vm642, %v892, %v891
          %v896 = vadd.f32 %v882, %v893
          %v897 = vadd.f32 %v883, %v892
          %v898 = vstv %s866
          %v899 = vmul.f32 %v898, %v750
          %v900 = vmul.f32 %v898, %v751
          %v901 = vadd.f32 %v896, %v899
          %v902 = vadd.f32 %v897, %v900
          %v905 = vcombine.high %v901, %v901
          %906 = vrot.lane.b32.xlu0 %v901, 109
          %v907 = vpop.permute.xlu0 %906
          %908 = vrot.lane.b32.xlu0 %v905, 109
          %v909 = vpop.permute.xlu0 %908
          %910 = vrot.lane.b32.xlu0 %v902, 109
          %v911 = vpop.permute.xlu0 %910
          %v912 = vsel %vm297, %v907, %v909
          %v913 = vsel %vm297, %v909, %v911
          %916 = vst [vmem:[%s227 + $0x10] sm:$0xf] %v912
          %917 = vst [vmem:[%s227 + $0x18] sm:$0xf] %v913
        $region56: #{nas201_cell_forward.3} parent=35 // pred_fallthru
          _
        %s918 = sand.u32 %s132, 1
        %s919 = sand.u32 %s132, 1
        %s920 = smul.addr %s919, 32
        %s921 = scalar_lea.vmem [#allocation7], %s920
        // Predicated region
        $region57: #{nas201_cell_forward.3} parent=35 // pred_check
          %p922 = pneg %p142
        $region58: #{nas201_cell_forward.3} parent=35 // pred_check_branch
          %924 = sbr.rel (%p922) target = $region60
        $region59: #{nas201_cell_forward.3} parent=35 // pred_region
          %s925 = smul.u32 %s20, %s21
          %s926 = smul.u32 2, %s925
          %s927 = smul.addr %s926, 8
          %s928 = scalar_lea.vmem %s4, %s927
          // Predicated region
          $region61: #{nas201_cell_forward.3} parent=59 // pred_check
            _
          $region62: #{nas201_cell_forward.3} parent=59 // pred_check_branch
            %930 = sbr.rel (0) target = $region64
          $region63: #{nas201_cell_forward.3} parent=59 // pred_region
            // Predicated region
            $region65: #{nas201_cell_forward.3} parent=63 // pred_check
              _
            $region66: #{nas201_cell_forward.3} parent=63 // pred_check_branch
              %932 = sbr.rel (0) target = $region68
            $region67: #{nas201_cell_forward.3} parent=63 // pred_region
              loop: start=0, step=1, limit=1
              $region69: #{nas201_cell_forward.3} parent=67 // loop_pre_header
                _
              $region70: #{nas201_cell_forward.3} parent=67 // loop_header
                %s934 = sphi 0, %s938
                %p935 = scmp.ge.s32.totalorder %s934, 1
                %s939 = sphi %s921, %s921
                %s940 = sphi %s928, %s928
              $region71: #{nas201_cell_forward.3} parent=67 // loop_header_branch
                %937 = sbr.rel (%p935) target = $region75
              $region72: #{nas201_cell_forward.3} parent=67 // loop_body
                %v941 = vld [vmem:[%s939] sm:$0xff]
                %942 = vst [vmem:[%s940] sm:$0xff] %v941
                %v943 = vld [vmem:[%s939 + $0x8] sm:$0xff]
                %944 = vst [vmem:[%s940 + $0x8] sm:$0xff] %v943
                %v945 = vld [vmem:[%s939 + $0x10] sm:$0xff]
                %946 = vst [vmem:[%s940 + $0x30] sm:$0xff] %v945
                %v947 = vld [vmem:[%s939 + $0x18] sm:$0xff]
                %948 = vst [vmem:[%s940 + $0x38] sm:$0xff] %v947
              $region73: #{nas201_cell_forward.3} parent=67 // loop_footer
                %s938 = sadd.s32 1, %s934
              $region74: #{nas201_cell_forward.3} parent=67 // loop_footer_branch
                %933 = sbr.rel target = $region70
              $region75: #{nas201_cell_forward.3} parent=67 // loop_exit
                _
            $region68: #{nas201_cell_forward.3} parent=63 // pred_fallthru
              _
            // Predicated region
            $region76: #{nas201_cell_forward.3} parent=63 // pred_check
              _
            $region77: #{nas201_cell_forward.3} parent=63 // pred_check_branch
              %950 = sbr.rel target = $region79
            $region78: #{nas201_cell_forward.3} parent=63 // pred_region
              _
            $region79: #{nas201_cell_forward.3} parent=63 // pred_fallthru
              _
          $region64: #{nas201_cell_forward.3} parent=59 // pred_fallthru
            _
          %951 = vnop
        $region60: #{nas201_cell_forward.3} parent=35 // pred_fallthru
          _
      $region36: #{nas201_cell_forward.3} parent=5 // pred_fallthru
        _
      %p952 = scmp.le.s32.totalorder 2, %s11
      // Predicated region
      $region80: #{nas201_cell_forward.3} parent=5 // pred_check
        %p953 = pneg %p952
      $region81: #{nas201_cell_forward.3} parent=5 // pred_check_branch
        %955 = sbr.rel (%p953) target = $region83
      $region82: #{nas201_cell_forward.3} parent=5 // pred_region
        %s956 = ssub.s32 %s11, 2
        // Predicated region
        $region84: #{nas201_cell_forward.3} parent=82 // pred_check
          %p957 = pneg %p148
        $region85: #{nas201_cell_forward.3} parent=82 // pred_check_branch
          %959 = sbr.rel (%p957) target = $region87
        $region86: #{nas201_cell_forward.3} parent=82 // pred_region
          %s960 = sand.u32 %s133, 1
          %s961 = sand.u32 %s133, 1
          %s962 = smul.addr %s961, 32
          %s963 = scalar_lea.vmem [#allocation7], %s962
        $region87: #{nas201_cell_forward.3} parent=82 // pred_fallthru
          _
      $region83: #{nas201_cell_forward.3} parent=5 // pred_fallthru
        _
    $region6: #{nas201_cell_forward.3} parent=1 // loop_footer
      %s15 = sadd.s32 1, %s11
    $region7: #{nas201_cell_forward.3} parent=1 // loop_footer_branch
      %10 = sbr.rel target = $region3
    $region8: #{nas201_cell_forward.3} parent=1 // loop_exit
      _
    %964 = vsyncpa [#allocation6], 1
    %s965 = scalar_lea.sflag [#allocation6], 1
    %966 = vsyncpa %s965, 1

// kernel: nas201_cell_forward.4
$region0: #{nas201_cell_forward.4}
  #allocation0 [shape = 'u32[]', space=smem, size = 0x4, offset = 0x4, fixed_abs, tag = 'smem constant byte address 0x4 - core index']
  #allocation1 [shape = 'u32[144,128]{1,0:T(1,128)}', space=vmem, size = 0x12000, scoped, tag = 'internal scratch']
  #allocation2 [shape = 'f32[36,256]{1,0:T(8,128)}', space=vmem, size = 0xa000, scoped, tag = 'scratch operand']
  #allocation3 [shape = 'f32[16,1]{1,0:T(8,128)}', space=vmem, size = 0x2000, scoped, tag = 'scratch operand']
  #allocation4 [shape = 'f32[16,1]{1,0:T(8,128)}', space=vmem, size = 0x2000, scoped, tag = 'scratch operand']
  %s0 = inlined_call_operand.vmem [shape: f32[2,5], index: 0, kind: input, shape index: {}]
  %s1 = inlined_call_operand.vmem [shape: f32[3,4,294], index: 1, kind: input, shape index: {}]
  %s2 = inlined_call_operand.vmem [shape: f32[3,1,256], index: 2, kind: input, shape index: {}]
  %s3 = inlined_call_operand.vmem [shape: f32[16,36], index: 3, kind: input, shape index: {}]
  %s4 = inlined_call_operand.vmem [shape: f32[8,768], index: 4, kind: output, shape index: {}]
  %s5 = sld [smem:[#allocation0]]
  $region69: #{nas201_cell_forward.4} parent=0
    _
  %s7 = ssub.s32 1, %s5
  %s8 = scalar_select 0, %s7, %s5
  $region1: #{nas201_cell_forward.4} parent=0
    #allocation5 [shape = 'u8[1024]{0}', space=smem, size = 0x400, scoped, tag = 'input window, operand 0, single buffered']
    #allocation6 [shape = 's32[2]{0}', space=sflag, size = 0x8, scoped, tag = 'scoped memory for nas201_cell_forward.4']
    %9 = vsyncpa [#allocation6], 0
    loop: start=0, step=1, limit=8
    $region2: #{nas201_cell_forward.4} parent=1 // loop_pre_header
      _
    $region3: #{nas201_cell_forward.4} parent=1 // loop_header
      %s11 = sphi 0, %s15
      %p12 = scmp.ge.s32.totalorder %s11, 8
      %s18 = sphi 0, %s30
      %s19 = sphi 0, %s26
      %s20 = sphi 0, %s18
      %s21 = sphi 0, %s19
      %s22 = sphi 0, %s20
      %s23 = sphi 0, %s21
      %s31 = sphi 0, %s31
      %s33 = sphi 0, %s31
      %s34 = sphi 0, %s33
      %s48 = sphi 0, %s34
      %s54 = sphi 0, %s56
      %s57 = sphi 0, %s54
      %s58 = sphi 0, %s57
      %s74 = sphi 0, %s58
      %s80 = sphi 0, %s82
      %s83 = sphi 0, %s80
      %s84 = sphi 0, %s83
      %s100 = sphi 0, %s84
      %s104 = sphi 0, %s104
      %s106 = sphi 0, %s104
      %s107 = sphi 0, %s106
      %s121 = sphi 0, %s107
      %s129 = sphi 0, %s131
      %s132 = sphi 0, %s129
      %s133 = sphi 0, %s132
      %s149 = sphi 0, %s133
    $region4: #{nas201_cell_forward.4} parent=1 // loop_header_branch
      %14 = sbr.rel (%p12) target = $region8
    $region5: #{nas201_cell_forward.4} parent=1 // loop_body
      %s16 = ssub.s32 %s11, 1
      %s17 = ssub.s32 %s11, 2
      %s24 = sadd.s32 1, %s19
      %p25 = scmp.ge.s32.totalorder %s24, 3
      %s26 = scalar_select %p25, 0, %s24
      %s27 = sadd.s32 1, %s18
      %s28 = scalar_select %p25, %s27, %s18
      %p29 = scmp.ge.s32.totalorder %s28, 2
      %s30 = scalar_select %p29, 0, %s28
      %s32 = sadd.s32 %s31, 1
      %p35 = scmp.eq.s32.totalorder %s11, 5
      %p36 = scmp.ne.s32.totalorder %s31, %s33
      %p37 = scmp.eq.s32.totalorder %s11, 0
      %p38 = por %p36, %p37
      %p39 = scmp.ne.s32.totalorder %s31, %s33
      %p40 = scmp.eq.s32.totalorder %s16, 5
      %p41 = por %p39, %p40
      %p42 = scmp.ne.s32.totalorder %s33, %s34
      %p43 = scmp.eq.s32.totalorder %s16, 0
      %p44 = por %p42, %p43
      %p45 = scmp.ne.s32.totalorder %s33, %s34
      %p46 = scmp.eq.s32.totalorder %s17, 5
      %p47 = por %p45, %p46
      %p49 = scmp.ne.s32.totalorder %s34, %s48
      %p50 = scmp.eq.s32.totalorder %s17, 0
      %p51 = por %p49, %p50
      %s52 = ssub.s32 %s19, %s26
      %p53 = scmp.eq.s32.totalorder %s52, 0
      %s55 = sadd.s32 %s54, 1
      %s56 = scalar_select %p53, %s54, %s55
      %p59 = pneg %p53
      %p60 = scmp.eq.s32.totalorder %s11, 5
      %p61 = por %p59, %p60
      %p62 = scmp.ne.s32.totalorder %s54, %s57
      %p63 = scmp.eq.s32.totalorder %s11, 0
      %p64 = por %p62, %p63
      %p65 = scmp.ne.s32.totalorder %s54, %s57
      %p66 = scmp.eq.s32.totalorder %s16, 5
      %p67 = por %p65, %p66
      %p68 = scmp.ne.s32.totalorder %s57, %s58
      %p69 = scmp.eq.s32.totalorder %s16, 0
      %p70 = por %p68, %p69
      %p71 = scmp.ne.s32.totalorder %s57, %s58
      %p72 = scmp.eq.s32.totalorder %s17, 5
      %p73 = por %p71, %p72
      %p75 = scmp.ne.s32.totalorder %s58, %s74
      %p76 = scmp.eq.s32.totalorder %s17, 0
      %p77 = por %p75, %p76
      %s78 = ssub.s32 %s19, %s26
      %p79 = scmp.eq.s32.totalorder %s78, 0
      %s81 = sadd.s32 %s80, 1
      %s82 = scalar_select %p79, %s80, %s81
      %p85 = pneg %p79
      %p86 = scmp.eq.s32.totalorder %s11, 5
      %p87 = por %p85, %p86
      %p88 = scmp.ne.s32.totalorder %s80, %s83
      %p89 = scmp.eq.s32.totalorder %s11, 0
      %p90 = por %p88, %p89
      %p91 = scmp.ne.s32.totalorder %s80, %s83
      %p92 = scmp.eq.s32.totalorder %s16, 5
      %p93 = por %p91, %p92
      %p94 = scmp.ne.s32.totalorder %s83, %s84
      %p95 = scmp.eq.s32.totalorder %s16, 0
      %p96 = por %p94, %p95
      %p97 = scmp.ne.s32.totalorder %s83, %s84
      %p98 = scmp.eq.s32.totalorder %s17, 5
      %p99 = por %p97, %p98
      %p101 = scmp.ne.s32.totalorder %s84, %s100
      %p102 = scmp.eq.s32.totalorder %s17, 0
      %p103 = por %p101, %p102
      %s105 = sadd.s32 %s104, 1
      %p108 = scmp.eq.s32.totalorder %s11, 5
      %p109 = scmp.ne.s32.totalorder %s104, %s106
      %p110 = scmp.eq.s32.totalorder %s11, 0
      %p111 = por %p109, %p110
      %p112 = scmp.ne.s32.totalorder %s104, %s106
      %p113 = scmp.eq.s32.totalorder %s16, 5
      %p114 = por %p112, %p113
      %p115 = scmp.ne.s32.totalorder %s106, %s107
      %p116 = scmp.eq.s32.totalorder %s16, 0
      %p117 = por %p115, %p116
      %p118 = scmp.ne.s32.totalorder %s106, %s107
      %p119 = scmp.eq.s32.totalorder %s17, 5
      %p120 = por %p118, %p119
      %p122 = scmp.ne.s32.totalorder %s107, %s121
      %p123 = scmp.eq.s32.totalorder %s17, 0
      %p124 = por %p122, %p123
      %s125 = smul.u32 %s18, %s19
      %s126 = smul.u32 %s30, %s26
      %s127 = ssub.s32 %s125, %s126
      %p128 = scmp.eq.s32.totalorder %s127, 0
      %s130 = sadd.s32 %s129, 1
      %s131 = scalar_select %p128, %s129, %s130
      %p134 = pneg %p128
      %p135 = scmp.eq.s32.totalorder %s11, 5
      %p136 = por %p134, %p135
      %p137 = scmp.ne.s32.totalorder %s129, %s132
      %p138 = scmp.eq.s32.totalorder %s11, 0
      %p139 = por %p137, %p138
      %p140 = scmp.ne.s32.totalorder %s129, %s132
      %p141 = scmp.eq.s32.totalorder %s16, 5
      %p142 = por %p140, %p141
      %p143 = scmp.ne.s32.totalorder %s132, %s133
      %p144 = scmp.eq.s32.totalorder %s16, 0
      %p145 = por %p143, %p144
      %p146 = scmp.ne.s32.totalorder %s132, %s133
      %p147 = scmp.eq.s32.totalorder %s17, 5
      %p148 = por %p146, %p147
      %p150 = scmp.ne.s32.totalorder %s133, %s149
      %p151 = scmp.eq.s32.totalorder %s17, 0
      %p152 = por %p150, %p151
      %p153 = scmp.le.s32.totalorder 1, %s11
      %p154 = scmp.lt.s32.totalorder %s11, 7
      %p155 = pnand %p153, %p154
      %p156 = pneg %p155
      // Predicated region
      $region9: #{nas201_cell_forward.4} parent=5 // pred_check
        _
      $region10: #{nas201_cell_forward.4} parent=5 // pred_check_branch
        %158 = sbr.rel (%p155) target = $region12
      $region11: #{nas201_cell_forward.4} parent=5 // pred_region
        %s159 = ssub.s32 %s11, 1
        // Predicated region
        $region13: #{nas201_cell_forward.4} parent=11 // pred_check
          %p160 = pneg %p44
        $region14: #{nas201_cell_forward.4} parent=11 // pred_check_branch
          %162 = sbr.rel (%p160) target = $region16
        $region15: #{nas201_cell_forward.4} parent=11 // pred_region
          %s164 = ssub.s32 32, 32
          %165 = vsyncadd [#allocation6], %s164
          %s167 = sshll.u32 %s0, 4
          %s168 = int_to_ptr.vmem [resolvable:$true] %s167
          %170 = dma.vmem_to_smem %s168, 32, [#allocation5], [#allocation6]
        $region16: #{nas201_cell_forward.4} parent=11 // pred_fallthru
          _
        // Predicated region
        $region17: #{nas201_cell_forward.4} parent=11 // pred_check
          %p171 = pneg %p117
        $region18: #{nas201_cell_forward.4} parent=11 // pred_check_branch
          %173 = sbr.rel (%p171) target = $region20
        $region19: #{nas201_cell_forward.4} parent=11 // pred_region
          _
        $region20: #{nas201_cell_forward.4} parent=11 // pred_fallthru
          _
      $region12: #{nas201_cell_forward.4} parent=5 // pred_fallthru
        _
      %p174 = scmp.lt.s32.totalorder %s11, 6
      // Predicated region
      $region21: #{nas201_cell_forward.4} parent=5 // pred_check
        %p175 = pneg %p174
      $region22: #{nas201_cell_forward.4} parent=5 // pred_check_branch
        %177 = sbr.rel (%p175) target = $region24
      $region23: #{nas201_cell_forward.4} parent=5 // pred_region
        // Predicated region
        $region25: #{nas201_cell_forward.4} parent=23 // pred_check
          %p178 = pneg %p64
        $region26: #{nas201_cell_forward.4} parent=23 // pred_check_branch
          %180 = sbr.rel (%p178) target = $region28
        $region27: #{nas201_cell_forward.4} parent=23 // pred_region
          %p181 = scmp.lt.s32.totalorder %s19, 2
          %s182 = scalar_select %p181, %s19, 2
          %s183 = smul.addr %s182, 3
          %s184 = smul.addr %s183, 4
          %s185 = scalar_lea.vmem %s1, %s184
        $region28: #{nas201_cell_forward.4} parent=23 // pred_fallthru
          _
        // Predicated region
        $region29: #{nas201_cell_forward.4} parent=23 // pred_check
          %p186 = pneg %p90
        $region30: #{nas201_cell_forward.4} parent=23 // pred_check_branch
          %188 = sbr.rel (%p186) target = $region32
        $region31: #{nas201_cell_forward.4} parent=23 // pred_region
          %p189 = scmp.lt.s32.totalorder %s19, 2
          %s190 = scalar_select %p189, %s19, 2
          %s191 = smul.addr %s190, 2
          %s192 = scalar_lea.vmem %s2, %s191
        $region32: #{nas201_cell_forward.4} parent=23 // pred_fallthru
          _
      $region24: #{nas201_cell_forward.4} parent=5 // pred_fallthru
        _
      %p193 = scmp.le.s32.totalorder 1, %s11
      %p194 = scmp.lt.s32.totalorder %s11, 7
      %p195 = pnand %p193, %p194
      %p196 = pneg %p195
      // Predicated region
      $region33: #{nas201_cell_forward.4} parent=5 // pred_check
        _
      $region34: #{nas201_cell_forward.4} parent=5 // pred_check_branch
        %198 = sbr.rel (%p195) target = $region36
      $region35: #{nas201_cell_forward.4} parent=5 // pred_region
        %s199 = ssub.s32 %s11, 1
        // Predicated region
        $region37: #{nas201_cell_forward.4} parent=35 // pred_check
          %p200 = pneg %p44
        $region38: #{nas201_cell_forward.4} parent=35 // pred_check_branch
          %202 = sbr.rel (%p200) target = $region40
        $region39: #{nas201_cell_forward.4} parent=35 // pred_region
          %203 = dma.done [#allocation6], 32
        $region40: #{nas201_cell_forward.4} parent=35 // pred_fallthru
          _
        %204 = sfence
        %p205 = pneg %p44
        %p206 = pneg %p41
        %p207 = scmp.lt.s32.totalorder %s21, 2
        %s208 = scalar_select %p207, %s21, 2
        %s209 = smul.addr %s208, 3
        %s210 = smul.addr %s209, 4
        %s211 = scalar_lea.vmem %s1, %s210
        %p212 = pneg %p70
        %p213 = pneg %p67
        %p214 = scmp.lt.s32.totalorder %s21, 2
        %s215 = scalar_select %p214, %s21, 2
        %s216 = smul.addr %s215, 2
        %s217 = scalar_lea.vmem %s2, %s216
        %p218 = pneg %p96
        %p219 = pneg %p93
        %p220 = pneg %p117
        %p221 = pneg %p114
        %p222 = pneg %p145
        %p223 = pneg %p142
        %s224 = smul.u32 %s20, %s21
        %s225 = smul.u32 2, %s224
        %p226 = scmp.lt.s32.totalorder %s225, 5
        %s227 = scalar_select %p226, %s225, 5
        %s228 = smul.addr %s227, 8
        %s229 = scalar_lea.vmem %s4, %s228
        %p230 = scmp.lt.s32.totalorder %s21, 2
        %s231 = scalar_select %p230, %s21, 2
        %s232 = smul.addr %s231, 3
        %s233 = smul.addr %s232, 4
        %s234 = scalar_lea.vmem %s1, %s233
        %p235 = scmp.lt.s32.totalorder %s21, 2
        %s236 = scalar_select %p235, %s21, 2
        %s237 = smul.addr %s236, 2
        %s238 = scalar_lea.vmem %s2, %s237
        %s239 = smul.u32 %s20, %s21
        %s240 = smul.u32 2, %s239
        %p241 = scmp.lt.s32.totalorder %s240, 5
        %s242 = scalar_select %p241, %s240, 5
        %s243 = smul.addr %s242, 8
        %s244 = scalar_lea.vmem %s4, %s243
        %s245 = smul.u32 %s20, %s21
        %s246 = smul.u32 2, %s245
        %v247 = vld [vmem:[%s234] sm:$0xff]
        %v248 = vld [vmem:[%s234 + $0x8] sm:$0xf]
        %v249 = vld [vmem:[%s238] sm:$0x3]
        %v250 = vmax.f32 %v247, 0.0
        %v251 = vmax.f32 %v248, 0.0
        %v253 = vcombine.high %v250, %v250
        %255 = vst [vmem:[#allocation2] sm:$0xf] %v250
        %256 = vst [vmem:[#allocation2 + $0x8] sm:$0xf] %v253
        %v258 = vcombine.low %v250, %v250
        %v259 = vcombine.low %v251, %v251
        %260 = vrot.lane.b32.xlu0 %v258, 127
        %v261 = vpop.permute.xlu0 %260
        %262 = vrot.lane.b32.xlu0 %v250, 127
        %v263 = vpop.permute.xlu0 %262
        %264 = vrot.lane.b32.xlu0 %v259, 127
        %v265 = vpop.permute.xlu0 %264
        %vm266 = vcmask 1039360
        %v267 = vsel %vm266, %v261, %v263
        %v268 = vsel %vm266, %v263, %v265
        %271 = vst [vmem:[#allocation2] sm:$0xf0] %v267
        %272 = vst [vmem:[#allocation2 + $0x8] sm:$0xf0] %v268
        %273 = vrot.lane.b32.xlu0 %v250, 126
        %v274 = vpop.permute.xlu0 %273
        %275 = vrot.lane.b32.xlu0 %v253, 126
        %v276 = vpop.permute.xlu0 %275
        %277 = vrot.lane.b32.xlu0 %v251, 126
        %v278 = vpop.permute.xlu0 %277
        %vm279 = vcmask 1031168
        %v280 = vsel %vm279, %v274, %v276
        %v281 = vsel %vm279, %v276, %v278
        %284 = vst [vmem:[#allocation2 + $0x10] sm:$0xf] %v280
        %285 = vst [vmem:[#allocation2 + $0x18] sm:$0xf] %v281
        %286 = vrot.lane.b32.xlu0 %v258, 110
        %v287 = vpop.permute.xlu0 %286
        %288 = vrot.lane.b32.xlu0 %v250, 110
        %v289 = vpop.permute.xlu0 %288
        %290 = vrot.lane.b32.xlu0 %v259, 110
        %v291 = vpop.permute.xlu0 %290
        %vm292 = vcmask 900096
        %v293 = vsel %vm292, %v287, %v289
        %v294 = vsel %vm292, %v289, %v291
        %297 = vst [vmem:[#allocation2 + $0x10] sm:$0xf0] %v293
        %298 = vst [vmem:[#allocation2 + $0x18] sm:$0xf0] %v294
        %299 = vrot.lane.b32.xlu0 %v250, 109
        %v300 = vpop.permute.xlu0 %299
        %301 = vrot.lane.b32.xlu0 %v253, 109
        %v302 = vpop.permute.xlu0 %301
        %303 = vrot.lane.b32.xlu0 %v251, 109
        %v304 = vpop.permute.xlu0 %303
        %vm305 = vcmask 891904
        %v306 = vsel %vm305, %v300, %v302
        %v307 = vsel %vm305, %v302, %v304
        %310 = vst [vmem:[#allocation2 + $0x20] sm:$0xf] %v306
        %311 = vst [vmem:[#allocation2 + $0x28] sm:$0xf] %v307
        %312 = vrot.lane.b32.xlu0 %v258, 108
        %v313 = vpop.permute.xlu0 %312
        %314 = vrot.lane.b32.xlu0 %v250, 108
        %v315 = vpop.permute.xlu0 %314
        %316 = vrot.lane.b32.xlu0 %v259, 108
        %v317 = vpop.permute.xlu0 %316
        %vm318 = vcmask 883712
        %v319 = vsel %vm318, %v313, %v315
        %v320 = vsel %vm318, %v315, %v317
        %323 = vst [vmem:[#allocation2 + $0x20] sm:$0xf0] %v319
        %324 = vst [vmem:[#allocation2 + $0x28] sm:$0xf0] %v320
        %325 = vrot.lane.b32.xlu0 %v250, 92
        %v326 = vpop.permute.xlu0 %325
        %327 = vrot.lane.b32.xlu0 %v253, 92
        %v328 = vpop.permute.xlu0 %327
        %329 = vrot.lane.b32.xlu0 %v251, 92
        %v330 = vpop.permute.xlu0 %329
        %vm331 = vcmask 752640
        %v332 = vsel %vm331, %v326, %v328
        %v333 = vsel %vm331, %v328, %v330
        %336 = vst [vmem:[#allocation2 + $0x30] sm:$0xf] %v332
        %337 = vst [vmem:[#allocation2 + $0x38] sm:$0xf] %v333
        %338 = vrot.lane.b32.xlu0 %v258, 91
        %v339 = vpop.permute.xlu0 %338
        %340 = vrot.lane.b32.xlu0 %v250, 91
        %v341 = vpop.permute.xlu0 %340
        %342 = vrot.lane.b32.xlu0 %v259, 91
        %v343 = vpop.permute.xlu0 %342
        %vm344 = vcmask 744448
        %v345 = vsel %vm344, %v339, %v341
        %v346 = vsel %vm344, %v341, %v343
        %349 = vst [vmem:[#allocation2 + $0x30] sm:$0xf0] %v345
        %350 = vst [vmem:[#allocation2 + $0x38] sm:$0xf0] %v346
        %351 = vrot.lane.b32.xlu0 %v250, 90
        %v352 = vpop.permute.xlu0 %351
        %353 = vrot.lane.b32.xlu0 %v253, 90
        %v354 = vpop.permute.xlu0 %353
        %355 = vrot.lane.b32.xlu0 %v251, 90
        %v356 = vpop.permute.xlu0 %355
        %vm357 = vcmask 736256
        %v358 = vsel %vm357, %v352, %v354
        %v359 = vsel %vm357, %v354, %v356
        %362 = vst [vmem:[#allocation2 + $0x40] sm:$0xf] %v358
        %363 = vst [vmem:[#allocation2 + $0x48] sm:$0xf] %v359
        %v364 = vld [vmem:[%s3] sm:$0xff]
        %v365 = vld [vmem:[%s3 + $0x8] sm:$0xff]
        %v366 = vld [vmem:[#allocation2] sm:$0xff]
        %v367 = vld [vmem:[#allocation2 + $0x8] sm:$0xff]
        %v368 = vld [vmem:[#allocation2 + $0x10] sm:$0xff]
        %v369 = vld [vmem:[#allocation2 + $0x18] sm:$0xff]
        %v370 = vld [vmem:[#allocation2 + $0x20] sm:$0xff]
        %v371 = vld [vmem:[#allocation2 + $0x28] sm:$0xff]
        %v372 = vld [vmem:[#allocation2 + $0x30] sm:$0xff]
        %v373 = vld [vmem:[#allocation2 + $0x38] sm:$0xff]
        %v374 = vld [vmem:[#allocation2 + $0x40] sm:$0xf]
        %v375 = vld [vmem:[#allocation2 + $0x48] sm:$0xf]
        %vm376 = vcmask 293888
        %v378 = vsel %vm376, %v364, 0
        %v381 = vsel %vm376, %v365, 0
        %vm383 = vcmask 1043456
        %v385 = vsel %vm383, %v374, 0
        %v388 = vsel %vm383, %v375, 0
        %390 = vmatprep.subr.mxu0 %v367
        %391 = vmatpush1.msra.mxu0 %v366
        %392 = vmatprep.subr.mxu0 %v369
        %393 = vmatpush1.msra.mxu0 %v368
        %394 = vmatprep.subr.mxu0 %v371
        %395 = vmatpush1.msra.mxu0 %v370
        %396 = vmatprep.subr.mxu0 %v373
        %397 = vmatpush1.msra.mxu0 %v372
        %398 = vmatprep.subr.mxu0 %v388
        %399 = vmatpush1.msra.mxu0 %v385
        %400 = vmatprep.subr.mxu0 0.0
        %401 = vmatpush1.msra.mxu0 0.0
        %402 = vmatprep.subr.mxu0 0.0
        %403 = vmatpush1.msra.mxu0 0.0
        %404 = vmatprep.subr.mxu0 0.0
        %405 = vmatpush1.msra.mxu0 0.0
        %406 = vmatprep.subr.mxu0 0.0
        %407 = vmatpush1.msra.mxu0 0.0
        %408 = vmatprep.subr.mxu0 0.0
        %409 = vmatpush1.msra.mxu0 0.0
        %410 = vmatprep.subr.mxu0 0.0
        %411 = vmatpush1.msra.mxu0 0.0
        %412 = vmatprep.subr.mxu0 0.0
        %413 = vmatpush1.msra.mxu0 0.0
        %414 = vmatprep.subr.mxu0 0.0
        %415 = vmatpush1.msra.mxu0 0.0
        %416 = vmatprep.subr.mxu0 0.0
        %417 = vmatpush1.msra.mxu0 0.0
        %418 = vmatprep.subr.mxu0 0.0
        %419 = vmatpush1.msra.mxu0 0.0
        %420 = vmatprep.subr.mxu0 0.0
        %421 = vmatpush1.msra.mxu0 0.0
        %422 = vmatprep.subr.mxu0 0.0
        %423 = vmatpush1.msra.mxu0 0.0
        %424 = vmatprep.subr.mxu0 0.0
        %425 = vmatpush1.msra.mxu0 0.0
        %426 = vmatprep.subr.mxu0 0.0
        %427 = vmatpush1.msra.mxu0 0.0
        %428 = vmatprep.subr.mxu0 0.0
        %429 = vmatpush1.msra.mxu0 0.0
        %430 = vmatprep.subr.mxu0 0.0
        %431 = vmatpush1.msra.mxu0 0.0
        %432 = vmatprep.subr.mxu0 0.0
        %433 = vmatpush1.msra.mxu0 0.0
        %434 = vmatprep.subr.mxu0 0.0
        %435 = vmatpush1.msra.mxu0 0.0
        %436 = vmatprep.subr.mxu0 0.0
        %437 = vmatpush1.msra.mxu0 0.0
        %438 = vmatprep.subr.mxu0 0.0
        %439 = vmatpush1.msra.mxu0 0.0
        %440 = vmatprep.subr.mxu0 0.0
        %441 = vmatpush1.msra.mxu0 0.0
        %442 = vmatprep.subr.mxu0 0.0
        %443 = vmatpush1.msra.mxu0 0.0
        %444 = vmatprep.subr.mxu0 0.0
        %445 = vmatpush1.msra.mxu0 0.0
        %446 = vmatprep.subr.mxu0 0.0
        %447 = vmatpush1.msra.mxu0 0.0
        %448 = vmatprep.subr.mxu0 0.0
        %449 = vmatpush1.msra.mxu0 0.0
        %450 = vmatprep.subr.mxu0 0.0
        %451 = vmatpush1.msra.mxu0 0.0
        %452 = vmatprep.subr.mxu0 0.0
        %453 = vmatpush1.msra.mxu0 0.0
        %454 = vmatprep.mubr.f32.mxu0 0.0
        %455 = vmatmul.mubr.f32.gmra.mrb[0].mxu0 %v378
        %v456 = vpop.f32.mrb[0].mxu0
        %v457 = vadd.f32 0.0, %v456
        %v458 = vpop.f32.mrb[0].mxu0
        %v459 = vadd.f32 0.0, %v458
        %460 = vmatprep.mubr.f32.mxu0 0.0
        %461 = vmatmul.mubr.f32.gmra.mrb[0].mxu0 %v381
        %v462 = vpop.f32.mrb[0].mxu0
        %v463 = vadd.f32 0.0, %v462
        %v464 = vpop.f32.mrb[0].mxu0
        %v465 = vadd.f32 0.0, %v464
        %466 = vdwg.mxu0
        %p467 = scmp.eq.s32.totalorder %s20, 0
        %p468 = scmp.eq.s32.totalorder %s21, 0
        %p469 = pnand %p467, %p468
        %p470 = pneg %p469
        // Predicated region
        $region41: #{nas201_cell_forward.4} parent=35 // pred_check
          _
        $region42: #{nas201_cell_forward.4} parent=35 // pred_check_branch
          %472 = sbr.rel (%p469) target = $region44
        $region43: #{nas201_cell_forward.4} parent=35 // pred_region
          %vm473 = vcmask 7168
          %474 = vst.msk [vmem:[#allocation3] sm:$0xff] %vm473, 0.0
          %475 = vst.msk [vmem:[#allocation3 + $0x8] sm:$0xff] %vm473, 0.0
          %476 = vst.msk [vmem:[#allocation4] sm:$0xff] %vm473, 0.0
          %477 = vst.msk [vmem:[#allocation4 + $0x8] sm:$0xff] %vm473, 0.0
        $region44: #{nas201_cell_forward.4} parent=35 // pred_fallthru
          _
        // Predicated region
        $region45: #{nas201_cell_forward.4} parent=35 // pred_check
          %p478 = pneg %p467
        $region46: #{nas201_cell_forward.4} parent=35 // pred_check_branch
          %480 = sbr.rel (%p478) target = $region48
        $region47: #{nas201_cell_forward.4} parent=35 // pred_region
          %vm481 = vcmp.gt.f32.partialorder %v249, 0.0
          %v482 = vsel %vm481, 1, 0
          %v483 = vcvt.s32.f32 %v482
          %v485 = vlaneseq
          %v486 = vshrl.u32 %v485, 7
          %v487 = vsub.s32 0, %v486
          %v488 = vrot.slane %v483, %v487
          %v489 = vlaneseq
          %v490 = vshrl.u32 %v489, 7
          %v491 = vsub.s32 1, %v490
          %v492 = vrot.slane %v483, %v491
          %v495 = vmul.f32 %v457, %v488
          %v496 = vmul.f32 %v459, %v492
          %v497 = vmul.f32 %v463, %v488
          %v498 = vmul.f32 %v465, %v492
          %v499 = vld [vmem:[#allocation3] sm:$0xff]
          %v500 = vld [vmem:[#allocation3 + $0x8] sm:$0xff]
          %v501 = vadd.f32 %v495, %v496
          %502 = vadd.xlane.f32.xlu0 %v501
          %v503 = vpop.xlane.xlu0 %502
          %v504 = vadd.f32 %v497, %v498
          %505 = vadd.xlane.f32.xlu0 %v504
          %v506 = vpop.xlane.xlu0 %505
          %v507 = vadd.f32 %v499, %v503
          %v508 = vadd.f32 %v500, %v506
          %vm509 = vcmask 7168
          %510 = vst.msk [vmem:[#allocation3] sm:$0xff] %vm509, %v507
          %511 = vst.msk [vmem:[#allocation3 + $0x8] sm:$0xff] %vm509, %v508
          %v512 = vld [vmem:[#allocation4] sm:$0xff]
          %v513 = vld [vmem:[#allocation4 + $0x8] sm:$0xff]
          %v514 = vmul.f32 %v495, %v457
          %v515 = vmul.f32 %v496, %v459
          %v516 = vmul.f32 %v497, %v463
          %v517 = vmul.f32 %v498, %v465
          %v518 = vadd.f32 %v514, %v515
          %519 = vadd.xlane.f32.xlu0 %v518
          %v520 = vpop.xlane.xlu0 %519
          %v521 = vadd.f32 %v516, %v517
          %522 = vadd.xlane.f32.xlu0 %v521
          %v523 = vpop.xlane.xlu0 %522
          %v524 = vadd.f32 %v512, %v520
          %v525 = vadd.f32 %v513, %v523
          %526 = vst.msk [vmem:[#allocation4] sm:$0xff] %vm509, %v524
          %527 = vst.msk [vmem:[#allocation4 + $0x8] sm:$0xff] %vm509, %v525
        $region48: #{nas201_cell_forward.4} parent=35 // pred_fallthru
          _
        %p528 = scmp.eq.s32.totalorder %s20, 1
        %p529 = pnand %p528, %p468
        %p530 = pneg %p529
        // Predicated region
        $region49: #{nas201_cell_forward.4} parent=35 // pred_check
          _
        $region50: #{nas201_cell_forward.4} parent=35 // pred_check_branch
          %532 = sbr.rel (%p529) target = $region52
        $region51: #{nas201_cell_forward.4} parent=35 // pred_region
          %v533 = vld [vmem:[#allocation3] sm:$0xff]
          %v534 = vld [vmem:[#allocation3 + $0x8] sm:$0xff]
          %v535 = vmul.f32 %v533, 0.001953125
          %v536 = vmul.f32 %v534, 0.001953125
          %v537 = vld [vmem:[#allocation4] sm:$0xff]
          %v538 = vld [vmem:[#allocation4 + $0x8] sm:$0xff]
          %v539 = vmul.f32 %v537, 0.001953125
          %v540 = vmul.f32 %v538, 0.001953125
          %v541 = vmul.f32 %v535, %v535
          %v542 = vmul.f32 %v536, %v536
          %v543 = vsub.f32 %v539, %v541
          %v544 = vsub.f32 %v540, %v542
          %v545 = vmax.f32 %v543, 0.0
          %v546 = vmax.f32 %v544, 0.0
          %vm547 = vcmask 7168
          %548 = vst.msk [vmem:[#allocation3] sm:$0xff] %vm547, %v535
          %549 = vst.msk [vmem:[#allocation3 + $0x8] sm:$0xff] %vm547, %v536
          %v550 = vadd.f32 %v545, 1e-05
          %v551 = vadd.f32 %v546, 1e-05
          %v552 = vrsqrt.pop %v550
          %v553 = vrsqrt.pop %v551
          %554 = vst.msk [vmem:[#allocation4] sm:$0xff] %vm547, %v552
          %555 = vst.msk [vmem:[#allocation4 + $0x8] sm:$0xff] %vm547, %v553
        $region52: #{nas201_cell_forward.4} parent=35 // pred_fallthru
          _
        // Predicated region
        $region53: #{nas201_cell_forward.4} parent=35 // pred_check
          %p556 = pneg %p528
        $region54: #{nas201_cell_forward.4} parent=35 // pred_check_branch
          %558 = sbr.rel (%p556) target = $region56
        $region55: #{nas201_cell_forward.4} parent=35 // pred_region
          %v559 = vld [vmem:[#allocation3] sm:$0xff]
          %v560 = vld [vmem:[#allocation3 + $0x8] sm:$0xff]
          %v561 = vld [vmem:[#allocation4] sm:$0xff]
          %v562 = vld [vmem:[#allocation4 + $0x8] sm:$0xff]
          %564 = vset.pattern.permute.xlu0 0
          %565 = vperm.xlu0 %564, %v559
          %v566 = vpop.permute.xlu0 %565
          %569 = vset.pattern.permute.xlu0 0
          %570 = vperm.xlu0 %569, %v560
          %v571 = vpop.permute.xlu0 %570
          %v573 = vsub.f32 %v457, %v566
          %v574 = vsub.f32 %v459, %v566
          %v575 = vsub.f32 %v463, %v571
          %v576 = vsub.f32 %v465, %v571
          %578 = vset.pattern.permute.xlu0 0
          %579 = vperm.xlu0 %578, %v561
          %v580 = vpop.permute.xlu0 %579
          %583 = vset.pattern.permute.xlu0 0
          %584 = vperm.xlu0 %583, %v562
          %v585 = vpop.permute.xlu0 %584
          %v587 = vmul.f32 %v573, %v580
          %v588 = vmul.f32 %v574, %v580
          %v589 = vmul.f32 %v575, %v585
          %v590 = vmul.f32 %v576, %v585
          %592 = vrot.lane.b32.xlu0 %v247, 19
          %v593 = vpop.permute.xlu0 %592
          %v594 = vrot.slane %v593, 4
          %vm595 = vcmask 154624
          %v596 = vsel %vm595, %v594, %v593
          %v599 = vadd.f32 %v247, %v596
          %v600 = vadd.f32 %v248, %v594
          %602 = vrot.lane.b32.xlu0 %v247, 18
          %v603 = vpop.permute.xlu0 %602
          %604 = vrot.lane.b32.xlu0 %v248, 18
          %v605 = vpop.permute.xlu0 %604
          %v606 = vrot.slane %v603, 4
          %vm607 = vcmask 146432
          %v608 = vsel %vm607, %v606, %v603
          %v609 = vsel %vm607, %v606, %v605
          %v612 = vadd.f32 %v599, %v608
          %v613 = vadd.f32 %v600, %v609
          %614 = vrot.lane.b32.xlu0 %v247, 17
          %v615 = vpop.permute.xlu0 %614
          %616 = vrot.lane.b32.xlu0 %v248, 17
          %v617 = vpop.permute.xlu0 %616
          %v618 = vrot.slane %v615, 4
          %vm619 = vcmask 138240
          %v620 = vsel %vm619, %v618, %v615
          %v621 = vsel %vm619, %v618, %v617
          %v624 = vadd.f32 %v612, %v620
          %v625 = vadd.f32 %v613, %v621
          %626 = vrot.lane.b32.xlu0 %v247, 1
          %v627 = vpop.permute.xlu0 %626
          %628 = vrot.lane.b32.xlu0 %v248, 1
          %v629 = vpop.permute.xlu0 %628
          %v630 = vrot.slane %v627, 4
          %vm631 = vcmask 7168
          %v632 = vsel %vm631, %v630, %v627
          %v633 = vsel %vm631, %v630, %v629
          %v636 = vadd.f32 %v624, %v632
          %v637 = vadd.f32 %v625, %v633
          %638 = vrot.lane.b32.xlu0 %v247, 127
          %v639 = vpop.permute.xlu0 %638
          %640 = vrot.lane.b32.xlu0 %v248, 127
          %v641 = vpop.permute.xlu0 %640
          %v642 = vrot.slane %v639, 4
          %v643 = vrot.slane %v641, 4
          %v644 = vsel %vm383, %v642, %v643
          %v645 = vsel %vm266, %v639, %v644
          %v648 = vadd.f32 %v636, %v645
          %v649 = vadd.f32 %v637, %v641
          %650 = vrot.lane.b32.xlu0 %v247, 111
          %v651 = vpop.permute.xlu0 %650
          %652 = vrot.lane.b32.xlu0 %v248, 111
          %v653 = vpop.permute.xlu0 %652
          %v654 = vrot.slane %v651, 4
          %v655 = vrot.slane %v653, 4
          %v656 = vsel %vm383, %v654, %v655
          %vm657 = vcmask 908288
          %v658 = vsel %vm657, %v651, %v656
          %v661 = vadd.f32 %v648, %v658
          %v662 = vadd.f32 %v649, %v653
          %663 = vrot.lane.b32.xlu0 %v247, 110
          %v664 = vpop.permute.xlu0 %663
          %665 = vrot.lane.b32.xlu0 %v248, 110
          %v666 = vpop.permute.xlu0 %665
          %v667 = vrot.slane %v664, 4
          %v668 = vrot.slane %v666, 4
          %v669 = vsel %vm383, %v667, %v668
          %v670 = vsel %vm292, %v664, %v669
          %v673 = vadd.f32 %v661, %v670
          %v674 = vadd.f32 %v662, %v666
          %675 = vrot.lane.b32.xlu0 %v247, 109
          %v676 = vpop.permute.xlu0 %675
          %677 = vrot.lane.b32.xlu0 %v248, 109
          %v678 = vpop.permute.xlu0 %677
          %v679 = vrot.slane %v676, 4
          %v680 = vrot.slane %v678, 4
          %v681 = vsel %vm383, %v679, %v680
          %v682 = vsel %vm305, %v676, %v681
          %v685 = vadd.f32 %v673, %v682
          %v686 = vadd.f32 %v674, %v678
          %v688 = vlaneseq
          %v689 = vshrl.u32 %v688, 7
          %v690 = vsub.s32 0, %v689
          %v691 = vrot.slane %v249, %v690
          %v692 = vlaneseq
          %v693 = vshrl.u32 %v692, 7
          %v694 = vsub.s32 1, %v693
          %v695 = vrot.slane %v249, %v694
          %v696 = vcombine.low %v691, %v695
          %697 = vrot.lane.b32.xlu0 %v696, 19
          %v698 = vpop.permute.xlu0 %697
          %v699 = vrot.slane %v698, 4
          %v700 = vsel %vm595, %v699, %v698
          %v703 = vmul.f32 %v685, %v700
          %v704 = vmul.f32 %v686, %v699
          %s705 = sld [smem:[#allocation5 + $0x1]]
          %s706 = sld [smem:[#allocation5 + $0x2]]
          %s707 = sld [smem:[#allocation5 + $0x3]]
          %s708 = sld [smem:[#allocation5 + $0x4]]
          %v709 = vstv %s705
          %v710 = vmul.f32 %v709, %v247
          %v711 = vmul.f32 %v709, %v248
          %v712 = vstv %s706
          %v713 = vmul.f32 %v712, %v587
          %v714 = vmul.f32 %v712, %v588
          %v717 = vcombine.low %v713, %v714
          %718 = vrot.lane.b32.xlu0 %v717, 19
          %v719 = vpop.permute.xlu0 %718
          %v720 = vrot.slane %v719, 4
          %v721 = vsel %vm595, %v720, %v719
          %v724 = vadd.f32 %v710, %v721
          %v725 = vadd.f32 %v711, %v720
          %v726 = vstv %s707
          %v727 = vmul.f32 %v726, %v587
          %v728 = vmul.f32 %v726, %v588
          %v731 = vcombine.high %v727, %v728
          %732 = vrot.lane.b32.xlu0 %v731, 19
          %v733 = vpop.permute.xlu0 %732
          %v734 = vrot.slane %v733, 4
          %v735 = vsel %vm595, %v734, %v733
          %v738 = vadd.f32 %v724, %v735
          %v739 = vadd.f32 %v725, %v734
          %v740 = vstv %s708
          %v741 = vmul.f32 %v740, %v703
          %v742 = vmul.f32 %v740, %v704
          %v743 = vadd.f32 %v738, %v741
          %v744 = vadd.f32 %v739, %v742
          %v747 = vcombine.high %v743, %v743
          %748 = vrot.lane.b32.xlu0 %v743, 109
          %v749 = vpop.permute.xlu0 %748
          %750 = vrot.lane.b32.xlu0 %v747, 109
          %v751 = vpop.permute.xlu0 %750
          %752 = vrot.lane.b32.xlu0 %v744, 109
          %v753 = vpop.permute.xlu0 %752
          %v754 = vsel %vm305, %v749, %v751
          %v755 = vsel %vm305, %v751, %v753
          %758 = vst [vmem:[%s244] sm:$0xf] %v754
          %759 = vst [vmem:[%s244 + $0x8] sm:$0xf] %v755
          %s760 = sld [smem:[#allocation5 + $0x81]]
          %s761 = sld [smem:[#allocation5 + $0x82]]
          %s762 = sld [smem:[#allocation5 + $0x83]]
          %s763 = sld [smem:[#allocation5 + $0x84]]
          %v764 = vstv %s760
          %v765 = vmul.f32 %v764, %v247
          %v766 = vmul.f32 %v764, %v248
          %v767 = vstv %s761
          %v768 = vmul.f32 %v767, %v589
          %v769 = vmul.f32 %v767, %v590
          %v772 = vcombine.low %v768, %v769
          %773 = vrot.lane.b32.xlu0 %v772, 19
          %v774 = vpop.permute.xlu0 %773
          %v775 = vrot.slane %v774, 4
          %v776 = vsel %vm595, %v775, %v774
          %v779 = vadd.f32 %v765, %v776
          %v780 = vadd.f32 %v766, %v775
          %v781 = vstv %s762
          %v782 = vmul.f32 %v781, %v589
          %v783 = vmul.f32 %v781, %v590
          %v786 = vcombine.high %v782, %v783
          %787 = vrot.lane.b32.xlu0 %v786, 19
          %v788 = vpop.permute.xlu0 %787
          %v789 = vrot.slane %v788, 4
          %v790 = vsel %vm595, %v789, %v788
          %v793 = vadd.f32 %v779, %v790
          %v794 = vadd.f32 %v780, %v789
          %v795 = vstv %s763
          %v796 = vmul.f32 %v795, %v703
          %v797 = vmul.f32 %v795, %v704
          %v798 = vadd.f32 %v793, %v796
          %v799 = vadd.f32 %v794, %v797
          %v802 = vcombine.low %v798, %v798
          %v803 = vcombine.low %v799, %v799
          %804 = vrot.lane.b32.xlu0 %v802, 109
          %v805 = vpop.permute.xlu0 %804
          %806 = vrot.lane.b32.xlu0 %v798, 109
          %v807 = vpop.permute.xlu0 %806
          %808 = vrot.lane.b32.xlu0 %v803, 109
          %v809 = vpop.permute.xlu0 %808
          %v810 = vsel %vm305, %v805, %v807
          %v811 = vsel %vm305, %v807, %v809
          %814 = vst [vmem:[%s244] sm:$0xf0] %v810
          %815 = vst [vmem:[%s244 + $0x8] sm:$0xf0] %v811
        $region56: #{nas201_cell_forward.4} parent=35 // pred_fallthru
          _
        %s816 = smul.u32 %s20, %s21
        %s817 = smul.u32 2, %s816
        %p818 = scmp.lt.s32.totalorder %s817, 5
        %s819 = scalar_select %p818, %s817, 5
        %s820 = smul.addr %s819, 8
        %s821 = scalar_lea.vmem %s4, %s820
        // Predicated region
        $region57: #{nas201_cell_forward.4} parent=35 // pred_check
          %p822 = pneg %p142
        $region58: #{nas201_cell_forward.4} parent=35 // pred_check_branch
          %824 = sbr.rel (%p822) target = $region60
        $region59: #{nas201_cell_forward.4} parent=35 // pred_region
          %s825 = smul.u32 %s20, %s21
          %s826 = smul.u32 2, %s825
        $region60: #{nas201_cell_forward.4} parent=35 // pred_fallthru
          _
      $region36: #{nas201_cell_forward.4} parent=5 // pred_fallthru
        _
      %p827 = scmp.le.s32.totalorder 2, %s11
      // Predicated region
      $region61: #{nas201_cell_forward.4} parent=5 // pred_check
        %p828 = pneg %p827
      $region62: #{nas201_cell_forward.4} parent=5 // pred_check_branch
        %830 = sbr.rel (%p828) target = $region64
      $region63: #{nas201_cell_forward.4} parent=5 // pred_region
        %s831 = ssub.s32 %s11, 2
        // Predicated region
        $region65: #{nas201_cell_forward.4} parent=63 // pred_check
          %p832 = pneg %p148
        $region66: #{nas201_cell_forward.4} parent=63 // pred_check_branch
          %834 = sbr.rel (%p832) target = $region68
        $region67: #{nas201_cell_forward.4} parent=63 // pred_region
          %s835 = smul.u32 %s22, %s23
          %s836 = smul.u32 2, %s835
          %p837 = scmp.lt.s32.totalorder %s836, 5
          %s838 = scalar_select %p837, %s836, 5
          %s839 = smul.addr %s838, 8
          %s840 = scalar_lea.vmem %s4, %s839
        $region68: #{nas201_cell_forward.4} parent=63 // pred_fallthru
          _
      $region64: #{nas201_cell_forward.4} parent=5 // pred_fallthru
        _
    $region6: #{nas201_cell_forward.4} parent=1 // loop_footer
      %s15 = sadd.s32 1, %s11
    $region7: #{nas201_cell_forward.4} parent=1 // loop_footer_branch
      %10 = sbr.rel target = $region3
    $region8: #{nas201_cell_forward.4} parent=1 // loop_exit
      _
    %841 = vsyncpa [#allocation6], 1
    %s842 = scalar_lea.sflag [#allocation6], 1
    %843 = vsyncpa %s842, 1

// kernel: nas201_cell_forward.5
$region0: #{nas201_cell_forward.5}
  #allocation0 [shape = 'u32[]', space=smem, size = 0x4, offset = 0x4, fixed_abs, tag = 'smem constant byte address 0x4 - core index']
  #allocation1 [shape = 'u32[144,128]{1,0:T(1,128)}', space=vmem, size = 0x12000, scoped, tag = 'internal scratch']
  #allocation2 [shape = 'f32[36,256]{1,0:T(8,128)}', space=vmem, size = 0xa000, scoped, tag = 'scratch operand']
  #allocation3 [shape = 'f32[8,1]{1,0:T(8,128)}', space=vmem, size = 0x1000, scoped, tag = 'scratch operand']
  #allocation4 [shape = 'f32[8,1]{1,0:T(8,128)}', space=vmem, size = 0x1000, scoped, tag = 'scratch operand']
  %s0 = inlined_call_operand.vmem [shape: f32[1,5], index: 0, kind: input, shape index: {}]
  %s1 = inlined_call_operand.vmem [shape: f32[3,4,294], index: 1, kind: input, shape index: {}]
  %s2 = inlined_call_operand.vmem [shape: f32[3,1,256], index: 2, kind: input, shape index: {}]
  %s3 = inlined_call_operand.vmem [shape: f32[8,36], index: 3, kind: input, shape index: {}]
  %s4 = inlined_call_operand.vmem [shape: f32[4,768], index: 4, kind: output, shape index: {}]
  %s5 = sld [smem:[#allocation0]]
  $region69: #{nas201_cell_forward.5} parent=0
    _
  %s7 = ssub.s32 1, %s5
  %s8 = scalar_select 0, %s7, %s5
  $region1: #{nas201_cell_forward.5} parent=0
    #allocation5 [shape = 'u8[512]{0}', space=smem, size = 0x200, scoped, tag = 'input window, operand 0, single buffered']
    #allocation6 [shape = 's32[2]{0}', space=sflag, size = 0x8, scoped, tag = 'scoped memory for nas201_cell_forward.5']
    %9 = vsyncpa [#allocation6], 0
    loop: start=0, step=1, limit=8
    $region2: #{nas201_cell_forward.5} parent=1 // loop_pre_header
      _
    $region3: #{nas201_cell_forward.5} parent=1 // loop_header
      %s11 = sphi 0, %s15
      %p12 = scmp.ge.s32.totalorder %s11, 8
      %s18 = sphi 0, %s30
      %s19 = sphi 0, %s26
      %s20 = sphi 0, %s18
      %s21 = sphi 0, %s19
      %s22 = sphi 0, %s20
      %s23 = sphi 0, %s21
      %s31 = sphi 0, %s31
      %s33 = sphi 0, %s31
      %s34 = sphi 0, %s33
      %s48 = sphi 0, %s34
      %s54 = sphi 0, %s56
      %s57 = sphi 0, %s54
      %s58 = sphi 0, %s57
      %s74 = sphi 0, %s58
      %s80 = sphi 0, %s82
      %s83 = sphi 0, %s80
      %s84 = sphi 0, %s83
      %s100 = sphi 0, %s84
      %s104 = sphi 0, %s104
      %s106 = sphi 0, %s104
      %s107 = sphi 0, %s106
      %s121 = sphi 0, %s107
      %s129 = sphi 0, %s131
      %s132 = sphi 0, %s129
      %s133 = sphi 0, %s132
      %s149 = sphi 0, %s133
    $region4: #{nas201_cell_forward.5} parent=1 // loop_header_branch
      %14 = sbr.rel (%p12) target = $region8
    $region5: #{nas201_cell_forward.5} parent=1 // loop_body
      %s16 = ssub.s32 %s11, 1
      %s17 = ssub.s32 %s11, 2
      %s24 = sadd.s32 1, %s19
      %p25 = scmp.ge.s32.totalorder %s24, 3
      %s26 = scalar_select %p25, 0, %s24
      %s27 = sadd.s32 1, %s18
      %s28 = scalar_select %p25, %s27, %s18
      %p29 = scmp.ge.s32.totalorder %s28, 2
      %s30 = scalar_select %p29, 0, %s28
      %s32 = sadd.s32 %s31, 1
      %p35 = scmp.eq.s32.totalorder %s11, 5
      %p36 = scmp.ne.s32.totalorder %s31, %s33
      %p37 = scmp.eq.s32.totalorder %s11, 0
      %p38 = por %p36, %p37
      %p39 = scmp.ne.s32.totalorder %s31, %s33
      %p40 = scmp.eq.s32.totalorder %s16, 5
      %p41 = por %p39, %p40
      %p42 = scmp.ne.s32.totalorder %s33, %s34
      %p43 = scmp.eq.s32.totalorder %s16, 0
      %p44 = por %p42, %p43
      %p45 = scmp.ne.s32.totalorder %s33, %s34
      %p46 = scmp.eq.s32.totalorder %s17, 5
      %p47 = por %p45, %p46
      %p49 = scmp.ne.s32.totalorder %s34, %s48
      %p50 = scmp.eq.s32.totalorder %s17, 0
      %p51 = por %p49, %p50
      %s52 = ssub.s32 %s19, %s26
      %p53 = scmp.eq.s32.totalorder %s52, 0
      %s55 = sadd.s32 %s54, 1
      %s56 = scalar_select %p53, %s54, %s55
      %p59 = pneg %p53
      %p60 = scmp.eq.s32.totalorder %s11, 5
      %p61 = por %p59, %p60
      %p62 = scmp.ne.s32.totalorder %s54, %s57
      %p63 = scmp.eq.s32.totalorder %s11, 0
      %p64 = por %p62, %p63
      %p65 = scmp.ne.s32.totalorder %s54, %s57
      %p66 = scmp.eq.s32.totalorder %s16, 5
      %p67 = por %p65, %p66
      %p68 = scmp.ne.s32.totalorder %s57, %s58
      %p69 = scmp.eq.s32.totalorder %s16, 0
      %p70 = por %p68, %p69
      %p71 = scmp.ne.s32.totalorder %s57, %s58
      %p72 = scmp.eq.s32.totalorder %s17, 5
      %p73 = por %p71, %p72
      %p75 = scmp.ne.s32.totalorder %s58, %s74
      %p76 = scmp.eq.s32.totalorder %s17, 0
      %p77 = por %p75, %p76
      %s78 = ssub.s32 %s19, %s26
      %p79 = scmp.eq.s32.totalorder %s78, 0
      %s81 = sadd.s32 %s80, 1
      %s82 = scalar_select %p79, %s80, %s81
      %p85 = pneg %p79
      %p86 = scmp.eq.s32.totalorder %s11, 5
      %p87 = por %p85, %p86
      %p88 = scmp.ne.s32.totalorder %s80, %s83
      %p89 = scmp.eq.s32.totalorder %s11, 0
      %p90 = por %p88, %p89
      %p91 = scmp.ne.s32.totalorder %s80, %s83
      %p92 = scmp.eq.s32.totalorder %s16, 5
      %p93 = por %p91, %p92
      %p94 = scmp.ne.s32.totalorder %s83, %s84
      %p95 = scmp.eq.s32.totalorder %s16, 0
      %p96 = por %p94, %p95
      %p97 = scmp.ne.s32.totalorder %s83, %s84
      %p98 = scmp.eq.s32.totalorder %s17, 5
      %p99 = por %p97, %p98
      %p101 = scmp.ne.s32.totalorder %s84, %s100
      %p102 = scmp.eq.s32.totalorder %s17, 0
      %p103 = por %p101, %p102
      %s105 = sadd.s32 %s104, 1
      %p108 = scmp.eq.s32.totalorder %s11, 5
      %p109 = scmp.ne.s32.totalorder %s104, %s106
      %p110 = scmp.eq.s32.totalorder %s11, 0
      %p111 = por %p109, %p110
      %p112 = scmp.ne.s32.totalorder %s104, %s106
      %p113 = scmp.eq.s32.totalorder %s16, 5
      %p114 = por %p112, %p113
      %p115 = scmp.ne.s32.totalorder %s106, %s107
      %p116 = scmp.eq.s32.totalorder %s16, 0
      %p117 = por %p115, %p116
      %p118 = scmp.ne.s32.totalorder %s106, %s107
      %p119 = scmp.eq.s32.totalorder %s17, 5
      %p120 = por %p118, %p119
      %p122 = scmp.ne.s32.totalorder %s107, %s121
      %p123 = scmp.eq.s32.totalorder %s17, 0
      %p124 = por %p122, %p123
      %s125 = smul.u32 %s18, %s19
      %s126 = smul.u32 %s30, %s26
      %s127 = ssub.s32 %s125, %s126
      %p128 = scmp.eq.s32.totalorder %s127, 0
      %s130 = sadd.s32 %s129, 1
      %s131 = scalar_select %p128, %s129, %s130
      %p134 = pneg %p128
      %p135 = scmp.eq.s32.totalorder %s11, 5
      %p136 = por %p134, %p135
      %p137 = scmp.ne.s32.totalorder %s129, %s132
      %p138 = scmp.eq.s32.totalorder %s11, 0
      %p139 = por %p137, %p138
      %p140 = scmp.ne.s32.totalorder %s129, %s132
      %p141 = scmp.eq.s32.totalorder %s16, 5
      %p142 = por %p140, %p141
      %p143 = scmp.ne.s32.totalorder %s132, %s133
      %p144 = scmp.eq.s32.totalorder %s16, 0
      %p145 = por %p143, %p144
      %p146 = scmp.ne.s32.totalorder %s132, %s133
      %p147 = scmp.eq.s32.totalorder %s17, 5
      %p148 = por %p146, %p147
      %p150 = scmp.ne.s32.totalorder %s133, %s149
      %p151 = scmp.eq.s32.totalorder %s17, 0
      %p152 = por %p150, %p151
      %p153 = scmp.le.s32.totalorder 1, %s11
      %p154 = scmp.lt.s32.totalorder %s11, 7
      %p155 = pnand %p153, %p154
      %p156 = pneg %p155
      // Predicated region
      $region9: #{nas201_cell_forward.5} parent=5 // pred_check
        _
      $region10: #{nas201_cell_forward.5} parent=5 // pred_check_branch
        %158 = sbr.rel (%p155) target = $region12
      $region11: #{nas201_cell_forward.5} parent=5 // pred_region
        %s159 = ssub.s32 %s11, 1
        // Predicated region
        $region13: #{nas201_cell_forward.5} parent=11 // pred_check
          %p160 = pneg %p44
        $region14: #{nas201_cell_forward.5} parent=11 // pred_check_branch
          %162 = sbr.rel (%p160) target = $region16
        $region15: #{nas201_cell_forward.5} parent=11 // pred_region
          %s164 = ssub.s32 16, 16
          %165 = vsyncadd [#allocation6], %s164
          %s167 = sshll.u32 %s0, 4
          %s168 = int_to_ptr.vmem [resolvable:$true] %s167
          %170 = dma.vmem_to_smem %s168, 16, [#allocation5], [#allocation6]
        $region16: #{nas201_cell_forward.5} parent=11 // pred_fallthru
          _
        // Predicated region
        $region17: #{nas201_cell_forward.5} parent=11 // pred_check
          %p171 = pneg %p117
        $region18: #{nas201_cell_forward.5} parent=11 // pred_check_branch
          %173 = sbr.rel (%p171) target = $region20
        $region19: #{nas201_cell_forward.5} parent=11 // pred_region
          _
        $region20: #{nas201_cell_forward.5} parent=11 // pred_fallthru
          _
      $region12: #{nas201_cell_forward.5} parent=5 // pred_fallthru
        _
      %p174 = scmp.lt.s32.totalorder %s11, 6
      // Predicated region
      $region21: #{nas201_cell_forward.5} parent=5 // pred_check
        %p175 = pneg %p174
      $region22: #{nas201_cell_forward.5} parent=5 // pred_check_branch
        %177 = sbr.rel (%p175) target = $region24
      $region23: #{nas201_cell_forward.5} parent=5 // pred_region
        // Predicated region
        $region25: #{nas201_cell_forward.5} parent=23 // pred_check
          %p178 = pneg %p64
        $region26: #{nas201_cell_forward.5} parent=23 // pred_check_branch
          %180 = sbr.rel (%p178) target = $region28
        $region27: #{nas201_cell_forward.5} parent=23 // pred_region
          %p181 = scmp.lt.s32.totalorder %s19, 2
          %s182 = scalar_select %p181, %s19, 2
          %s183 = smul.addr %s182, 3
          %s184 = smul.addr %s183, 4
          %s185 = scalar_lea.vmem %s1, %s184
        $region28: #{nas201_cell_forward.5} parent=23 // pred_fallthru
          _
        // Predicated region
        $region29: #{nas201_cell_forward.5} parent=23 // pred_check
          %p186 = pneg %p90
        $region30: #{nas201_cell_forward.5} parent=23 // pred_check_branch
          %188 = sbr.rel (%p186) target = $region32
        $region31: #{nas201_cell_forward.5} parent=23 // pred_region
          %p189 = scmp.lt.s32.totalorder %s19, 2
          %s190 = scalar_select %p189, %s19, 2
          %s191 = smul.addr %s190, 2
          %s192 = scalar_lea.vmem %s2, %s191
        $region32: #{nas201_cell_forward.5} parent=23 // pred_fallthru
          _
      $region24: #{nas201_cell_forward.5} parent=5 // pred_fallthru
        _
      %p193 = scmp.le.s32.totalorder 1, %s11
      %p194 = scmp.lt.s32.totalorder %s11, 7
      %p195 = pnand %p193, %p194
      %p196 = pneg %p195
      // Predicated region
      $region33: #{nas201_cell_forward.5} parent=5 // pred_check
        _
      $region34: #{nas201_cell_forward.5} parent=5 // pred_check_branch
        %198 = sbr.rel (%p195) target = $region36
      $region35: #{nas201_cell_forward.5} parent=5 // pred_region
        %s199 = ssub.s32 %s11, 1
        // Predicated region
        $region37: #{nas201_cell_forward.5} parent=35 // pred_check
          %p200 = pneg %p44
        $region38: #{nas201_cell_forward.5} parent=35 // pred_check_branch
          %202 = sbr.rel (%p200) target = $region40
        $region39: #{nas201_cell_forward.5} parent=35 // pred_region
          %203 = dma.done [#allocation6], 16
        $region40: #{nas201_cell_forward.5} parent=35 // pred_fallthru
          _
        %204 = sfence
        %p205 = pneg %p44
        %p206 = pneg %p41
        %p207 = scmp.lt.s32.totalorder %s21, 2
        %s208 = scalar_select %p207, %s21, 2
        %s209 = smul.addr %s208, 3
        %s210 = smul.addr %s209, 4
        %s211 = scalar_lea.vmem %s1, %s210
        %p212 = pneg %p70
        %p213 = pneg %p67
        %p214 = scmp.lt.s32.totalorder %s21, 2
        %s215 = scalar_select %p214, %s21, 2
        %s216 = smul.addr %s215, 2
        %s217 = scalar_lea.vmem %s2, %s216
        %p218 = pneg %p96
        %p219 = pneg %p93
        %p220 = pneg %p117
        %p221 = pneg %p114
        %p222 = pneg %p145
        %p223 = pneg %p142
        %s224 = smul.u32 %s20, %s21
        %s225 = smul.u32 2, %s224
        %p226 = scmp.lt.s32.totalorder %s225, 5
        %s227 = scalar_select %p226, %s225, 5
        %s228 = smul.addr %s227, 4
        %s229 = scalar_lea.vmem %s4, %s228
        %p230 = scmp.lt.s32.totalorder %s21, 2
        %s231 = scalar_select %p230, %s21, 2
        %s232 = smul.addr %s231, 3
        %s233 = smul.addr %s232, 4
        %s234 = scalar_lea.vmem %s1, %s233
        %p235 = scmp.lt.s32.totalorder %s21, 2
        %s236 = scalar_select %p235, %s21, 2
        %s237 = smul.addr %s236, 2
        %s238 = scalar_lea.vmem %s2, %s237
        %s239 = smul.u32 %s20, %s21
        %s240 = smul.u32 2, %s239
        %p241 = scmp.lt.s32.totalorder %s240, 5
        %s242 = scalar_select %p241, %s240, 5
        %s243 = smul.addr %s242, 4
        %s244 = scalar_lea.vmem %s4, %s243
        %s245 = smul.u32 %s20, %s21
        %s246 = smul.u32 2, %s245
        %v247 = vld [vmem:[%s234] sm:$0xff]
        %v248 = vld [vmem:[%s234 + $0x8] sm:$0xf]
        %v249 = vld [vmem:[%s238] sm:$0x3]
        %v250 = vmax.f32 %v247, 0.0
        %v251 = vmax.f32 %v248, 0.0
        %v253 = vcombine.high %v250, %v250
        %255 = vst [vmem:[#allocation2] sm:$0xf] %v250
        %256 = vst [vmem:[#allocation2 + $0x8] sm:$0xf] %v253
        %v258 = vcombine.low %v250, %v250
        %v259 = vcombine.low %v251, %v251
        %260 = vrot.lane.b32.xlu0 %v258, 127
        %v261 = vpop.permute.xlu0 %260
        %262 = vrot.lane.b32.xlu0 %v250, 127
        %v263 = vpop.permute.xlu0 %262
        %264 = vrot.lane.b32.xlu0 %v259, 127
        %v265 = vpop.permute.xlu0 %264
        %vm266 = vcmask 1039360
        %v267 = vsel %vm266, %v261, %v263
        %v268 = vsel %vm266, %v263, %v265
        %271 = vst [vmem:[#allocation2] sm:$0xf0] %v267
        %272 = vst [vmem:[#allocation2 + $0x8] sm:$0xf0] %v268
        %273 = vrot.lane.b32.xlu0 %v250, 126
        %v274 = vpop.permute.xlu0 %273
        %275 = vrot.lane.b32.xlu0 %v253, 126
        %v276 = vpop.permute.xlu0 %275
        %277 = vrot.lane.b32.xlu0 %v251, 126
        %v278 = vpop.permute.xlu0 %277
        %vm279 = vcmask 1031168
        %v280 = vsel %vm279, %v274, %v276
        %v281 = vsel %vm279, %v276, %v278
        %284 = vst [vmem:[#allocation2 + $0x10] sm:$0xf] %v280
        %285 = vst [vmem:[#allocation2 + $0x18] sm:$0xf] %v281
        %286 = vrot.lane.b32.xlu0 %v258, 110
        %v287 = vpop.permute.xlu0 %286
        %288 = vrot.lane.b32.xlu0 %v250, 110
        %v289 = vpop.permute.xlu0 %288
        %290 = vrot.lane.b32.xlu0 %v259, 110
        %v291 = vpop.permute.xlu0 %290
        %vm292 = vcmask 900096
        %v293 = vsel %vm292, %v287, %v289
        %v294 = vsel %vm292, %v289, %v291
        %297 = vst [vmem:[#allocation2 + $0x10] sm:$0xf0] %v293
        %298 = vst [vmem:[#allocation2 + $0x18] sm:$0xf0] %v294
        %299 = vrot.lane.b32.xlu0 %v250, 109
        %v300 = vpop.permute.xlu0 %299
        %301 = vrot.lane.b32.xlu0 %v253, 109
        %v302 = vpop.permute.xlu0 %301
        %303 = vrot.lane.b32.xlu0 %v251, 109
        %v304 = vpop.permute.xlu0 %303
        %vm305 = vcmask 891904
        %v306 = vsel %vm305, %v300, %v302
        %v307 = vsel %vm305, %v302, %v304
        %310 = vst [vmem:[#allocation2 + $0x20] sm:$0xf] %v306
        %311 = vst [vmem:[#allocation2 + $0x28] sm:$0xf] %v307
        %312 = vrot.lane.b32.xlu0 %v258, 108
        %v313 = vpop.permute.xlu0 %312
        %314 = vrot.lane.b32.xlu0 %v250, 108
        %v315 = vpop.permute.xlu0 %314
        %316 = vrot.lane.b32.xlu0 %v259, 108
        %v317 = vpop.permute.xlu0 %316
        %vm318 = vcmask 883712
        %v319 = vsel %vm318, %v313, %v315
        %v320 = vsel %vm318, %v315, %v317
        %323 = vst [vmem:[#allocation2 + $0x20] sm:$0xf0] %v319
        %324 = vst [vmem:[#allocation2 + $0x28] sm:$0xf0] %v320
        %325 = vrot.lane.b32.xlu0 %v250, 92
        %v326 = vpop.permute.xlu0 %325
        %327 = vrot.lane.b32.xlu0 %v253, 92
        %v328 = vpop.permute.xlu0 %327
        %329 = vrot.lane.b32.xlu0 %v251, 92
        %v330 = vpop.permute.xlu0 %329
        %vm331 = vcmask 752640
        %v332 = vsel %vm331, %v326, %v328
        %v333 = vsel %vm331, %v328, %v330
        %336 = vst [vmem:[#allocation2 + $0x30] sm:$0xf] %v332
        %337 = vst [vmem:[#allocation2 + $0x38] sm:$0xf] %v333
        %338 = vrot.lane.b32.xlu0 %v258, 91
        %v339 = vpop.permute.xlu0 %338
        %340 = vrot.lane.b32.xlu0 %v250, 91
        %v341 = vpop.permute.xlu0 %340
        %342 = vrot.lane.b32.xlu0 %v259, 91
        %v343 = vpop.permute.xlu0 %342
        %vm344 = vcmask 744448
        %v345 = vsel %vm344, %v339, %v341
        %v346 = vsel %vm344, %v341, %v343
        %349 = vst [vmem:[#allocation2 + $0x30] sm:$0xf0] %v345
        %350 = vst [vmem:[#allocation2 + $0x38] sm:$0xf0] %v346
        %351 = vrot.lane.b32.xlu0 %v250, 90
        %v352 = vpop.permute.xlu0 %351
        %353 = vrot.lane.b32.xlu0 %v253, 90
        %v354 = vpop.permute.xlu0 %353
        %355 = vrot.lane.b32.xlu0 %v251, 90
        %v356 = vpop.permute.xlu0 %355
        %vm357 = vcmask 736256
        %v358 = vsel %vm357, %v352, %v354
        %v359 = vsel %vm357, %v354, %v356
        %362 = vst [vmem:[#allocation2 + $0x40] sm:$0xf] %v358
        %363 = vst [vmem:[#allocation2 + $0x48] sm:$0xf] %v359
        %v364 = vld [vmem:[%s3] sm:$0xff]
        %v365 = vld [vmem:[#allocation2] sm:$0xff]
        %v366 = vld [vmem:[#allocation2 + $0x8] sm:$0xff]
        %v367 = vld [vmem:[#allocation2 + $0x10] sm:$0xff]
        %v368 = vld [vmem:[#allocation2 + $0x18] sm:$0xff]
        %v369 = vld [vmem:[#allocation2 + $0x20] sm:$0xff]
        %v370 = vld [vmem:[#allocation2 + $0x28] sm:$0xff]
        %v371 = vld [vmem:[#allocation2 + $0x30] sm:$0xff]
        %v372 = vld [vmem:[#allocation2 + $0x38] sm:$0xff]
        %v373 = vld [vmem:[#allocation2 + $0x40] sm:$0xf]
        %v374 = vld [vmem:[#allocation2 + $0x48] sm:$0xf]
        %vm375 = vcmask 293888
        %v377 = vsel %vm375, %v364, 0
        %vm379 = vcmask 1043456
        %v381 = vsel %vm379, %v373, 0
        %v384 = vsel %vm379, %v374, 0
        %386 = vmatprep.subr.mxu0 %v366
        %387 = vmatpush1.msra.mxu0 %v365
        %388 = vmatprep.subr.mxu0 %v368
        %389 = vmatpush1.msra.mxu0 %v367
        %390 = vmatprep.subr.mxu0 %v370
        %391 = vmatpush1.msra.mxu0 %v369
        %392 = vmatprep.subr.mxu0 %v372
        %393 = vmatpush1.msra.mxu0 %v371
        %394 = vmatprep.subr.mxu0 %v384
        %395 = vmatpush1.msra.mxu0 %v381
        %396 = vmatprep.subr.mxu0 0.0
        %397 = vmatpush1.msra.mxu0 0.0
        %398 = vmatprep.subr.mxu0 0.0
        %399 = vmatpush1.msra.mxu0 0.0
        %400 = vmatprep.subr.mxu0 0.0
        %401 = vmatpush1.msra.mxu0 0.0
        %402 = vmatprep.subr.mxu0 0.0
        %403 = vmatpush1.msra.mxu0 0.0
        %404 = vmatprep.subr.mxu0 0.0
        %405 = vmatpush1.msra.mxu0 0.0
        %406 = vmatprep.subr.mxu0 0.0
        %407 = vmatpush1.msra.mxu0 0.0
        %408 = vmatprep.subr.mxu0 0.0
        %409 = vmatpush1.msra.mxu0 0.0
        %410 = vmatprep.subr.mxu0 0.0
        %411 = vmatpush1.msra.mxu0 0.0
        %412 = vmatprep.subr.mxu0 0.0
        %413 = vmatpush1.msra.mxu0 0.0
        %414 = vmatprep.subr.mxu0 0.0
        %415 = vmatpush1.msra.mxu0 0.0
        %416 = vmatprep.subr.mxu0 0.0
        %417 = vmatpush1.msra.mxu0 0.0
        %418 = vmatprep.subr.mxu0 0.0
        %419 = vmatpush1.msra.mxu0 0.0
        %420 = vmatprep.subr.mxu0 0.0
        %421 = vmatpush1.msra.mxu0 0.0
        %422 = vmatprep.subr.mxu0 0.0
        %423 = vmatpush1.msra.mxu0 0.0
        %424 = vmatprep.subr.mxu0 0.0
        %425 = vmatpush1.msra.mxu0 0.0
        %426 = vmatprep.subr.mxu0 0.0
        %427 = vmatpush1.msra.mxu0 0.0
        %428 = vmatprep.subr.mxu0 0.0
        %429 = vmatpush1.msra.mxu0 0.0
        %430 = vmatprep.subr.mxu0 0.0
        %431 = vmatpush1.msra.mxu0 0.0
        %432 = vmatprep.subr.mxu0 0.0
        %433 = vmatpush1.msra.mxu0 0.0
        %434 = vmatprep.subr.mxu0 0.0
        %435 = vmatpush1.msra.mxu0 0.0
        %436 = vmatprep.subr.mxu0 0.0
        %437 = vmatpush1.msra.mxu0 0.0
        %438 = vmatprep.subr.mxu0 0.0
        %439 = vmatpush1.msra.mxu0 0.0
        %440 = vmatprep.subr.mxu0 0.0
        %441 = vmatpush1.msra.mxu0 0.0
        %442 = vmatprep.subr.mxu0 0.0
        %443 = vmatpush1.msra.mxu0 0.0
        %444 = vmatprep.subr.mxu0 0.0
        %445 = vmatpush1.msra.mxu0 0.0
        %446 = vmatprep.subr.mxu0 0.0
        %447 = vmatpush1.msra.mxu0 0.0
        %448 = vmatprep.subr.mxu0 0.0
        %449 = vmatpush1.msra.mxu0 0.0
        %450 = vmatprep.mubr.f32.mxu0 0.0
        %451 = vmatmul.mubr.f32.gmra.mrb[0].mxu0 %v377
        %v452 = vpop.f32.mrb[0].mxu0
        %v453 = vadd.f32 0.0, %v452
        %v454 = vpop.f32.mrb[0].mxu0
        %v455 = vadd.f32 0.0, %v454
        %456 = vdwg.mxu0
        %p457 = scmp.eq.s32.totalorder %s20, 0
        %p458 = scmp.eq.s32.totalorder %s21, 0
        %p459 = pnand %p457, %p458
        %p460 = pneg %p459
        // Predicated region
        $region41: #{nas201_cell_forward.5} parent=35 // pred_check
          _
        $region42: #{nas201_cell_forward.5} parent=35 // pred_check_branch
          %462 = sbr.rel (%p459) target = $region44
        $region43: #{nas201_cell_forward.5} parent=35 // pred_region
          %vm463 = vcmask 7168
          %464 = vst.msk [vmem:[#allocation3] sm:$0xff] %vm463, 0.0
          %465 = vst.msk [vmem:[#allocation4] sm:$0xff] %vm463, 0.0
        $region44: #{nas201_cell_forward.5} parent=35 // pred_fallthru
          _
        // Predicated region
        $region45: #{nas201_cell_forward.5} parent=35 // pred_check
          %p466 = pneg %p457
        $region46: #{nas201_cell_forward.5} parent=35 // pred_check_branch
          %468 = sbr.rel (%p466) target = $region48
        $region47: #{nas201_cell_forward.5} parent=35 // pred_region
          %vm469 = vcmp.gt.f32.partialorder %v249, 0.0
          %v470 = vsel %vm469, 1, 0
          %v471 = vcvt.s32.f32 %v470
          %v473 = vlaneseq
          %v474 = vshrl.u32 %v473, 7
          %v475 = vsub.s32 0, %v474
          %v476 = vrot.slane %v471, %v475
          %v477 = vlaneseq
          %v478 = vshrl.u32 %v477, 7
          %v479 = vsub.s32 1, %v478
          %v480 = vrot.slane %v471, %v479
          %v483 = vmul.f32 %v453, %v476
          %v484 = vmul.f32 %v455, %v480
          %v485 = vld [vmem:[#allocation3] sm:$0xff]
          %v486 = vadd.f32 %v483, %v484
          %487 = vadd.xlane.f32.xlu0 %v486
          %v488 = vpop.xlane.xlu0 %487
          %v489 = vadd.f32 %v485, %v488
          %vm490 = vcmask 7168
          %491 = vst.msk [vmem:[#allocation3] sm:$0xff] %vm490, %v489
          %v492 = vld [vmem:[#allocation4] sm:$0xff]
          %v493 = vmul.f32 %v483, %v453
          %v494 = vmul.f32 %v484, %v455
          %v495 = vadd.f32 %v493, %v494
          %496 = vadd.xlane.f32.xlu0 %v495
          %v497 = vpop.xlane.xlu0 %496
          %v498 = vadd.f32 %v492, %v497
          %499 = vst.msk [vmem:[#allocation4] sm:$0xff] %vm490, %v498
        $region48: #{nas201_cell_forward.5} parent=35 // pred_fallthru
          _
        %p500 = scmp.eq.s32.totalorder %s20, 1
        %p501 = pnand %p500, %p458
        %p502 = pneg %p501
        // Predicated region
        $region49: #{nas201_cell_forward.5} parent=35 // pred_check
          _
        $region50: #{nas201_cell_forward.5} parent=35 // pred_check_branch
          %504 = sbr.rel (%p501) target = $region52
        $region51: #{nas201_cell_forward.5} parent=35 // pred_region
          %v505 = vld [vmem:[#allocation3] sm:$0xff]
          %v506 = vmul.f32 %v505, 0.001953125
          %v507 = vld [vmem:[#allocation4] sm:$0xff]
          %v508 = vmul.f32 %v507, 0.001953125
          %v509 = vmul.f32 %v506, %v506
          %v510 = vsub.f32 %v508, %v509
          %v511 = vmax.f32 %v510, 0.0
          %vm512 = vcmask 7168
          %513 = vst.msk [vmem:[#allocation3] sm:$0xff] %vm512, %v506
          %v514 = vadd.f32 %v511, 1e-05
          %v515 = vrsqrt.pop %v514
          %516 = vst.msk [vmem:[#allocation4] sm:$0xff] %vm512, %v515
        $region52: #{nas201_cell_forward.5} parent=35 // pred_fallthru
          _
        // Predicated region
        $region53: #{nas201_cell_forward.5} parent=35 // pred_check
          %p517 = pneg %p500
        $region54: #{nas201_cell_forward.5} parent=35 // pred_check_branch
          %519 = sbr.rel (%p517) target = $region56
        $region55: #{nas201_cell_forward.5} parent=35 // pred_region
          %v520 = vld [vmem:[#allocation3] sm:$0xff]
          %v521 = vld [vmem:[#allocation4] sm:$0xff]
          %523 = vset.pattern.permute.xlu0 0
          %524 = vperm.xlu0 %523, %v520
          %v525 = vpop.permute.xlu0 %524
          %v527 = vsub.f32 %v453, %v525
          %v528 = vsub.f32 %v455, %v525
          %530 = vset.pattern.permute.xlu0 0
          %531 = vperm.xlu0 %530, %v521
          %v532 = vpop.permute.xlu0 %531
          %v534 = vmul.f32 %v527, %v532
          %v535 = vmul.f32 %v528, %v532
          %537 = vrot.lane.b32.xlu0 %v247, 19
          %v538 = vpop.permute.xlu0 %537
          %v539 = vrot.slane %v538, 4
          %vm540 = vcmask 154624
          %v541 = vsel %vm540, %v539, %v538
          %v544 = vadd.f32 %v247, %v541
          %v545 = vadd.f32 %v248, %v539
          %547 = vrot.lane.b32.xlu0 %v247, 18
          %v548 = vpop.permute.xlu0 %547
          %549 = vrot.lane.b32.xlu0 %v248, 18
          %v550 = vpop.permute.xlu0 %549
          %v551 = vrot.slane %v548, 4
          %vm552 = vcmask 146432
          %v553 = vsel %vm552, %v551, %v548
          %v554 = vsel %vm552, %v551, %v550
          %v557 = vadd.f32 %v544, %v553
          %v558 = vadd.f32 %v545, %v554
          %559 = vrot.lane.b32.xlu0 %v247, 17
          %v560 = vpop.permute.xlu0 %559
          %561 = vrot.lane.b32.xlu0 %v248, 17
          %v562 = vpop.permute.xlu0 %561
          %v563 = vrot.slane %v560, 4
          %vm564 = vcmask 138240
          %v565 = vsel %vm564, %v563, %v560
          %v566 = vsel %vm564, %v563, %v562
          %v569 = vadd.f32 %v557, %v565
          %v570 = vadd.f32 %v558, %v566
          %571 = vrot.lane.b32.xlu0 %v247, 1
          %v572 = vpop.permute.xlu0 %571
          %573 = vrot.lane.b32.xlu0 %v248, 1
          %v574 = vpop.permute.xlu0 %573
          %v575 = vrot.slane %v572, 4
          %vm576 = vcmask 7168
          %v577 = vsel %vm576, %v575, %v572
          %v578 = vsel %vm576, %v575, %v574
          %v581 = vadd.f32 %v569, %v577
          %v582 = vadd.f32 %v570, %v578
          %583 = vrot.lane.b32.xlu0 %v247, 127
          %v584 = vpop.permute.xlu0 %583
          %585 = vrot.lane.b32.xlu0 %v248, 127
          %v586 = vpop.permute.xlu0 %585
          %v587 = vrot.slane %v584, 4
          %v588 = vrot.slane %v586, 4
          %v589 = vsel %vm379, %v587, %v588
          %v590 = vsel %vm266, %v584, %v589
          %v593 = vadd.f32 %v581, %v590
          %v594 = vadd.f32 %v582, %v586
          %595 = vrot.lane.b32.xlu0 %v247, 111
          %v596 = vpop.permute.xlu0 %595
          %597 = vrot.lane.b32.xlu0 %v248, 111
          %v598 = vpop.permute.xlu0 %597
          %v599 = vrot.slane %v596, 4
          %v600 = vrot.slane %v598, 4
          %v601 = vsel %vm379, %v599, %v600
          %vm602 = vcmask 908288
          %v603 = vsel %vm602, %v596, %v601
          %v606 = vadd.f32 %v593, %v603
          %v607 = vadd.f32 %v594, %v598
          %608 = vrot.lane.b32.xlu0 %v247, 110
          %v609 = vpop.permute.xlu0 %608
          %610 = vrot.lane.b32.xlu0 %v248, 110
          %v611 = vpop.permute.xlu0 %610
          %v612 = vrot.slane %v609, 4
          %v613 = vrot.slane %v611, 4
          %v614 = vsel %vm379, %v612, %v613
          %v615 = vsel %vm292, %v609, %v614
          %v618 = vadd.f32 %v606, %v615
          %v619 = vadd.f32 %v607, %v611
          %620 = vrot.lane.b32.xlu0 %v247, 109
          %v621 = vpop.permute.xlu0 %620
          %622 = vrot.lane.b32.xlu0 %v248, 109
          %v623 = vpop.permute.xlu0 %622
          %v624 = vrot.slane %v621, 4
          %v625 = vrot.slane %v623, 4
          %v626 = vsel %vm379, %v624, %v625
          %v627 = vsel %vm305, %v621, %v626
          %v630 = vadd.f32 %v618, %v627
          %v631 = vadd.f32 %v619, %v623
          %v633 = vlaneseq
          %v634 = vshrl.u32 %v633, 7
          %v635 = vsub.s32 0, %v634
          %v636 = vrot.slane %v249, %v635
          %v637 = vlaneseq
          %v638 = vshrl.u32 %v637, 7
          %v639 = vsub.s32 1, %v638
          %v640 = vrot.slane %v249, %v639
          %v641 = vcombine.low %v636, %v640
          %642 = vrot.lane.b32.xlu0 %v641, 19
          %v643 = vpop.permute.xlu0 %642
          %v644 = vrot.slane %v643, 4
          %v645 = vsel %vm540, %v644, %v643
          %v648 = vmul.f32 %v630, %v645
          %v649 = vmul.f32 %v631, %v644
          %s650 = sld [smem:[#allocation5 + $0x1]]
          %s651 = sld [smem:[#allocation5 + $0x2]]
          %s652 = sld [smem:[#allocation5 + $0x3]]
          %s653 = sld [smem:[#allocation5 + $0x4]]
          %v654 = vstv %s650
          %v655 = vmul.f32 %v654, %v247
          %v656 = vmul.f32 %v654, %v248
          %v657 = vstv %s651
          %v658 = vmul.f32 %v657, %v534
          %v659 = vmul.f32 %v657, %v535
          %v662 = vcombine.low %v658, %v659
          %663 = vrot.lane.b32.xlu0 %v662, 19
          %v664 = vpop.permute.xlu0 %663
          %v665 = vrot.slane %v664, 4
          %v666 = vsel %vm540, %v665, %v664
          %v669 = vadd.f32 %v655, %v666
          %v670 = vadd.f32 %v656, %v665
          %v671 = vstv %s652
          %v672 = vmul.f32 %v671, %v534
          %v673 = vmul.f32 %v671, %v535
          %v676 = vcombine.high %v672, %v673
          %677 = vrot.lane.b32.xlu0 %v676, 19
          %v678 = vpop.permute.xlu0 %677
          %v679 = vrot.slane %v678, 4
          %v680 = vsel %vm540, %v679, %v678
          %v683 = vadd.f32 %v669, %v680
          %v684 = vadd.f32 %v670, %v679
          %v685 = vstv %s653
          %v686 = vmul.f32 %v685, %v648
          %v687 = vmul.f32 %v685, %v649
          %v688 = vadd.f32 %v683, %v686
          %v689 = vadd.f32 %v684, %v687
          %692 = vrot.lane.b32.xlu0 %v688, 109
          %v693 = vpop.permute.xlu0 %692
          %694 = vrot.lane.b32.xlu0 %v689, 109
          %v695 = vpop.permute.xlu0 %694
          %v696 = vrot.slane %v693, 4
          %v697 = vrot.slane %v695, 4
          %v698 = vsel %vm379, %v696, %v697
          %v699 = vsel %vm305, %v693, %v698
          %701 = vst [vmem:[%s244] sm:$0xff] %v699
        $region56: #{nas201_cell_forward.5} parent=35 // pred_fallthru
          _
        %s702 = smul.u32 %s20, %s21
        %s703 = smul.u32 2, %s702
        %p704 = scmp.lt.s32.totalorder %s703, 5
        %s705 = scalar_select %p704, %s703, 5
        %s706 = smul.addr %s705, 4
        %s707 = scalar_lea.vmem %s4, %s706
        // Predicated region
        $region57: #{nas201_cell_forward.5} parent=35 // pred_check
          %p708 = pneg %p142
        $region58: #{nas201_cell_forward.5} parent=35 // pred_check_branch
          %710 = sbr.rel (%p708) target = $region60
        $region59: #{nas201_cell_forward.5} parent=35 // pred_region
          %s711 = smul.u32 %s20, %s21
          %s712 = smul.u32 2, %s711
        $region60: #{nas201_cell_forward.5} parent=35 // pred_fallthru
          _
      $region36: #{nas201_cell_forward.5} parent=5 // pred_fallthru
        _
      %p713 = scmp.le.s32.totalorder 2, %s11
      // Predicated region
      $region61: #{nas201_cell_forward.5} parent=5 // pred_check
        %p714 = pneg %p713
      $region62: #{nas201_cell_forward.5} parent=5 // pred_check_branch
        %716 = sbr.rel (%p714) target = $region64
      $region63: #{nas201_cell_forward.5} parent=5 // pred_region
        %s717 = ssub.s32 %s11, 2
        // Predicated region
        $region65: #{nas201_cell_forward.5} parent=63 // pred_check
          %p718 = pneg %p148
        $region66: #{nas201_cell_forward.5} parent=63 // pred_check_branch
          %720 = sbr.rel (%p718) target = $region68
        $region67: #{nas201_cell_forward.5} parent=63 // pred_region
          %s721 = smul.u32 %s22, %s23
          %s722 = smul.u32 2, %s721
          %p723 = scmp.lt.s32.totalorder %s722, 5
          %s724 = scalar_select %p723, %s722, 5
          %s725 = smul.addr %s724, 4
          %s726 = scalar_lea.vmem %s4, %s725
        $region68: #{nas201_cell_forward.5} parent=63 // pred_fallthru
          _
      $region64: #{nas201_cell_forward.5} parent=5 // pred_fallthru
        _
    $region6: #{nas201_cell_forward.5} parent=1 // loop_footer
      %s15 = sadd.s32 1, %s11
    $region7: #{nas201_cell_forward.5} parent=1 // loop_footer_branch
      %10 = sbr.rel target = $region3
    $region8: #{nas201_cell_forward.5} parent=1 // loop_exit
      _
    %727 = vsyncpa [#allocation6], 1
    %s728 = scalar_lea.sflag [#allocation6], 1
    %729 = vsyncpa %s728, 1

</llo_original>
